<compile_context>
chip_gen: v7x
topology: tpu7x:2x2x1
jax: 0.10.0
libtpu: 0.0.40
codegen_flags: <defaults>
</compile_context>

<pallas_src>
import functools
import numpy as np
import jax
import jax.numpy as jnp
from jax.experimental import pallas as pl
from jax.experimental.pallas import tpu as pltpu


SCORE_LANES = 128


def _leaky(x, slope=0.1):
    return jnp.where(x > 0, x, slope * x)


def _round_up(x, m):
    return ((x + m - 1) // m) * m


def _cdiv(a, b):
    return -(-a // b)


def _vmem_capacity_bytes():
    try:
        cap = int(getattr(pltpu.get_tpu_info(), "vmem_capacity_bytes", 0))
        if cap > 0:
            return cap
    except Exception:
        pass
    return 64 * 1024 * 1024          # safe default for every TPU generation


@functools.lru_cache(maxsize=1)
def _buffered_one_supported():
    """Probe whether BlockSpec(pipeline_mode=pl.Buffered(1)) works here."""
    try:
        def k(x_ref, o_ref):
            o_ref[...] = x_ref[...] + 1.0

        f = pl.pallas_call(
            k, grid=(2,),
            in_specs=[pl.BlockSpec((8, 128), lambda i: (0, 0),
                                   pipeline_mode=pl.Buffered(1))],
            out_specs=pl.BlockSpec((8, 128), lambda i: (0, 0)),
            out_shape=jax.ShapeDtypeStruct((8, 128), jnp.float32))
        out = f(jnp.zeros((8, 128), jnp.float32))
        jax.block_until_ready(out)
        return bool(np.allclose(np.asarray(out), 1.0))
    except Exception:
        return False


# ----------------------------------------------------------------------------
# Fused kernel: two STAR-GCN blocks (bipartite, K-tiled propagation) + BPR
# scoring.  grid = (phase, row_tile, k_tile); row tiles cover users then items.
# ----------------------------------------------------------------------------
def _make_stargcn_kernel(*, TR, TK_u, TK_i, K_u, K_i, K_steps, T_u, T_i,
                         U_rows, I_rows, U_cols, N_store, D_pad,
                         B, B_pad, compute_dtype):
    T_total = T_u + T_i

    def kernel(uid_ref, pid_ref, nid_ref, mask_ref,           # SMEM prefetch
               g_ui_ref, g_iu_ref, x0_ref, wf_ref, w4_ref,    # VMEM inputs
               scores_ref,                                     # (B_pad,128) out
               acc_ref, x1_ref, g1_ref, g2_ref):               # VMEM scratch
        p = pl.program_id(0)          # 0 -> produce x_1, 1 -> produce x_2
        r = pl.program_id(1)          # row tile (users first, then items)
        k = pl.program_id(2)          # contraction tile
        is_user = r < T_u

        # One-time init: zero the x1 gap rows (graph-column padding) and the
        # small score-gather buffers.
        @pl.when((p == 0) & (r == 0) & (k == 0))
        def _():
            if U_cols > U_rows:
                x1_ref[U_rows:U_cols, :] = jnp.zeros(
                    (U_cols - U_rows, D_pad), compute_dtype)
            if N_store > U_cols + I_rows:
                x1_ref[U_cols + I_rows:N_store, :] = jnp.zeros(
                    (N_store - U_cols - I_rows, D_pad), compute_dtype)
            g1_ref[...] = jnp.zeros_like(g1_ref)
            g2_ref[...] = jnp.zeros_like(g2_ref)

        @pl.when(k == 0)
        def _():
            acc_ref[...] = jnp.zeros_like(acc_ref)

        def accumulate(src_ref):
            # user rows aggregate over the item region of the source.
            @pl.when(is_user & (k < K_u))
            def _():
                col = pl.multiple_of(U_cols + k * TK_u, 128)
                acc_ref[...] += jnp.dot(
                    g_ui_ref[...], src_ref[pl.ds(col, TK_u), :],
                    preferred_element_type=jnp.float32)

            # item rows aggregate over the user region of the source.
            @pl.when(jnp.logical_not(is_user) & (k < K_i))
            def _():
                col = pl.multiple_of(k * TK_i, 128)
                acc_ref[...] += jnp.dot(
                    g_iu_ref[...], src_ref[pl.ds(col, TK_i), :],
                    preferred_element_type=jnp.float32)

        @pl.when(p == 0)
        def _():
            accumulate(x0_ref)       # phase 0 propagates x_0 (input, resident)

        @pl.when(p == 1)
        def _():
            accumulate(x1_ref)       # phase 1 propagates x_1 (VMEM scratch)

        # Last K step: folded linear chain, x_1 store, score-row gather, and
        # (on the very last grid step) the fused BPR scoring.
        @pl.when(k == K_steps - 1)
        def _():
            h = _leaky(acc_ref[...])
            h = jnp.dot(h.astype(compute_dtype), wf_ref[...],
                        preferred_element_type=jnp.float32)
            out = jnp.dot(_leaky(h).astype(compute_dtype), w4_ref[...],
                          preferred_element_type=jnp.float32)

            row_start = jnp.where(is_user, r * TR, U_cols + (r - T_u) * TR)
            row_start = pl.multiple_of(row_start, 16)

            @pl.when(p == 0)
            def _():
                # x_1 becomes the phase-1 propagation source (compute dtype).
                x1_ref[pl.ds(row_start, TR), :] = out.astype(compute_dtype)

            # Gather the f32 rows needed for scoring (rare; gated per tile).
            @pl.when(mask_ref[r] != 0)
            def _():
                acc_ref[...] = out           # addressable f32 copy of the tile

                def gather(dst_ref):
                    for j, ids_ref in enumerate((uid_ref, pid_ref, nid_ref)):
                        for b in range(B):
                            loc = ids_ref[b] - row_start

                            @pl.when((loc >= 0) & (loc < TR))
                            def _(loc=loc, j=j, b=b, dst_ref=dst_ref):
                                dst_ref[pl.ds(j * B_pad + b, 1), :] = \
                                    acc_ref[pl.ds(loc, 1), :]

                @pl.when(p == 0)
                def _():
                    gather(g1_ref)

                @pl.when(p == 1)
                def _():
                    gather(g2_ref)

            # Fused BPR scoring: one lane-dense store of the merged slab.
            @pl.when((p == 1) & (r == T_total - 1))
            def _():
                u1 = g1_ref[0:B_pad, :]
                p1 = g1_ref[B_pad:2 * B_pad, :]
                n1 = g1_ref[2 * B_pad:3 * B_pad, :]
                u2 = g2_ref[0:B_pad, :]
                p2 = g2_ref[B_pad:2 * B_pad, :]
                n2 = g2_ref[2 * B_pad:3 * B_pad, :]
                s_pos = jnp.sum(u2 * p2, axis=1, keepdims=True)
                s_neg = jnp.sum(u2 * n2, axis=1, keepdims=True)
                s_pos1 = jnp.sum(u1 * p1, axis=1, keepdims=True)
                s_neg1 = jnp.sum(u1 * n1, axis=1, keepdims=True)
                lane = jax.lax.broadcasted_iota(
                    jnp.int32, (B_pad, SCORE_LANES), 1)
                slab = (jnp.where(lane == 0, s_pos, 0.0)
                        + jnp.where(lane == 1, s_neg, 0.0)
                        + jnp.where(lane == 2, s_pos1, 0.0)
                        + jnp.where(lane == 3, s_neg1, 0.0))
                scores_ref[...] = slab

    return kernel


# ----------------------------------------------------------------------------
# Stargcn forward wrapper (padding, weight fold, tiling geometry, pallas_call).
# ----------------------------------------------------------------------------
def stargcn_forward(params, graph, num_user, num_item,
                    user_nodes, pos_item_nodes, neg_item_nodes,
                    *, compute_dtype=jnp.float32, tile_rows=256, tile_k=512,
                    single_buffer_constants=False):
    U, I = int(num_user), int(num_item)
    D = params["embedding_user"].shape[1]
    B = int(user_nodes.shape[0])
    f32 = jnp.float32

    # Fold the two back-to-back linear layers (no nonlinearity in between).
    w_fold = jnp.dot(params["W_h1_T"].astype(f32), params["W_3_T"].astype(f32),
                     precision=jax.lax.Precision.HIGHEST)

    # ---- static tiling geometry -------------------------------------------
    D_pad = _round_up(D, 128)
    TR = _round_up(min(tile_rows, _round_up(max(U, I), 16)), 16)
    T_u, T_i = _cdiv(U, TR), _cdiv(I, TR)
    U_rows, I_rows = T_u * TR, T_i * TR
    TK = _round_up(tile_k, 128)
    TK_u = min(TK, _round_up(I_rows, 128))
    K_u = _cdiv(_round_up(I_rows, 128), TK_u)
    I_cols = K_u * TK_u
    TK_i = min(TK, _round_up(U_rows, 128))
    K_i = _cdiv(_round_up(U_rows, 128), TK_i)
    U_cols = K_i * TK_i
    K_steps = max(K_u, K_i)
    N_store = U_cols + I_cols
    B_pad = _round_up(max(B, 8), 8)
    T_total = T_u + T_i

    # ---- padded operands ----------------------------------------------------
    g_ui = jnp.zeros((U_rows, I_cols), f32).at[:U, :I].set(
        graph[:U, U:].astype(f32)).astype(compute_dtype)
    g_iu = jnp.zeros((I_rows, U_cols), f32).at[:I, :U].set(
        graph[U:, :U].astype(f32)).astype(compute_dtype)

    x0 = jnp.zeros((N_store, D_pad), f32)
    x0 = x0.at[:U, :D].set(params["embedding_user"].astype(f32))
    x0 = x0.at[U_cols:U_cols + I, :D].set(params["embedding_item"].astype(f32))
    x0 = x0.astype(compute_dtype)

    wf = jnp.zeros((D_pad, D_pad), f32).at[:D, :D].set(w_fold).astype(compute_dtype)
    w4 = jnp.zeros((D_pad, D_pad), f32).at[:D, :D].set(
        params["W_4_T"].astype(f32)).astype(compute_dtype)

    # Node ids -> rows of the padded concatenated table (items start at U_cols).
    def _remap(ids):
        ids = ids.astype(jnp.int32)
        return jnp.where(ids >= U, ids - U + U_cols, ids)

    uid = _remap(user_nodes)
    pid = _remap(pos_item_nodes)
    nid = _remap(neg_item_nodes)

    # Per-row-tile flag: does this tile contain any row needed for scoring?
    all_ids = jnp.concatenate([uid, pid, nid])
    tile_of = jnp.where(all_ids < U_cols, all_ids // TR,
                        T_u + (all_ids - U_cols) // TR).astype(jnp.int32)
    tile_mask = jnp.zeros((T_total,), jnp.int32).at[tile_of].set(1)

    # ---- VMEM budget (capped by the generation's physical VMEM) -------------
    cb = jnp.dtype(compute_dtype).itemsize
    n_const_buf = 1 if single_buffer_constants else 2
    est = 2 * TR * (TK_u + TK_i) * cb                          # streamed graph
    est += n_const_buf * (N_store * D_pad + 2 * D_pad * D_pad) * cb
    est += TR * D_pad * 4 + N_store * D_pad * cb               # acc + x_1
    est += 2 * (3 * B_pad) * D_pad * 4                         # score rows
    est += 2 * B_pad * SCORE_LANES * 4                         # output block
    cap = _vmem_capacity_bytes()
    vmem_limit = int(min(cap - cap // 8, max(32 * 1024 * 1024, est * 5 // 4)))

    # ---- BlockSpecs ----------------------------------------------------------
    def _const_spec(shape):
        if single_buffer_constants:
            return pl.BlockSpec(shape, lambda p, r, k, *_: (0, 0),
                                pipeline_mode=pl.Buffered(1))
        return pl.BlockSpec(shape, lambda p, r, k, *_: (0, 0))

    def _g_ui_map(p, r, k, *_):
        rr = jnp.minimum(r, T_u - 1)
        kk = jnp.where(r < T_u, jnp.minimum(k, K_u - 1), K_u - 1)
        return rr, kk

    def _g_iu_map(p, r, k, *_):
        rr = jnp.where(r < T_u, 0, r - T_u)
        kk = jnp.where(r < T_u, 0, jnp.minimum(k, K_i - 1))
        return rr, kk

    kernel = _make_stargcn_kernel(
        TR=TR, TK_u=TK_u, TK_i=TK_i, K_u=K_u, K_i=K_i, K_steps=K_steps,
        T_u=T_u, T_i=T_i, U_rows=U_rows, I_rows=I_rows, U_cols=U_cols,
        N_store=N_store, D_pad=D_pad, B=B, B_pad=B_pad,
        compute_dtype=compute_dtype)

    grid_spec = pltpu.PrefetchScalarGridSpec(
        num_scalar_prefetch=4,                  # uid / pid / nid / tile_mask
        grid=(2, T_total, K_steps),
        in_specs=[
            pl.BlockSpec((TR, TK_u), _g_ui_map),       # user-rows rectangle
            pl.BlockSpec((TR, TK_i), _g_iu_map),       # item-rows rectangle
            _const_spec((N_store, D_pad)),             # x_0 (fetched once)
            _const_spec((D_pad, D_pad)),               # folded W_h1^T @ W_3^T
            _const_spec((D_pad, D_pad)),               # W_4^T
        ],
        out_specs=pl.BlockSpec((B_pad, SCORE_LANES), lambda p, r, k, *_: (0, 0)),
        scratch_shapes=[
            pltpu.VMEM((TR, D_pad), jnp.float32),          # K accumulator
            pltpu.VMEM((N_store, D_pad), compute_dtype),   # x_1 (VMEM resident)
            pltpu.VMEM((3 * B_pad, D_pad), jnp.float32),   # x_1 rows for scoring
            pltpu.VMEM((3 * B_pad, D_pad), jnp.float32),   # x_2 rows for scoring
        ],
    )

    scores = pl.pallas_call(
        kernel,
        grid_spec=grid_spec,
        out_shape=jax.ShapeDtypeStruct((B_pad, SCORE_LANES), jnp.float32),
        # Sequential grid required: phase 1 and the fused scoring consume the
        # persistent VMEM scratches written by earlier steps.
        compiler_params=pltpu.CompilerParams(
            dimension_semantics=("arbitrary", "arbitrary", "arbitrary"),
            vmem_limit_bytes=vmem_limit),
    )(uid, pid, nid, tile_mask, g_ui, g_iu, x0, wf, w4)

    return (scores[:B, 0], scores[:B, 1], scores[:B, 2], scores[:B, 3],
            params["embedding_user"], params["embedding_item"])


# ----------------------------------------------------------------------------
# Pure-JAX reference (mirrors the PyTorch forward exactly) for validation.
# ----------------------------------------------------------------------------
def reference_forward(params, graph, num_user,
                      user_nodes, pos_item_nodes, neg_item_nodes):
    hp = jax.lax.Precision.HIGHEST
    x_0 = jnp.concatenate([params["embedding_user"], params["embedding_item"]], axis=0)

    def block(x):
        h = _leaky(jnp.dot(graph, x, precision=hp), 0.1)
        h = jnp.dot(h, params["W_h1_T"], precision=hp)
        x1 = _leaky(jnp.dot(h, params["W_3_T"], precision=hp), 0.1)
        return jnp.dot(x1, params["W_4_T"], precision=hp)

    x_1 = block(x_0)
    x_2 = block(x_1)
    u2, p2, n2 = x_2[user_nodes], x_2[pos_item_nodes], x_2[neg_item_nodes]
    u1, p1, n1 = x_1[user_nodes], x_1[pos_item_nodes], x_1[neg_item_nodes]
    return (jnp.sum(u2 * p2, axis=1), jnp.sum(u2 * n2, axis=1),
            jnp.sum(u1 * p1, axis=1), jnp.sum(u1 * n1, axis=1))


# ----------------------------------------------------------------------------
# Deterministic parameter / graph construction.
# ----------------------------------------------------------------------------
def xavier_uniform(key, shape):
    fan_in, fan_out = shape[1], shape[0]
    limit = np.sqrt(6.0 / (fan_in + fan_out))
    return jax.random.uniform(key, shape, jnp.float32, -limit, limit)


def build_params_and_graph(key, num_user, num_item, dim_latent):
    k = jax.random.split(key, 6)
    N = num_user + num_item
    params = {
        "embedding_user": xavier_uniform(k[0], (num_user, dim_latent)),
        "embedding_item": xavier_uniform(k[1], (num_item, dim_latent)),
        # nn.Linear(D, D, bias=False): y = x @ W.T  -> store W.T directly.
        "W_h1_T": xavier_uniform(k[2], (dim_latent, dim_latent)).T,
        "W_3_T": xavier_uniform(k[3], (dim_latent, dim_latent)).T,
        "W_4_T": xavier_uniform(k[4], (dim_latent, dim_latent)).T,
    }
    # Dense symmetric-normalized bipartite interaction graph (stand-in for the
    # sparse_graph the PyTorch model receives).
    inter = (jax.random.uniform(k[5], (num_user, num_item)) < 0.3).astype(jnp.float32)
    adj = jnp.zeros((N, N), jnp.float32)
    adj = adj.at[:num_user, num_user:].set(inter)
    adj = adj.at[num_user:, :num_user].set(inter.T)
    deg = jnp.clip(adj.sum(axis=1), 1.0, None)
    d_inv_sqrt = 1.0 / jnp.sqrt(deg)
    graph = adj * d_inv_sqrt[:, None] * d_inv_sqrt[None, :]
    return params, graph


if __name__ == "__main__":
    num_user, num_item, dim_latent, batch = 96, 300, 32, 8
    key = jax.random.PRNGKey(0)
    kp, ku, kpi, kni = jax.random.split(key, 4)

    params, graph = build_params_and_graph(kp, num_user, num_item, dim_latent)
    user_nodes = jax.random.randint(ku, (batch,), 0, num_user, dtype=jnp.int32)
    pos_item_nodes = jax.random.randint(
        kpi, (batch,), num_user, num_user + num_item, dtype=jnp.int32)
    neg_item_nodes = jax.random.randint(
        kni, (batch,), num_user, num_user + num_item, dtype=jnp.int32)

    single_buf = _buffered_one_supported()

    r_pos, r_neg, r_pos1, r_neg1 = reference_forward(
        params, graph, num_user, user_nodes, pos_item_nodes, neg_item_nodes)
    refs = [np.asarray(r) for r in (r_pos, r_neg, r_pos1, r_neg1)]

    # fp32 path: exercises multi row tiles (users + items) and K tiling.
    fwd = jax.jit(functools.partial(
        stargcn_forward, params, graph, num_user, num_item,
        compute_dtype=jnp.float32, tile_rows=64, tile_k=128,
        single_buffer_constants=single_buf))
    out = fwd(user_nodes, pos_item_nodes, neg_item_nodes)
    jax.block_until_ready(out[:4])
    for got, ref in zip(out[:4], refs):
        scale = max(1.0, float(np.max(np.abs(ref))))
        assert np.allclose(np.asarray(got), ref, atol=2e-3 * scale, rtol=2e-3)

    # bf16 path (f32 accumulation), different tiling geometry.
    fwd_bf16 = jax.jit(functools.partial(
        stargcn_forward, params, graph, num_user, num_item,
        compute_dtype=jnp.bfloat16, tile_rows=128, tile_k=256,
        single_buffer_constants=single_buf))
    out_b = fwd_bf16(user_nodes, pos_item_nodes, neg_item_nodes)
    jax.block_until_ready(out_b[:4])
    for got, ref in zip(out_b[:4], refs):
        got = np.asarray(got)
        scale = max(1.0, float(np.max(np.abs(ref))))
        assert np.all(np.isfinite(got))
        assert np.allclose(got, ref, atol=0.1 * scale, rtol=0.1)

    print("KERNEL_OK")
</pallas_src>

<mosaic_0001>
module attributes {stable_mosaic.version = 11 : i64} {
  func.func @k(%arg0: i32, %arg1: memref<8x128xf32, #tpu.memory_space<vmem>>, %arg2: memref<8x128xf32, #tpu.memory_space<vmem>>) attributes {dimension_semantics = [#tpu.dimension_semantics<arbitrary>], iteration_bounds = array<i64: 2>, scalar_prefetch = 0 : i64, scratch_operands = 0 : i64, tpu.core_type = #tpu.core_type<tc>, window_params = [{pipeline_mode = #tpu.pipeline_mode<synchronous>, transform_indices = @transform_0, window_bounds = array<i64: 8, 128>}, {pipeline_mode = #tpu.pipeline_mode<synchronous>, transform_indices = @transform_1, window_bounds = array<i64: 8, 128>}]} {
    %c0 = arith.constant 0 : index
    %c0_0 = arith.constant 0 : index
    %0 = vector.load %arg1[%c0, %c0_0] : memref<8x128xf32, #tpu.memory_space<vmem>>, vector<8x128xf32>
    %cst = arith.constant 1.000000e+00 : f32
    %1 = vector.broadcast %cst : f32 to vector<8x128xf32>
    %2 = arith.addf %0, %1 : vector<8x128xf32>
    %c0_1 = arith.constant 0 : index
    %c0_2 = arith.constant 0 : index
    %3 = vector.load %arg2[%c0_1, %c0_2] : memref<8x128xf32, #tpu.memory_space<vmem>>, vector<8x128xf32>
    tpu.vector_store %arg2[%c0_1, %c0_2], %2 {strides = array<i32>} : memref<8x128xf32, #tpu.memory_space<vmem>>, vector<8x128xf32>,
    return
  }
  func.func @transform_0(%arg0: i32) -> (i32, i32) {
    %c0_i32 = arith.constant 0 : i32
    %c0_i32_0 = arith.constant 0 : i32
    %c0_i32_1 = arith.constant 0 : i32
    return %c0_i32, %c0_i32_0 : i32, i32
  }
  func.func @transform_1(%arg0: i32) -> (i32, i32) {
    %c0_i32 = arith.constant 0 : i32
    %c0_i32_0 = arith.constant 0 : i32
    %c0_i32_1 = arith.constant 0 : i32
    return %c0_i32, %c0_i32_0 : i32, i32
  }
}

module attributes {stable_mosaic.version = 11 : i64} {
  func.func @kernel(%arg0: i32, %arg1: i32, %arg2: i32, %arg3: memref<8xi32, #tpu.memory_space<smem>>, %arg4: memref<8xi32, #tpu.memory_space<smem>>, %arg5: memref<8xi32, #tpu.memory_space<smem>>, %arg6: memref<7xi32, #tpu.memory_space<smem>>, %arg7: memref<64x128xf32, #tpu.memory_space<vmem>>, %arg8: memref<64x128xf32, #tpu.memory_space<vmem>>, %arg9: memref<512x128xf32, #tpu.memory_space<vmem>>, %arg10: memref<128x128xf32, #tpu.memory_space<vmem>>, %arg11: memref<128x128xf32, #tpu.memory_space<vmem>>, %arg12: memref<8x128xf32, #tpu.memory_space<vmem>>, %arg13: memref<64x128xf32, #tpu.memory_space<vmem>>, %arg14: memref<512x128xf32, #tpu.memory_space<vmem>>, %arg15: memref<24x128xf32, #tpu.memory_space<vmem>>, %arg16: memref<24x128xf32, #tpu.memory_space<vmem>>) attributes {dimension_semantics = [#tpu.dimension_semantics<arbitrary>, #tpu.dimension_semantics<arbitrary>, #tpu.dimension_semantics<arbitrary>], iteration_bounds = array<i64: 2, 7, 3>, scalar_prefetch = 4 : i64, scratch_operands = 4 : i64, tpu.core_type = #tpu.core_type<tc>, window_params = [{transform_indices = @transform_0, window_bounds = array<i64: 64, 128>}, {transform_indices = @transform_1, window_bounds = array<i64: 64, 128>}, {pipeline_mode = #tpu.pipeline_mode<synchronous>, transform_indices = @transform_2, window_bounds = array<i64: 512, 128>}, {pipeline_mode = #tpu.pipeline_mode<synchronous>, transform_indices = @transform_3, window_bounds = array<i64: 128, 128>}, {pipeline_mode = #tpu.pipeline_mode<synchronous>, transform_indices = @transform_4, window_bounds = array<i64: 128, 128>}, {pipeline_mode = #tpu.pipeline_mode<synchronous>, transform_indices = @transform_5, window_bounds = array<i64: 8, 128>}]} {
    %c2_i32 = arith.constant 2 : i32
    %0 = arith.cmpi slt, %arg1, %c2_i32 : i32
    %c0_i32 = arith.constant 0 : i32
    %1 = arith.cmpi eq, %arg0, %c0_i32 : i32
    %c0_i32_0 = arith.constant 0 : i32
    %2 = arith.cmpi eq, %arg1, %c0_i32_0 : i32
    %3 = arith.andi %1, %2 : i1
    %c0_i32_1 = arith.constant 0 : i32
    %4 = arith.cmpi eq, %arg2, %c0_i32_1 : i32
    %5 = arith.andi %3, %4 : i1
    %6 = arith.extui %5 : i1 to i32
    %c0_i32_2 = arith.constant 0 : i32
    %7 = arith.cmpi ne, %6, %c0_i32_2 : i32
    scf.if %7 {
      %cst = arith.constant 0.000000e+00 : f32
      %20 = vector.broadcast %cst : f32 to vector<64x128xf32>
      %c448 = arith.constant 448 : index
      %c0 = arith.constant 0 : index
      %21 = vector.load %arg14[%c448, %c0] : memref<512x128xf32, #tpu.memory_space<vmem>>, vector<64x128xf32>
      tpu.vector_store %arg14[%c448, %c0], %20 {strides = array<i32>} : memref<512x128xf32, #tpu.memory_space<vmem>>, vector<64x128xf32>,
      %cst_10 = arith.constant 0.000000e+00 : f32
      %22 = vector.broadcast %cst_10 : f32 to vector<24x128xf32>
      %c0_11 = arith.constant 0 : index
      %c0_12 = arith.constant 0 : index
      %23 = vector.load %arg15[%c0_11, %c0_12] : memref<24x128xf32, #tpu.memory_space<vmem>>, vector<24x128xf32>
      tpu.vector_store %arg15[%c0_11, %c0_12], %22 {strides = array<i32>} : memref<24x128xf32, #tpu.memory_space<vmem>>, vector<24x128xf32>,
      %cst_13 = arith.constant 0.000000e+00 : f32
      %24 = vector.broadcast %cst_13 : f32 to vector<24x128xf32>
      %c0_14 = arith.constant 0 : index
      %c0_15 = arith.constant 0 : index
      %25 = vector.load %arg16[%c0_14, %c0_15] : memref<24x128xf32, #tpu.memory_space<vmem>>, vector<24x128xf32>
      tpu.vector_store %arg16[%c0_14, %c0_15], %24 {strides = array<i32>} : memref<24x128xf32, #tpu.memory_space<vmem>>, vector<24x128xf32>,
    } else {
    }
    %c0_i32_3 = arith.constant 0 : i32
    %8 = arith.cmpi eq, %arg2, %c0_i32_3 : i32
    %9 = arith.extui %8 : i1 to i32
    %c0_i32_4 = arith.constant 0 : i32
    %10 = arith.cmpi ne, %9, %c0_i32_4 : i32
    scf.if %10 {
      %cst = arith.constant 0.000000e+00 : f32
      %20 = vector.broadcast %cst : f32 to vector<64x128xf32>
      %c0 = arith.constant 0 : index
      %c0_10 = arith.constant 0 : index
      %21 = vector.load %arg13[%c0, %c0_10] : memref<64x128xf32, #tpu.memory_space<vmem>>, vector<64x128xf32>
      tpu.vector_store %arg13[%c0, %c0_10], %20 {strides = array<i32>} : memref<64x128xf32, #tpu.memory_space<vmem>>, vector<64x128xf32>,
    } else {
    }
    %c0_i32_5 = arith.constant 0 : i32
    %11 = arith.cmpi eq, %arg0, %c0_i32_5 : i32
    %12 = arith.extui %11 : i1 to i32
    %c0_i32_6 = arith.constant 0 : i32
    %13 = arith.cmpi ne, %12, %c0_i32_6 : i32
    scf.if %13 {
      %c3_i32 = arith.constant 3 : i32
      %20 = arith.cmpi slt, %arg2, %c3_i32 : i32
      %21 = arith.andi %0, %20 : i1
      %22 = arith.extui %21 : i1 to i32
      %c0_i32_10 = arith.constant 0 : i32
      %23 = arith.cmpi ne, %22, %c0_i32_10 : i32
      scf.if %23 {
        %c128_i32 = arith.constant 128 : i32
        %29 = arith.muli %arg2, %c128_i32 : i32
        %c128_i32_13 = arith.constant 128 : i32
        %30 = arith.addi %c128_i32_13, %29 : i32
        %31 = tpu.assume_multiple %30, 128 : i32
        %c0 = arith.constant 0 : index
        %c0_14 = arith.constant 0 : index
        %32 = vector.load %arg13[%c0, %c0_14] : memref<64x128xf32, #tpu.memory_space<vmem>>, vector<64x128xf32>
        %c0_15 = arith.constant 0 : index
        %c0_16 = arith.constant 0 : index
        %33 = vector.load %arg7[%c0_15, %c0_16] : memref<64x128xf32, #tpu.memory_space<vmem>>, vector<64x128xf32>
        %34 = arith.index_cast %31 : i32 to index
        %c0_17 = arith.constant 0 : index
        %35 = vector.load %arg9[%34, %c0_17] : memref<512x128xf32, #tpu.memory_space<vmem>>, vector<128x128xf32>
        %cst = arith.constant dense<0.000000e+00> : vector<64x128xf32>
        %36 = tpu.matmul %33, %35, %cst {dimension_numbers = #tpu.dot_dimension_numbers<[1], [0], [0], [1], [0, 0, 1, 1], [], []>} : vector<64x128xf32>, vector<128x128xf32>, vector<64x128xf32> -> vector<64x128xf32>
        %37 = arith.addf %32, %36 : vector<64x128xf32>
        %c0_18 = arith.constant 0 : index
        %c0_19 = arith.constant 0 : index
        %38 = vector.load %arg13[%c0_18, %c0_19] : memref<64x128xf32, #tpu.memory_space<vmem>>, vector<64x128xf32>
        tpu.vector_store %arg13[%c0_18, %c0_19], %37 {strides = array<i32>} : memref<64x128xf32, #tpu.memory_space<vmem>>, vector<64x128xf32>,
      } else {
      }
      %true = arith.constant true
      %24 = arith.xori %0, %true : i1
      %c1_i32_11 = arith.constant 1 : i32
      %25 = arith.cmpi slt, %arg2, %c1_i32_11 : i32
      %26 = arith.andi %24, %25 : i1
      %27 = arith.extui %26 : i1 to i32
      %c0_i32_12 = arith.constant 0 : i32
      %28 = arith.cmpi ne, %27, %c0_i32_12 : i32
      scf.if %28 {
        %c128_i32 = arith.constant 128 : i32
        %29 = arith.muli %arg2, %c128_i32 : i32
        %30 = tpu.assume_multiple %29, 128 : i32
        %c0 = arith.constant 0 : index
        %c0_13 = arith.constant 0 : index
        %31 = vector.load %arg13[%c0, %c0_13] : memref<64x128xf32, #tpu.memory_space<vmem>>, vector<64x128xf32>
        %c0_14 = arith.constant 0 : index
        %c0_15 = arith.constant 0 : index
        %32 = vector.load %arg8[%c0_14, %c0_15] : memref<64x128xf32, #tpu.memory_space<vmem>>, vector<64x128xf32>
        %33 = arith.index_cast %30 : i32 to index
        %c0_16 = arith.constant 0 : index
        %34 = vector.load %arg9[%33, %c0_16] : memref<512x128xf32, #tpu.memory_space<vmem>>, vector<128x128xf32>
        %cst = arith.constant dense<0.000000e+00> : vector<64x128xf32>
        %35 = tpu.matmul %32, %34, %cst {dimension_numbers = #tpu.dot_dimension_numbers<[1], [0], [0], [1], [0, 0, 1, 1], [], []>} : vector<64x128xf32>, vector<128x128xf32>, vector<64x128xf32> -> vector<64x128xf32>
        %36 = arith.addf %31, %35 : vector<64x128xf32>
        %c0_17 = arith.constant 0 : index
        %c0_18 = arith.constant 0 : index
        %37 = vector.load %arg13[%c0_17, %c0_18] : memref<64x128xf32, #tpu.memory_space<vmem>>, vector<64x128xf32>
        tpu.vector_store %arg13[%c0_17, %c0_18], %36 {strides = array<i32>} : memref<64x128xf32, #tpu.memory_space<vmem>>, vector<64x128xf32>,
      } else {
      }
    } else {
    }
    %c1_i32 = arith.constant 1 : i32
    %14 = arith.cmpi eq, %arg0, %c1_i32 : i32
    %15 = arith.extui %14 : i1 to i32
    %c0_i32_7 = arith.constant 0 : i32
    %16 = arith.cmpi ne, %15, %c0_i32_7 : i32
    scf.if %16 {
      %c3_i32 = arith.constant 3 : i32
      %20 = arith.cmpi slt, %arg2, %c3_i32 : i32
      %21 = arith.andi %0, %20 : i1
      %22 = arith.extui %21 : i1 to i32
      %c0_i32_10 = arith.constant 0 : i32
      %23 = arith.cmpi ne, %22, %c0_i32_10 : i32
      scf.if %23 {
        %c128_i32 = arith.constant 128 : i32
        %29 = arith.muli %arg2, %c128_i32 : i32
        %c128_i32_13 = arith.constant 128 : i32
        %30 = arith.addi %c128_i32_13, %29 : i32
        %31 = tpu.assume_multiple %30, 128 : i32
        %c0 = arith.constant 0 : index
        %c0_14 = arith.constant 0 : index
        %32 = vector.load %arg13[%c0, %c0_14] : memref<64x128xf32, #tpu.memory_space<vmem>>, vector<64x128xf32>
        %c0_15 = arith.constant 0 : index
        %c0_16 = arith.constant 0 : index
        %33 = vector.load %arg7[%c0_15, %c0_16] : memref<64x128xf32, #tpu.memory_space<vmem>>, vector<64x128xf32>
        %34 = arith.index_cast %31 : i32 to index
        %c0_17 = arith.constant 0 : index
        %35 = vector.load %arg14[%34, %c0_17] : memref<512x128xf32, #tpu.memory_space<vmem>>, vector<128x128xf32>
        %cst = arith.constant dense<0.000000e+00> : vector<64x128xf32>
        %36 = tpu.matmul %33, %35, %cst {dimension_numbers = #tpu.dot_dimension_numbers<[1], [0], [0], [1], [0, 0, 1, 1], [], []>} : vector<64x128xf32>, vector<128x128xf32>, vector<64x128xf32> -> vector<64x128xf32>
        %37 = arith.addf %32, %36 : vector<64x128xf32>
        %c0_18 = arith.constant 0 : index
        %c0_19 = arith.constant 0 : index
        %38 = vector.load %arg13[%c0_18, %c0_19] : memref<64x128xf32, #tpu.memory_space<vmem>>, vector<64x128xf32>
        tpu.vector_store %arg13[%c0_18, %c0_19], %37 {strides = array<i32>} : memref<64x128xf32, #tpu.memory_space<vmem>>, vector<64x128xf32>,
      } else {
      }
      %true = arith.constant true
      %24 = arith.xori %0, %true : i1
      %c1_i32_11 = arith.constant 1 : i32
      %25 = arith.cmpi slt, %arg2, %c1_i32_11 : i32
      %26 = arith.andi %24, %25 : i1
      %27 = arith.extui %26 : i1 to i32
      %c0_i32_12 = arith.constant 0 : i32
      %28 = arith.cmpi ne, %27, %c0_i32_12 : i32
      scf.if %28 {
        %c128_i32 = arith.constant 128 : i32
        %29 = arith.muli %arg2, %c128_i32 : i32
        %30 = tpu.assume_multiple %29, 128 : i32
        %c0 = arith.constant 0 : index
        %c0_13 = arith.constant 0 : index
        %31 = vector.load %arg13[%c0, %c0_13] : memref<64x128xf32, #tpu.memory_space<vmem>>, vector<64x128xf32>
        %c0_14 = arith.constant 0 : index
        %c0_15 = arith.constant 0 : index
        %32 = vector.load %arg8[%c0_14, %c0_15] : memref<64x128xf32, #tpu.memory_space<vmem>>, vector<64x128xf32>
        %33 = arith.index_cast %30 : i32 to index
        %c0_16 = arith.constant 0 : index
        %34 = vector.load %arg14[%33, %c0_16] : memref<512x128xf32, #tpu.memory_space<vmem>>, vector<128x128xf32>
        %cst = arith.constant dense<0.000000e+00> : vector<64x128xf32>
        %35 = tpu.matmul %32, %34, %cst {dimension_numbers = #tpu.dot_dimension_numbers<[1], [0], [0], [1], [0, 0, 1, 1], [], []>} : vector<64x128xf32>, vector<128x128xf32>, vector<64x128xf32> -> vector<64x128xf32>
        %36 = arith.addf %31, %35 : vector<64x128xf32>
        %c0_17 = arith.constant 0 : index
        %c0_18 = arith.constant 0 : index
        %37 = vector.load %arg13[%c0_17, %c0_18] : memref<64x128xf32, #tpu.memory_space<vmem>>, vector<64x128xf32>
        tpu.vector_store %arg13[%c0_17, %c0_18], %36 {strides = array<i32>} : memref<64x128xf32, #tpu.memory_space<vmem>>, vector<64x128xf32>,
      } else {
      }
    } else {
    }
    %c2_i32_8 = arith.constant 2 : i32
    %17 = arith.cmpi eq, %arg2, %c2_i32_8 : i32
    %18 = arith.extui %17 : i1 to i32
    %c0_i32_9 = arith.constant 0 : i32
    %19 = arith.cmpi ne, %18, %c0_i32_9 : i32
    scf.if %19 {
      %c0 = arith.constant 0 : index
      %c0_10 = arith.constant 0 : index
      %20 = vector.load %arg13[%c0, %c0_10] : memref<64x128xf32, #tpu.memory_space<vmem>>, vector<64x128xf32>
      %cst = arith.constant 0.000000e+00 : f32
      %21 = vector.broadcast %cst : f32 to vector<64x128xf32>
      %22 = arith.cmpf ogt, %20, %21 : vector<64x128xf32>
      %cst_11 = arith.constant 1.000000e-01 : f32
      %23 = vector.broadcast %cst_11 : f32 to vector<64x128xf32>
      %24 = arith.mulf %23, %20 : vector<64x128xf32>
      %25 = arith.select %22, %20, %24 : vector<64x128xi1>, vector<64x128xf32>
      %c0_12 = arith.constant 0 : index
      %c0_13 = arith.constant 0 : index
      %26 = vector.load %arg10[%c0_12, %c0_13] : memref<128x128xf32, #tpu.memory_space<vmem>>, vector<128x128xf32>
      %cst_14 = arith.constant dense<0.000000e+00> : vector<64x128xf32>
      %27 = tpu.matmul %25, %26, %cst_14 {dimension_numbers = #tpu.dot_dimension_numbers<[1], [0], [0], [1], [0, 0, 1, 1], [], []>} : vector<64x128xf32>, vector<128x128xf32>, vector<64x128xf32> -> vector<64x128xf32>
      %cst_15 = arith.constant 0.000000e+00 : f32
      %28 = vector.broadcast %cst_15 : f32 to vector<64x128xf32>
      %29 = arith.cmpf ogt, %27, %28 : vector<64x128xf32>
      %cst_16 = arith.constant 1.000000e-01 : f32
      %30 = vector.broadcast %cst_16 : f32 to vector<64x128xf32>
      %31 = arith.mulf %30, %27 : vector<64x128xf32>
      %32 = arith.select %29, %27, %31 : vector<64x128xi1>, vector<64x128xf32>
      %c0_17 = arith.constant 0 : index
      %c0_18 = arith.constant 0 : index
      %33 = vector.load %arg11[%c0_17, %c0_18] : memref<128x128xf32, #tpu.memory_space<vmem>>, vector<128x128xf32>
      %cst_19 = arith.constant dense<0.000000e+00> : vector<64x128xf32>
      %34 = tpu.matmul %32, %33, %cst_19 {dimension_numbers = #tpu.dot_dimension_numbers<[1], [0], [0], [1], [0, 0, 1, 1], [], []>} : vector<64x128xf32>, vector<128x128xf32>, vector<64x128xf32> -> vector<64x128xf32>
      %c64_i32 = arith.constant 64 : i32
      %35 = arith.muli %arg1, %c64_i32 : i32
      %c2_i32_20 = arith.constant 2 : i32
      %36 = arith.subi %arg1, %c2_i32_20 : i32
      %c64_i32_21 = arith.constant 64 : i32
      %37 = arith.muli %36, %c64_i32_21 : i32
      %c128_i32 = arith.constant 128 : i32
      %38 = arith.addi %c128_i32, %37 : i32
      %39 = arith.select %0, %35, %38 : i32
      %40 = tpu.assume_multiple %39, 16 : i32
      %c0_i32_22 = arith.constant 0 : i32
      %41 = arith.cmpi eq, %arg0, %c0_i32_22 : i32
      %42 = arith.extui %41 : i1 to i32
      %c0_i32_23 = arith.constant 0 : i32
      %43 = arith.cmpi ne, %42, %c0_i32_23 : i32
      scf.if %43 {
        %54 = arith.index_cast %40 : i32 to index
        %c0_28 = arith.constant 0 : index
        %55 = vector.load %arg14[%54, %c0_28] : memref<512x128xf32, #tpu.memory_space<vmem>>, vector<64x128xf32>
        tpu.vector_store %arg14[%54, %c0_28], %34 {strides = array<i32>} : memref<512x128xf32, #tpu.memory_space<vmem>>, vector<64x128xf32>,
      } else {
      }
      %44 = arith.index_cast %arg1 : i32 to index
      %45 = memref.load %arg6[%44] : memref<7xi32, #tpu.memory_space<smem>>
      %c0_i32_24 = arith.constant 0 : i32
      %46 = arith.cmpi ne, %45, %c0_i32_24 : i32
      %47 = arith.extui %46 : i1 to i32
      %c0_i32_25 = arith.constant 0 : i32
      %48 = arith.cmpi ne, %47, %c0_i32_25 : i32
      scf.if %48 {
        %c0_28 = arith.constant 0 : index
        %c0_29 = arith.constant 0 : index
        %54 = vector.load %arg13[%c0_28, %c0_29] : memref<64x128xf32, #tpu.memory_space<vmem>>, vector<64x128xf32>
        tpu.vector_store %arg13[%c0_28, %c0_29], %34 {strides = array<i32>} : memref<64x128xf32, #tpu.memory_space<vmem>>, vector<64x128xf32>,
        %c0_i32_30 = arith.constant 0 : i32
        %55 = arith.cmpi eq, %arg0, %c0_i32_30 : i32
        %56 = arith.extui %55 : i1 to i32
        %c0_i32_31 = arith.constant 0 : i32
        %57 = arith.cmpi ne, %56, %c0_i32_31 : i32
        scf.if %57 {
          %c0_34 = arith.constant 0 : index
          %61 = memref.load %arg3[%c0_34] : memref<8xi32, #tpu.memory_space<smem>>
          %62 = arith.subi %61, %40 : i32
          %c0_i32_35 = arith.constant 0 : i32
          %63 = arith.cmpi sge, %62, %c0_i32_35 : i32
          %c64_i32_36 = arith.constant 64 : i32
          %64 = arith.cmpi slt, %62, %c64_i32_36 : i32
          %65 = arith.andi %63, %64 : i1
          %66 = arith.extui %65 : i1 to i32
          %c0_i32_37 = arith.constant 0 : i32
          %67 = arith.cmpi ne, %66, %c0_i32_37 : i32
          scf.if %67 {
            %229 = arith.index_cast %62 : i32 to index
            %c0_123 = arith.constant 0 : index
            %230 = vector.load %arg13[%229, %c0_123] : memref<64x128xf32, #tpu.memory_space<vmem>>, vector<1x128xf32>
            %c0_124 = arith.constant 0 : index
            %c0_125 = arith.constant 0 : index
            %231 = vector.load %arg15[%c0_124, %c0_125] : memref<24x128xf32, #tpu.memory_space<vmem>>, vector<1x128xf32>
            tpu.vector_store %arg15[%c0_124, %c0_125], %230 {strides = array<i32>} : memref<24x128xf32, #tpu.memory_space<vmem>>, vector<1x128xf32>,
          } else {
          }
          %c1 = arith.constant 1 : index
          %68 = memref.load %arg3[%c1] : memref<8xi32, #tpu.memory_space<smem>>
          %69 = arith.subi %68, %40 : i32
          %c0_i32_38 = arith.constant 0 : i32
          %70 = arith.cmpi sge, %69, %c0_i32_38 : i32
          %c64_i32_39 = arith.constant 64 : i32
          %71 = arith.cmpi slt, %69, %c64_i32_39 : i32
          %72 = arith.andi %70, %71 : i1
          %73 = arith.extui %72 : i1 to i32
          %c0_i32_40 = arith.constant 0 : i32
          %74 = arith.cmpi ne, %73, %c0_i32_40 : i32
          scf.if %74 {
            %229 = arith.index_cast %69 : i32 to index
            %c0_123 = arith.constant 0 : index
            %230 = vector.load %arg13[%229, %c0_123] : memref<64x128xf32, #tpu.memory_space<vmem>>, vector<1x128xf32>
            %c1_124 = arith.constant 1 : index
            %c0_125 = arith.constant 0 : index
            %231 = vector.load %arg15[%c1_124, %c0_125] : memref<24x128xf32, #tpu.memory_space<vmem>>, vector<1x128xf32>
            tpu.vector_store %arg15[%c1_124, %c0_125], %230 {strides = array<i32>} : memref<24x128xf32, #tpu.memory_space<vmem>>, vector<1x128xf32>,
          } else {
          }
          %c2 = arith.constant 2 : index
          %75 = memref.load %arg3[%c2] : memref<8xi32, #tpu.memory_space<smem>>
          %76 = arith.subi %75, %40 : i32
          %c0_i32_41 = arith.constant 0 : i32
          %77 = arith.cmpi sge, %76, %c0_i32_41 : i32
          %c64_i32_42 = arith.constant 64 : i32
          %78 = arith.cmpi slt, %76, %c64_i32_42 : i32
          %79 = arith.andi %77, %78 : i1
          %80 = arith.extui %79 : i1 to i32
          %c0_i32_43 = arith.constant 0 : i32
          %81 = arith.cmpi ne, %80, %c0_i32_43 : i32
          scf.if %81 {
            %229 = arith.index_cast %76 : i32 to index
            %c0_123 = arith.constant 0 : index
            %230 = vector.load %arg13[%229, %c0_123] : memref<64x128xf32, #tpu.memory_space<vmem>>, vector<1x128xf32>
            %c2_124 = arith.constant 2 : index
            %c0_125 = arith.constant 0 : index
            %231 = vector.load %arg15[%c2_124, %c0_125] : memref<24x128xf32, #tpu.memory_space<vmem>>, vector<1x128xf32>
            tpu.vector_store %arg15[%c2_124, %c0_125], %230 {strides = array<i32>} : memref<24x128xf32, #tpu.memory_space<vmem>>, vector<1x128xf32>,
          } else {
          }
          %c3 = arith.constant 3 : index
          %82 = memref.load %arg3[%c3] : memref<8xi32, #tpu.memory_space<smem>>
          %83 = arith.subi %82, %40 : i32
          %c0_i32_44 = arith.constant 0 : i32
          %84 = arith.cmpi sge, %83, %c0_i32_44 : i32
          %c64_i32_45 = arith.constant 64 : i32
          %85 = arith.cmpi slt, %83, %c64_i32_45 : i32
          %86 = arith.andi %84, %85 : i1
          %87 = arith.extui %86 : i1 to i32
          %c0_i32_46 = arith.constant 0 : i32
          %88 = arith.cmpi ne, %87, %c0_i32_46 : i32
          scf.if %88 {
            %229 = arith.index_cast %83 : i32 to index
            %c0_123 = arith.constant 0 : index
            %230 = vector.load %arg13[%229, %c0_123] : memref<64x128xf32, #tpu.memory_space<vmem>>, vector<1x128xf32>
            %c3_124 = arith.constant 3 : index
            %c0_125 = arith.constant 0 : index
            %231 = vector.load %arg15[%c3_124, %c0_125] : memref<24x128xf32, #tpu.memory_space<vmem>>, vector<1x128xf32>
            tpu.vector_store %arg15[%c3_124, %c0_125], %230 {strides = array<i32>} : memref<24x128xf32, #tpu.memory_space<vmem>>, vector<1x128xf32>,
          } else {
          }
          %c4 = arith.constant 4 : index
          %89 = memref.load %arg3[%c4] : memref<8xi32, #tpu.memory_space<smem>>
          %90 = arith.subi %89, %40 : i32
          %c0_i32_47 = arith.constant 0 : i32
          %91 = arith.cmpi sge, %90, %c0_i32_47 : i32
          %c64_i32_48 = arith.constant 64 : i32
          %92 = arith.cmpi slt, %90, %c64_i32_48 : i32
          %93 = arith.andi %91, %92 : i1
          %94 = arith.extui %93 : i1 to i32
          %c0_i32_49 = arith.constant 0 : i32
          %95 = arith.cmpi ne, %94, %c0_i32_49 : i32
          scf.if %95 {
            %229 = arith.index_cast %90 : i32 to index
            %c0_123 = arith.constant 0 : index
            %230 = vector.load %arg13[%229, %c0_123] : memref<64x128xf32, #tpu.memory_space<vmem>>, vector<1x128xf32>
            %c4_124 = arith.constant 4 : index
            %c0_125 = arith.constant 0 : index
            %231 = vector.load %arg15[%c4_124, %c0_125] : memref<24x128xf32, #tpu.memory_space<vmem>>, vector<1x128xf32>
            tpu.vector_store %arg15[%c4_124, %c0_125], %230 {strides = array<i32>} : memref<24x128xf32, #tpu.memory_space<vmem>>, vector<1x128xf32>,
          } else {
          }
          %c5 = arith.constant 5 : index
          %96 = memref.load %arg3[%c5] : memref<8xi32, #tpu.memory_space<smem>>
          %97 = arith.subi %96, %40 : i32
          %c0_i32_50 = arith.constant 0 : i32
          %98 = arith.cmpi sge, %97, %c0_i32_50 : i32
          %c64_i32_51 = arith.constant 64 : i32
          %99 = arith.cmpi slt, %97, %c64_i32_51 : i32
          %100 = arith.andi %98, %99 : i1
          %101 = arith.extui %100 : i1 to i32
          %c0_i32_52 = arith.constant 0 : i32
          %102 = arith.cmpi ne, %101, %c0_i32_52 : i32
          scf.if %102 {
            %229 = arith.index_cast %97 : i32 to index
            %c0_123 = arith.constant 0 : index
            %230 = vector.load %arg13[%229, %c0_123] : memref<64x128xf32, #tpu.memory_space<vmem>>, vector<1x128xf32>
            %c5_124 = arith.constant 5 : index
            %c0_125 = arith.constant 0 : index
            %231 = vector.load %arg15[%c5_124, %c0_125] : memref<24x128xf32, #tpu.memory_space<vmem>>, vector<1x128xf32>
            tpu.vector_store %arg15[%c5_124, %c0_125], %230 {strides = array<i32>} : memref<24x128xf32, #tpu.memory_space<vmem>>, vector<1x128xf32>,
          } else {
          }
          %c6 = arith.constant 6 : index
          %103 = memref.load %arg3[%c6] : memref<8xi32, #tpu.memory_space<smem>>
          %104 = arith.subi %103, %40 : i32
          %c0_i32_53 = arith.constant 0 : i32
          %105 = arith.cmpi sge, %104, %c0_i32_53 : i32
          %c64_i32_54 = arith.constant 64 : i32
          %106 = arith.cmpi slt, %104, %c64_i32_54 : i32
          %107 = arith.andi %105, %106 : i1
          %108 = arith.extui %107 : i1 to i32
          %c0_i32_55 = arith.constant 0 : i32
          %109 = arith.cmpi ne, %108, %c0_i32_55 : i32
          scf.if %109 {
            %229 = arith.index_cast %104 : i32 to index
            %c0_123 = arith.constant 0 : index
            %230 = vector.load %arg13[%229, %c0_123] : memref<64x128xf32, #tpu.memory_space<vmem>>, vector<1x128xf32>
            %c6_124 = arith.constant 6 : index
            %c0_125 = arith.constant 0 : index
            %231 = vector.load %arg15[%c6_124, %c0_125] : memref<24x128xf32, #tpu.memory_space<vmem>>, vector<1x128xf32>
            tpu.vector_store %arg15[%c6_124, %c0_125], %230 {strides = array<i32>} : memref<24x128xf32, #tpu.memory_space<vmem>>, vector<1x128xf32>,
          } else {
          }
          %c7 = arith.constant 7 : index
          %110 = memref.load %arg3[%c7] : memref<8xi32, #tpu.memory_space<smem>>
          %111 = arith.subi %110, %40 : i32
          %c0_i32_56 = arith.constant 0 : i32
          %112 = arith.cmpi sge, %111, %c0_i32_56 : i32
          %c64_i32_57 = arith.constant 64 : i32
          %113 = arith.cmpi slt, %111, %c64_i32_57 : i32
          %114 = arith.andi %112, %113 : i1
          %115 = arith.extui %114 : i1 to i32
          %c0_i32_58 = arith.constant 0 : i32
          %116 = arith.cmpi ne, %115, %c0_i32_58 : i32
          scf.if %116 {
            %229 = arith.index_cast %111 : i32 to index
            %c0_123 = arith.constant 0 : index
            %230 = vector.load %arg13[%229, %c0_123] : memref<64x128xf32, #tpu.memory_space<vmem>>, vector<1x128xf32>
            %c7_124 = arith.constant 7 : index
            %c0_125 = arith.constant 0 : index
            %231 = vector.load %arg15[%c7_124, %c0_125] : memref<24x128xf32, #tpu.memory_space<vmem>>, vector<1x128xf32>
            tpu.vector_store %arg15[%c7_124, %c0_125], %230 {strides = array<i32>} : memref<24x128xf32, #tpu.memory_space<vmem>>, vector<1x128xf32>,
          } else {
          }
          %c0_59 = arith.constant 0 : index
          %117 = memref.load %arg4[%c0_59] : memref<8xi32, #tpu.memory_space<smem>>
          %118 = arith.subi %117, %40 : i32
          %c0_i32_60 = arith.constant 0 : i32
          %119 = arith.cmpi sge, %118, %c0_i32_60 : i32
          %c64_i32_61 = arith.constant 64 : i32
          %120 = arith.cmpi slt, %118, %c64_i32_61 : i32
          %121 = arith.andi %119, %120 : i1
          %122 = arith.extui %121 : i1 to i32
          %c0_i32_62 = arith.constant 0 : i32
          %123 = arith.cmpi ne, %122, %c0_i32_62 : i32
          scf.if %123 {
            %229 = arith.index_cast %118 : i32 to index
            %c0_123 = arith.constant 0 : index
            %230 = vector.load %arg13[%229, %c0_123] : memref<64x128xf32, #tpu.memory_space<vmem>>, vector<1x128xf32>
            %c8 = arith.constant 8 : index
            %c0_124 = arith.constant 0 : index
            %231 = vector.load %arg15[%c8, %c0_124] : memref<24x128xf32, #tpu.memory_space<vmem>>, vector<1x128xf32>
            tpu.vector_store %arg15[%c8, %c0_124], %230 {strides = array<i32>} : memref<24x128xf32, #tpu.memory_space<vmem>>, vector<1x128xf32>,
          } else {
          }
          %c1_63 = arith.constant 1 : index
          %124 = memref.load %arg4[%c1_63] : memref<8xi32, #tpu.memory_space<smem>>
          %125 = arith.subi %124, %40 : i32
          %c0_i32_64 = arith.constant 0 : i32
          %126 = arith.cmpi sge, %125, %c0_i32_64 : i32
          %c64_i32_65 = arith.constant 64 : i32
          %127 = arith.cmpi slt, %125, %c64_i32_65 : i32
          %128 = arith.andi %126, %127 : i1
          %129 = arith.extui %128 : i1 to i32
          %c0_i32_66 = arith.constant 0 : i32
          %130 = arith.cmpi ne, %129, %c0_i32_66 : i32
          scf.if %130 {
            %229 = arith.index_cast %125 : i32 to index
            %c0_123 = arith.constant 0 : index
            %230 = vector.load %arg13[%229, %c0_123] : memref<64x128xf32, #tpu.memory_space<vmem>>, vector<1x128xf32>
            %c9 = arith.constant 9 : index
            %c0_124 = arith.constant 0 : index
            %231 = vector.load %arg15[%c9, %c0_124] : memref<24x128xf32, #tpu.memory_space<vmem>>, vector<1x128xf32>
            tpu.vector_store %arg15[%c9, %c0_124], %230 {strides = array<i32>} : memref<24x128xf32, #tpu.memory_space<vmem>>, vector<1x128xf32>,
          } else {
          }
          %c2_67 = arith.constant 2 : index
          %131 = memref.load %arg4[%c2_67] : memref<8xi32, #tpu.memory_space<smem>>
          %132 = arith.subi %131, %40 : i32
          %c0_i32_68 = arith.constant 0 : i32
          %133 = arith.cmpi sge, %132, %c0_i32_68 : i32
          %c64_i32_69 = arith.constant 64 : i32
          %134 = arith.cmpi slt, %132, %c64_i32_69 : i32
          %135 = arith.andi %133, %134 : i1
          %136 = arith.extui %135 : i1 to i32
          %c0_i32_70 = arith.constant 0 : i32
          %137 = arith.cmpi ne, %136, %c0_i32_70 : i32
          scf.if %137 {
            %229 = arith.index_cast %132 : i32 to index
            %c0_123 = arith.constant 0 : index
            %230 = vector.load %arg13[%229, %c0_123] : memref<64x128xf32, #tpu.memory_space<vmem>>, vector<1x128xf32>
            %c10 = arith.constant 10 : index
            %c0_124 = arith.constant 0 : index
            %231 = vector.load %arg15[%c10, %c0_124] : memref<24x128xf32, #tpu.memory_space<vmem>>, vector<1x128xf32>
            tpu.vector_store %arg15[%c10, %c0_124], %230 {strides = array<i32>} : memref<24x128xf32, #tpu.memory_space<vmem>>, vector<1x128xf32>,
          } else {
          }
          %c3_71 = arith.constant 3 : index
          %138 = memref.load %arg4[%c3_71] : memref<8xi32, #tpu.memory_space<smem>>
          %139 = arith.subi %138, %40 : i32
          %c0_i32_72 = arith.constant 0 : i32
          %140 = arith.cmpi sge, %139, %c0_i32_72 : i32
          %c64_i32_73 = arith.constant 64 : i32
          %141 = arith.cmpi slt, %139, %c64_i32_73 : i32
          %142 = arith.andi %140, %141 : i1
          %143 = arith.extui %142 : i1 to i32
          %c0_i32_74 = arith.constant 0 : i32
          %144 = arith.cmpi ne, %143, %c0_i32_74 : i32
          scf.if %144 {
            %229 = arith.index_cast %139 : i32 to index
            %c0_123 = arith.constant 0 : index
            %230 = vector.load %arg13[%229, %c0_123] : memref<64x128xf32, #tpu.memory_space<vmem>>, vector<1x128xf32>
            %c11 = arith.constant 11 : index
            %c0_124 = arith.constant 0 : index
            %231 = vector.load %arg15[%c11, %c0_124] : memref<24x128xf32, #tpu.memory_space<vmem>>, vector<1x128xf32>
            tpu.vector_store %arg15[%c11, %c0_124], %230 {strides = array<i32>} : memref<24x128xf32, #tpu.memory_space<vmem>>, vector<1x128xf32>,
          } else {
          }
          %c4_75 = arith.constant 4 : index
          %145 = memref.load %arg4[%c4_75] : memref<8xi32, #tpu.memory_space<smem>>
          %146 = arith.subi %145, %40 : i32
          %c0_i32_76 = arith.constant 0 : i32
          %147 = arith.cmpi sge, %146, %c0_i32_76 : i32
          %c64_i32_77 = arith.constant 64 : i32
          %148 = arith.cmpi slt, %146, %c64_i32_77 : i32
          %149 = arith.andi %147, %148 : i1
          %150 = arith.extui %149 : i1 to i32
          %c0_i32_78 = arith.constant 0 : i32
          %151 = arith.cmpi ne, %150, %c0_i32_78 : i32
          scf.if %151 {
            %229 = arith.index_cast %146 : i32 to index
            %c0_123 = arith.constant 0 : index
            %230 = vector.load %arg13[%229, %c0_123] : memref<64x128xf32, #tpu.memory_space<vmem>>, vector<1x128xf32>
            %c12 = arith.constant 12 : index
            %c0_124 = arith.constant 0 : index
            %231 = vector.load %arg15[%c12, %c0_124] : memref<24x128xf32, #tpu.memory_space<vmem>>, vector<1x128xf32>
            tpu.vector_store %arg15[%c12, %c0_124], %230 {strides = array<i32>} : memref<24x128xf32, #tpu.memory_space<vmem>>, vector<1x128xf32>,
          } else {
          }
          %c5_79 = arith.constant 5 : index
          %152 = memref.load %arg4[%c5_79] : memref<8xi32, #tpu.memory_space<smem>>
          %153 = arith.subi %152, %40 : i32
          %c0_i32_80 = arith.constant 0 : i32
          %154 = arith.cmpi sge, %153, %c0_i32_80 : i32
          %c64_i32_81 = arith.constant 64 : i32
          %155 = arith.cmpi slt, %153, %c64_i32_81 : i32
          %156 = arith.andi %154, %155 : i1
          %157 = arith.extui %156 : i1 to i32
          %c0_i32_82 = arith.constant 0 : i32
          %158 = arith.cmpi ne, %157, %c0_i32_82 : i32
          scf.if %158 {
            %229 = arith.index_cast %153 : i32 to index
            %c0_123 = arith.constant 0 : index
            %230 = vector.load %arg13[%229, %c0_123] : memref<64x128xf32, #tpu.memory_space<vmem>>, vector<1x128xf32>
            %c13 = arith.constant 13 : index
            %c0_124 = arith.constant 0 : index
            %231 = vector.load %arg15[%c13, %c0_124] : memref<24x128xf32, #tpu.memory_space<vmem>>, vector<1x128xf32>
            tpu.vector_store %arg15[%c13, %c0_124], %230 {strides = array<i32>} : memref<24x128xf32, #tpu.memory_space<vmem>>, vector<1x128xf32>,
          } else {
          }
          %c6_83 = arith.constant 6 : index
          %159 = memref.load %arg4[%c6_83] : memref<8xi32, #tpu.memory_space<smem>>
          %160 = arith.subi %159, %40 : i32
          %c0_i32_84 = arith.constant 0 : i32
          %161 = arith.cmpi sge, %160, %c0_i32_84 : i32
          %c64_i32_85 = arith.constant 64 : i32
          %162 = arith.cmpi slt, %160, %c64_i32_85 : i32
          %163 = arith.andi %161, %162 : i1
          %164 = arith.extui %163 : i1 to i32
          %c0_i32_86 = arith.constant 0 : i32
          %165 = arith.cmpi ne, %164, %c0_i32_86 : i32
          scf.if %165 {
            %229 = arith.index_cast %160 : i32 to index
            %c0_123 = arith.constant 0 : index
            %230 = vector.load %arg13[%229, %c0_123] : memref<64x128xf32, #tpu.memory_space<vmem>>, vector<1x128xf32>
            %c14 = arith.constant 14 : index
            %c0_124 = arith.constant 0 : index
            %231 = vector.load %arg15[%c14, %c0_124] : memref<24x128xf32, #tpu.memory_space<vmem>>, vector<1x128xf32>
            tpu.vector_store %arg15[%c14, %c0_124], %230 {strides = array<i32>} : memref<24x128xf32, #tpu.memory_space<vmem>>, vector<1x128xf32>,
          } else {
          }
          %c7_87 = arith.constant 7 : index
          %166 = memref.load %arg4[%c7_87] : memref<8xi32, #tpu.memory_space<smem>>
          %167 = arith.subi %166, %40 : i32
          %c0_i32_88 = arith.constant 0 : i32
          %168 = arith.cmpi sge, %167, %c0_i32_88 : i32
          %c64_i32_89 = arith.constant 64 : i32
          %169 = arith.cmpi slt, %167, %c64_i32_89 : i32
          %170 = arith.andi %168, %169 : i1
          %171 = arith.extui %170 : i1 to i32
          %c0_i32_90 = arith.constant 0 : i32
          %172 = arith.cmpi ne, %171, %c0_i32_90 : i32
          scf.if %172 {
            %229 = arith.index_cast %167 : i32 to index
            %c0_123 = arith.constant 0 : index
            %230 = vector.load %arg13[%229, %c0_123] : memref<64x128xf32, #tpu.memory_space<vmem>>, vector<1x128xf32>
            %c15 = arith.constant 15 : index
            %c0_124 = arith.constant 0 : index
            %231 = vector.load %arg15[%c15, %c0_124] : memref<24x128xf32, #tpu.memory_space<vmem>>, vector<1x128xf32>
            tpu.vector_store %arg15[%c15, %c0_124], %230 {strides = array<i32>} : memref<24x128xf32, #tpu.memory_space<vmem>>, vector<1x128xf32>,
          } else {
          }
          %c0_91 = arith.constant 0 : index
          %173 = memref.load %arg5[%c0_91] : memref<8xi32, #tpu.memory_space<smem>>
          %174 = arith.subi %173, %40 : i32
          %c0_i32_92 = arith.constant 0 : i32
          %175 = arith.cmpi sge, %174, %c0_i32_92 : i32
          %c64_i32_93 = arith.constant 64 : i32
          %176 = arith.cmpi slt, %174, %c64_i32_93 : i32
          %177 = arith.andi %175, %176 : i1
          %178 = arith.extui %177 : i1 to i32
          %c0_i32_94 = arith.constant 0 : i32
          %179 = arith.cmpi ne, %178, %c0_i32_94 : i32
          scf.if %179 {
            %229 = arith.index_cast %174 : i32 to index
            %c0_123 = arith.constant 0 : index
            %230 = vector.load %arg13[%229, %c0_123] : memref<64x128xf32, #tpu.memory_space<vmem>>, vector<1x128xf32>
            %c16 = arith.constant 16 : index
            %c0_124 = arith.constant 0 : index
            %231 = vector.load %arg15[%c16, %c0_124] : memref<24x128xf32, #tpu.memory_space<vmem>>, vector<1x128xf32>
            tpu.vector_store %arg15[%c16, %c0_124], %230 {strides = array<i32>} : memref<24x128xf32, #tpu.memory_space<vmem>>, vector<1x128xf32>,
          } else {
          }
          %c1_95 = arith.constant 1 : index
          %180 = memref.load %arg5[%c1_95] : memref<8xi32, #tpu.memory_space<smem>>
          %181 = arith.subi %180, %40 : i32
          %c0_i32_96 = arith.constant 0 : i32
          %182 = arith.cmpi sge, %181, %c0_i32_96 : i32
          %c64_i32_97 = arith.constant 64 : i32
          %183 = arith.cmpi slt, %181, %c64_i32_97 : i32
          %184 = arith.andi %182, %183 : i1
          %185 = arith.extui %184 : i1 to i32
          %c0_i32_98 = arith.constant 0 : i32
          %186 = arith.cmpi ne, %185, %c0_i32_98 : i32
          scf.if %186 {
            %229 = arith.index_cast %181 : i32 to index
            %c0_123 = arith.constant 0 : index
            %230 = vector.load %arg13[%229, %c0_123] : memref<64x128xf32, #tpu.memory_space<vmem>>, vector<1x128xf32>
            %c17 = arith.constant 17 : index
            %c0_124 = arith.constant 0 : index
            %231 = vector.load %arg15[%c17, %c0_124] : memref<24x128xf32, #tpu.memory_space<vmem>>, vector<1x128xf32>
            tpu.vector_store %arg15[%c17, %c0_124], %230 {strides = array<i32>} : memref<24x128xf32, #tpu.memory_space<vmem>>, vector<1x128xf32>,
          } else {
          }
          %c2_99 = arith.constant 2 : index
          %187 = memref.load %arg5[%c2_99] : memref<8xi32, #tpu.memory_space<smem>>
          %188 = arith.subi %187, %40 : i32
          %c0_i32_100 = arith.constant 0 : i32
          %189 = arith.cmpi sge, %188, %c0_i32_100 : i32
          %c64_i32_101 = arith.constant 64 : i32
          %190 = arith.cmpi slt, %188, %c64_i32_101 : i32
          %191 = arith.andi %189, %190 : i1
          %192 = arith.extui %191 : i1 to i32
          %c0_i32_102 = arith.constant 0 : i32
          %193 = arith.cmpi ne, %192, %c0_i32_102 : i32
          scf.if %193 {
            %229 = arith.index_cast %188 : i32 to index
            %c0_123 = arith.constant 0 : index
            %230 = vector.load %arg13[%229, %c0_123] : memref<64x128xf32, #tpu.memory_space<vmem>>, vector<1x128xf32>
            %c18 = arith.constant 18 : index
            %c0_124 = arith.constant 0 : index
            %231 = vector.load %arg15[%c18, %c0_124] : memref<24x128xf32, #tpu.memory_space<vmem>>, vector<1x128xf32>
            tpu.vector_store %arg15[%c18, %c0_124], %230 {strides = array<i32>} : memref<24x128xf32, #tpu.memory_space<vmem>>, vector<1x128xf32>,
          } else {
          }
          %c3_103 = arith.constant 3 : index
          %194 = memref.load %arg5[%c3_103] : memref<8xi32, #tpu.memory_space<smem>>
          %195 = arith.subi %194, %40 : i32
          %c0_i32_104 = arith.constant 0 : i32
          %196 = arith.cmpi sge, %195, %c0_i32_104 : i32
          %c64_i32_105 = arith.constant 64 : i32
          %197 = arith.cmpi slt, %195, %c64_i32_105 : i32
          %198 = arith.andi %196, %197 : i1
          %199 = arith.extui %198 : i1 to i32
          %c0_i32_106 = arith.constant 0 : i32
          %200 = arith.cmpi ne, %199, %c0_i32_106 : i32
          scf.if %200 {
            %229 = arith.index_cast %195 : i32 to index
            %c0_123 = arith.constant 0 : index
            %230 = vector.load %arg13[%229, %c0_123] : memref<64x128xf32, #tpu.memory_space<vmem>>, vector<1x128xf32>
            %c19 = arith.constant 19 : index
            %c0_124 = arith.constant 0 : index
            %231 = vector.load %arg15[%c19, %c0_124] : memref<24x128xf32, #tpu.memory_space<vmem>>, vector<1x128xf32>
            tpu.vector_store %arg15[%c19, %c0_124], %230 {strides = array<i32>} : memref<24x128xf32, #tpu.memory_space<vmem>>, vector<1x128xf32>,
          } else {
          }
          %c4_107 = arith.constant 4 : index
          %201 = memref.load %arg5[%c4_107] : memref<8xi32, #tpu.memory_space<smem>>
          %202 = arith.subi %201, %40 : i32
          %c0_i32_108 = arith.constant 0 : i32
          %203 = arith.cmpi sge, %202, %c0_i32_108 : i32
          %c64_i32_109 = arith.constant 64 : i32
          %204 = arith.cmpi slt, %202, %c64_i32_109 : i32
          %205 = arith.andi %203, %204 : i1
          %206 = arith.extui %205 : i1 to i32
          %c0_i32_110 = arith.constant 0 : i32
          %207 = arith.cmpi ne, %206, %c0_i32_110 : i32
          scf.if %207 {
            %229 = arith.index_cast %202 : i32 to index
            %c0_123 = arith.constant 0 : index
            %230 = vector.load %arg13[%229, %c0_123] : memref<64x128xf32, #tpu.memory_space<vmem>>, vector<1x128xf32>
            %c20 = arith.constant 20 : index
            %c0_124 = arith.constant 0 : index
            %231 = vector.load %arg15[%c20, %c0_124] : memref<24x128xf32, #tpu.memory_space<vmem>>, vector<1x128xf32>
            tpu.vector_store %arg15[%c20, %c0_124], %230 {strides = array<i32>} : memref<24x128xf32, #tpu.memory_space<vmem>>, vector<1x128xf32>,
          } else {
          }
          %c5_111 = arith.constant 5 : index
          %208 = memref.load %arg5[%c5_111] : memref<8xi32, #tpu.memory_space<smem>>
          %209 = arith.subi %208, %40 : i32
          %c0_i32_112 = arith.constant 0 : i32
          %210 = arith.cmpi sge, %209, %c0_i32_112 : i32
          %c64_i32_113 = arith.constant 64 : i32
          %211 = arith.cmpi slt, %209, %c64_i32_113 : i32
          %212 = arith.andi %210, %211 : i1
          %213 = arith.extui %212 : i1 to i32
          %c0_i32_114 = arith.constant 0 : i32
          %214 = arith.cmpi ne, %213, %c0_i32_114 : i32
          scf.if %214 {
            %229 = arith.index_cast %209 : i32 to index
            %c0_123 = arith.constant 0 : index
            %230 = vector.load %arg13[%229, %c0_123] : memref<64x128xf32, #tpu.memory_space<vmem>>, vector<1x128xf32>
            %c21 = arith.constant 21 : index
            %c0_124 = arith.constant 0 : index
            %231 = vector.load %arg15[%c21, %c0_124] : memref<24x128xf32, #tpu.memory_space<vmem>>, vector<1x128xf32>
            tpu.vector_store %arg15[%c21, %c0_124], %230 {strides = array<i32>} : memref<24x128xf32, #tpu.memory_space<vmem>>, vector<1x128xf32>,
          } else {
          }
          %c6_115 = arith.constant 6 : index
          %215 = memref.load %arg5[%c6_115] : memref<8xi32, #tpu.memory_space<smem>>
          %216 = arith.subi %215, %40 : i32
          %c0_i32_116 = arith.constant 0 : i32
          %217 = arith.cmpi sge, %216, %c0_i32_116 : i32
          %c64_i32_117 = arith.constant 64 : i32
          %218 = arith.cmpi slt, %216, %c64_i32_117 : i32
          %219 = arith.andi %217, %218 : i1
          %220 = arith.extui %219 : i1 to i32
          %c0_i32_118 = arith.constant 0 : i32
          %221 = arith.cmpi ne, %220, %c0_i32_118 : i32
          scf.if %221 {
            %229 = arith.index_cast %216 : i32 to index
            %c0_123 = arith.constant 0 : index
            %230 = vector.load %arg13[%229, %c0_123] : memref<64x128xf32, #tpu.memory_space<vmem>>, vector<1x128xf32>
            %c22 = arith.constant 22 : index
            %c0_124 = arith.constant 0 : index
            %231 = vector.load %arg15[%c22, %c0_124] : memref<24x128xf32, #tpu.memory_space<vmem>>, vector<1x128xf32>
            tpu.vector_store %arg15[%c22, %c0_124], %230 {strides = array<i32>} : memref<24x128xf32, #tpu.memory_space<vmem>>, vector<1x128xf32>,
          } else {
          }
          %c7_119 = arith.constant 7 : index
          %222 = memref.load %arg5[%c7_119] : memref<8xi32, #tpu.memory_space<smem>>
          %223 = arith.subi %222, %40 : i32
          %c0_i32_120 = arith.constant 0 : i32
          %224 = arith.cmpi sge, %223, %c0_i32_120 : i32
          %c64_i32_121 = arith.constant 64 : i32
          %225 = arith.cmpi slt, %223, %c64_i32_121 : i32
          %226 = arith.andi %224, %225 : i1
          %227 = arith.extui %226 : i1 to i32
          %c0_i32_122 = arith.constant 0 : i32
          %228 = arith.cmpi ne, %227, %c0_i32_122 : i32
          scf.if %228 {
            %229 = arith.index_cast %223 : i32 to index
            %c0_123 = arith.constant 0 : index
            %230 = vector.load %arg13[%229, %c0_123] : memref<64x128xf32, #tpu.memory_space<vmem>>, vector<1x128xf32>
            %c23 = arith.constant 23 : index
            %c0_124 = arith.constant 0 : index
            %231 = vector.load %arg15[%c23, %c0_124] : memref<24x128xf32, #tpu.memory_space<vmem>>, vector<1x128xf32>
            tpu.vector_store %arg15[%c23, %c0_124], %230 {strides = array<i32>} : memref<24x128xf32, #tpu.memory_space<vmem>>, vector<1x128xf32>,
          } else {
          }
        } else {
        }
        %c1_i32_32 = arith.constant 1 : i32
        %58 = arith.cmpi eq, %arg0, %c1_i32_32 : i32
        %59 = arith.extui %58 : i1 to i32
        %c0_i32_33 = arith.constant 0 : i32
        %60 = arith.cmpi ne, %59, %c0_i32_33 : i32
        scf.if %60 {
          %c0_34 = arith.constant 0 : index
          %61 = memref.load %arg3[%c0_34] : memref<8xi32, #tpu.memory_space<smem>>
          %62 = arith.subi %61, %40 : i32
          %c0_i32_35 = arith.constant 0 : i32
          %63 = arith.cmpi sge, %62, %c0_i32_35 : i32
          %c64_i32_36 = arith.constant 64 : i32
          %64 = arith.cmpi slt, %62, %c64_i32_36 : i32
          %65 = arith.andi %63, %64 : i1
          %66 = arith.extui %65 : i1 to i32
          %c0_i32_37 = arith.constant 0 : i32
          %67 = arith.cmpi ne, %66, %c0_i32_37 : i32
          scf.if %67 {
            %229 = arith.index_cast %62 : i32 to index
            %c0_123 = arith.constant 0 : index
            %230 = vector.load %arg13[%229, %c0_123] : memref<64x128xf32, #tpu.memory_space<vmem>>, vector<1x128xf32>
            %c0_124 = arith.constant 0 : index
            %c0_125 = arith.constant 0 : index
            %231 = vector.load %arg16[%c0_124, %c0_125] : memref<24x128xf32, #tpu.memory_space<vmem>>, vector<1x128xf32>
            tpu.vector_store %arg16[%c0_124, %c0_125], %230 {strides = array<i32>} : memref<24x128xf32, #tpu.memory_space<vmem>>, vector<1x128xf32>,
          } else {
          }
          %c1 = arith.constant 1 : index
          %68 = memref.load %arg3[%c1] : memref<8xi32, #tpu.memory_space<smem>>
          %69 = arith.subi %68, %40 : i32
          %c0_i32_38 = arith.constant 0 : i32
          %70 = arith.cmpi sge, %69, %c0_i32_38 : i32
          %c64_i32_39 = arith.constant 64 : i32
          %71 = arith.cmpi slt, %69, %c64_i32_39 : i32
          %72 = arith.andi %70, %71 : i1
          %73 = arith.extui %72 : i1 to i32
          %c0_i32_40 = arith.constant 0 : i32
          %74 = arith.cmpi ne, %73, %c0_i32_40 : i32
          scf.if %74 {
            %229 = arith.index_cast %69 : i32 to index
            %c0_123 = arith.constant 0 : index
            %230 = vector.load %arg13[%229, %c0_123] : memref<64x128xf32, #tpu.memory_space<vmem>>, vector<1x128xf32>
            %c1_124 = arith.constant 1 : index
            %c0_125 = arith.constant 0 : index
            %231 = vector.load %arg16[%c1_124, %c0_125] : memref<24x128xf32, #tpu.memory_space<vmem>>, vector<1x128xf32>
            tpu.vector_store %arg16[%c1_124, %c0_125], %230 {strides = array<i32>} : memref<24x128xf32, #tpu.memory_space<vmem>>, vector<1x128xf32>,
          } else {
          }
          %c2 = arith.constant 2 : index
          %75 = memref.load %arg3[%c2] : memref<8xi32, #tpu.memory_space<smem>>
          %76 = arith.subi %75, %40 : i32
          %c0_i32_41 = arith.constant 0 : i32
          %77 = arith.cmpi sge, %76, %c0_i32_41 : i32
          %c64_i32_42 = arith.constant 64 : i32
          %78 = arith.cmpi slt, %76, %c64_i32_42 : i32
          %79 = arith.andi %77, %78 : i1
          %80 = arith.extui %79 : i1 to i32
          %c0_i32_43 = arith.constant 0 : i32
          %81 = arith.cmpi ne, %80, %c0_i32_43 : i32
          scf.if %81 {
            %229 = arith.index_cast %76 : i32 to index
            %c0_123 = arith.constant 0 : index
            %230 = vector.load %arg13[%229, %c0_123] : memref<64x128xf32, #tpu.memory_space<vmem>>, vector<1x128xf32>
            %c2_124 = arith.constant 2 : index
            %c0_125 = arith.constant 0 : index
            %231 = vector.load %arg16[%c2_124, %c0_125] : memref<24x128xf32, #tpu.memory_space<vmem>>, vector<1x128xf32>
            tpu.vector_store %arg16[%c2_124, %c0_125], %230 {strides = array<i32>} : memref<24x128xf32, #tpu.memory_space<vmem>>, vector<1x128xf32>,
          } else {
          }
          %c3 = arith.constant 3 : index
          %82 = memref.load %arg3[%c3] : memref<8xi32, #tpu.memory_space<smem>>
          %83 = arith.subi %82, %40 : i32
          %c0_i32_44 = arith.constant 0 : i32
          %84 = arith.cmpi sge, %83, %c0_i32_44 : i32
          %c64_i32_45 = arith.constant 64 : i32
          %85 = arith.cmpi slt, %83, %c64_i32_45 : i32
          %86 = arith.andi %84, %85 : i1
          %87 = arith.extui %86 : i1 to i32
          %c0_i32_46 = arith.constant 0 : i32
          %88 = arith.cmpi ne, %87, %c0_i32_46 : i32
          scf.if %88 {
            %229 = arith.index_cast %83 : i32 to index
            %c0_123 = arith.constant 0 : index
            %230 = vector.load %arg13[%229, %c0_123] : memref<64x128xf32, #tpu.memory_space<vmem>>, vector<1x128xf32>
            %c3_124 = arith.constant 3 : index
            %c0_125 = arith.constant 0 : index
            %231 = vector.load %arg16[%c3_124, %c0_125] : memref<24x128xf32, #tpu.memory_space<vmem>>, vector<1x128xf32>
            tpu.vector_store %arg16[%c3_124, %c0_125], %230 {strides = array<i32>} : memref<24x128xf32, #tpu.memory_space<vmem>>, vector<1x128xf32>,
          } else {
          }
          %c4 = arith.constant 4 : index
          %89 = memref.load %arg3[%c4] : memref<8xi32, #tpu.memory_space<smem>>
          %90 = arith.subi %89, %40 : i32
          %c0_i32_47 = arith.constant 0 : i32
          %91 = arith.cmpi sge, %90, %c0_i32_47 : i32
          %c64_i32_48 = arith.constant 64 : i32
          %92 = arith.cmpi slt, %90, %c64_i32_48 : i32
          %93 = arith.andi %91, %92 : i1
          %94 = arith.extui %93 : i1 to i32
          %c0_i32_49 = arith.constant 0 : i32
          %95 = arith.cmpi ne, %94, %c0_i32_49 : i32
          scf.if %95 {
            %229 = arith.index_cast %90 : i32 to index
            %c0_123 = arith.constant 0 : index
            %230 = vector.load %arg13[%229, %c0_123] : memref<64x128xf32, #tpu.memory_space<vmem>>, vector<1x128xf32>
            %c4_124 = arith.constant 4 : index
            %c0_125 = arith.constant 0 : index
            %231 = vector.load %arg16[%c4_124, %c0_125] : memref<24x128xf32, #tpu.memory_space<vmem>>, vector<1x128xf32>
            tpu.vector_store %arg16[%c4_124, %c0_125], %230 {strides = array<i32>} : memref<24x128xf32, #tpu.memory_space<vmem>>, vector<1x128xf32>,
          } else {
          }
          %c5 = arith.constant 5 : index
          %96 = memref.load %arg3[%c5] : memref<8xi32, #tpu.memory_space<smem>>
          %97 = arith.subi %96, %40 : i32
          %c0_i32_50 = arith.constant 0 : i32
          %98 = arith.cmpi sge, %97, %c0_i32_50 : i32
          %c64_i32_51 = arith.constant 64 : i32
          %99 = arith.cmpi slt, %97, %c64_i32_51 : i32
          %100 = arith.andi %98, %99 : i1
          %101 = arith.extui %100 : i1 to i32
          %c0_i32_52 = arith.constant 0 : i32
          %102 = arith.cmpi ne, %101, %c0_i32_52 : i32
          scf.if %102 {
            %229 = arith.index_cast %97 : i32 to index
            %c0_123 = arith.constant 0 : index
            %230 = vector.load %arg13[%229, %c0_123] : memref<64x128xf32, #tpu.memory_space<vmem>>, vector<1x128xf32>
            %c5_124 = arith.constant 5 : index
            %c0_125 = arith.constant 0 : index
            %231 = vector.load %arg16[%c5_124, %c0_125] : memref<24x128xf32, #tpu.memory_space<vmem>>, vector<1x128xf32>
            tpu.vector_store %arg16[%c5_124, %c0_125], %230 {strides = array<i32>} : memref<24x128xf32, #tpu.memory_space<vmem>>, vector<1x128xf32>,
          } else {
          }
          %c6 = arith.constant 6 : index
          %103 = memref.load %arg3[%c6] : memref<8xi32, #tpu.memory_space<smem>>
          %104 = arith.subi %103, %40 : i32
          %c0_i32_53 = arith.constant 0 : i32
          %105 = arith.cmpi sge, %104, %c0_i32_53 : i32
          %c64_i32_54 = arith.constant 64 : i32
          %106 = arith.cmpi slt, %104, %c64_i32_54 : i32
          %107 = arith.andi %105, %106 : i1
          %108 = arith.extui %107 : i1 to i32
          %c0_i32_55 = arith.constant 0 : i32
          %109 = arith.cmpi ne, %108, %c0_i32_55 : i32
          scf.if %109 {
            %229 = arith.index_cast %104 : i32 to index
            %c0_123 = arith.constant 0 : index
            %230 = vector.load %arg13[%229, %c0_123] : memref<64x128xf32, #tpu.memory_space<vmem>>, vector<1x128xf32>
            %c6_124 = arith.constant 6 : index
            %c0_125 = arith.constant 0 : index
            %231 = vector.load %arg16[%c6_124, %c0_125] : memref<24x128xf32, #tpu.memory_space<vmem>>, vector<1x128xf32>
            tpu.vector_store %arg16[%c6_124, %c0_125], %230 {strides = array<i32>} : memref<24x128xf32, #tpu.memory_space<vmem>>, vector<1x128xf32>,
          } else {
          }
          %c7 = arith.constant 7 : index
          %110 = memref.load %arg3[%c7] : memref<8xi32, #tpu.memory_space<smem>>
          %111 = arith.subi %110, %40 : i32
          %c0_i32_56 = arith.constant 0 : i32
          %112 = arith.cmpi sge, %111, %c0_i32_56 : i32
          %c64_i32_57 = arith.constant 64 : i32
          %113 = arith.cmpi slt, %111, %c64_i32_57 : i32
          %114 = arith.andi %112, %113 : i1
          %115 = arith.extui %114 : i1 to i32
          %c0_i32_58 = arith.constant 0 : i32
          %116 = arith.cmpi ne, %115, %c0_i32_58 : i32
          scf.if %116 {
            %229 = arith.index_cast %111 : i32 to index
            %c0_123 = arith.constant 0 : index
            %230 = vector.load %arg13[%229, %c0_123] : memref<64x128xf32, #tpu.memory_space<vmem>>, vector<1x128xf32>
            %c7_124 = arith.constant 7 : index
            %c0_125 = arith.constant 0 : index
            %231 = vector.load %arg16[%c7_124, %c0_125] : memref<24x128xf32, #tpu.memory_space<vmem>>, vector<1x128xf32>
            tpu.vector_store %arg16[%c7_124, %c0_125], %230 {strides = array<i32>} : memref<24x128xf32, #tpu.memory_space<vmem>>, vector<1x128xf32>,
          } else {
          }
          %c0_59 = arith.constant 0 : index
          %117 = memref.load %arg4[%c0_59] : memref<8xi32, #tpu.memory_space<smem>>
          %118 = arith.subi %117, %40 : i32
          %c0_i32_60 = arith.constant 0 : i32
          %119 = arith.cmpi sge, %118, %c0_i32_60 : i32
          %c64_i32_61 = arith.constant 64 : i32
          %120 = arith.cmpi slt, %118, %c64_i32_61 : i32
          %121 = arith.andi %119, %120 : i1
          %122 = arith.extui %121 : i1 to i32
          %c0_i32_62 = arith.constant 0 : i32
          %123 = arith.cmpi ne, %122, %c0_i32_62 : i32
          scf.if %123 {
            %229 = arith.index_cast %118 : i32 to index
            %c0_123 = arith.constant 0 : index
            %230 = vector.load %arg13[%229, %c0_123] : memref<64x128xf32, #tpu.memory_space<vmem>>, vector<1x128xf32>
            %c8 = arith.constant 8 : index
            %c0_124 = arith.constant 0 : index
            %231 = vector.load %arg16[%c8, %c0_124] : memref<24x128xf32, #tpu.memory_space<vmem>>, vector<1x128xf32>
            tpu.vector_store %arg16[%c8, %c0_124], %230 {strides = array<i32>} : memref<24x128xf32, #tpu.memory_space<vmem>>, vector<1x128xf32>,
          } else {
          }
          %c1_63 = arith.constant 1 : index
          %124 = memref.load %arg4[%c1_63] : memref<8xi32, #tpu.memory_space<smem>>
          %125 = arith.subi %124, %40 : i32
          %c0_i32_64 = arith.constant 0 : i32
          %126 = arith.cmpi sge, %125, %c0_i32_64 : i32
          %c64_i32_65 = arith.constant 64 : i32
          %127 = arith.cmpi slt, %125, %c64_i32_65 : i32
          %128 = arith.andi %126, %127 : i1
          %129 = arith.extui %128 : i1 to i32
          %c0_i32_66 = arith.constant 0 : i32
          %130 = arith.cmpi ne, %129, %c0_i32_66 : i32
          scf.if %130 {
            %229 = arith.index_cast %125 : i32 to index
            %c0_123 = arith.constant 0 : index
            %230 = vector.load %arg13[%229, %c0_123] : memref<64x128xf32, #tpu.memory_space<vmem>>, vector<1x128xf32>
            %c9 = arith.constant 9 : index
            %c0_124 = arith.constant 0 : index
            %231 = vector.load %arg16[%c9, %c0_124] : memref<24x128xf32, #tpu.memory_space<vmem>>, vector<1x128xf32>
            tpu.vector_store %arg16[%c9, %c0_124], %230 {strides = array<i32>} : memref<24x128xf32, #tpu.memory_space<vmem>>, vector<1x128xf32>,
          } else {
          }
          %c2_67 = arith.constant 2 : index
          %131 = memref.load %arg4[%c2_67] : memref<8xi32, #tpu.memory_space<smem>>
          %132 = arith.subi %131, %40 : i32
          %c0_i32_68 = arith.constant 0 : i32
          %133 = arith.cmpi sge, %132, %c0_i32_68 : i32
          %c64_i32_69 = arith.constant 64 : i32
          %134 = arith.cmpi slt, %132, %c64_i32_69 : i32
          %135 = arith.andi %133, %134 : i1
          %136 = arith.extui %135 : i1 to i32
          %c0_i32_70 = arith.constant 0 : i32
          %137 = arith.cmpi ne, %136, %c0_i32_70 : i32
          scf.if %137 {
            %229 = arith.index_cast %132 : i32 to index
            %c0_123 = arith.constant 0 : index
            %230 = vector.load %arg13[%229, %c0_123] : memref<64x128xf32, #tpu.memory_space<vmem>>, vector<1x128xf32>
            %c10 = arith.constant 10 : index
            %c0_124 = arith.constant 0 : index
            %231 = vector.load %arg16[%c10, %c0_124] : memref<24x128xf32, #tpu.memory_space<vmem>>, vector<1x128xf32>
            tpu.vector_store %arg16[%c10, %c0_124], %230 {strides = array<i32>} : memref<24x128xf32, #tpu.memory_space<vmem>>, vector<1x128xf32>,
          } else {
          }
          %c3_71 = arith.constant 3 : index
          %138 = memref.load %arg4[%c3_71] : memref<8xi32, #tpu.memory_space<smem>>
          %139 = arith.subi %138, %40 : i32
          %c0_i32_72 = arith.constant 0 : i32
          %140 = arith.cmpi sge, %139, %c0_i32_72 : i32
          %c64_i32_73 = arith.constant 64 : i32
          %141 = arith.cmpi slt, %139, %c64_i32_73 : i32
          %142 = arith.andi %140, %141 : i1
          %143 = arith.extui %142 : i1 to i32
          %c0_i32_74 = arith.constant 0 : i32
          %144 = arith.cmpi ne, %143, %c0_i32_74 : i32
          scf.if %144 {
            %229 = arith.index_cast %139 : i32 to index
            %c0_123 = arith.constant 0 : index
            %230 = vector.load %arg13[%229, %c0_123] : memref<64x128xf32, #tpu.memory_space<vmem>>, vector<1x128xf32>
            %c11 = arith.constant 11 : index
            %c0_124 = arith.constant 0 : index
            %231 = vector.load %arg16[%c11, %c0_124] : memref<24x128xf32, #tpu.memory_space<vmem>>, vector<1x128xf32>
            tpu.vector_store %arg16[%c11, %c0_124], %230 {strides = array<i32>} : memref<24x128xf32, #tpu.memory_space<vmem>>, vector<1x128xf32>,
          } else {
          }
          %c4_75 = arith.constant 4 : index
          %145 = memref.load %arg4[%c4_75] : memref<8xi32, #tpu.memory_space<smem>>
          %146 = arith.subi %145, %40 : i32
          %c0_i32_76 = arith.constant 0 : i32
          %147 = arith.cmpi sge, %146, %c0_i32_76 : i32
          %c64_i32_77 = arith.constant 64 : i32
          %148 = arith.cmpi slt, %146, %c64_i32_77 : i32
          %149 = arith.andi %147, %148 : i1
          %150 = arith.extui %149 : i1 to i32
          %c0_i32_78 = arith.constant 0 : i32
          %151 = arith.cmpi ne, %150, %c0_i32_78 : i32
          scf.if %151 {
            %229 = arith.index_cast %146 : i32 to index
            %c0_123 = arith.constant 0 : index
            %230 = vector.load %arg13[%229, %c0_123] : memref<64x128xf32, #tpu.memory_space<vmem>>, vector<1x128xf32>
            %c12 = arith.constant 12 : index
            %c0_124 = arith.constant 0 : index
            %231 = vector.load %arg16[%c12, %c0_124] : memref<24x128xf32, #tpu.memory_space<vmem>>, vector<1x128xf32>
            tpu.vector_store %arg16[%c12, %c0_124], %230 {strides = array<i32>} : memref<24x128xf32, #tpu.memory_space<vmem>>, vector<1x128xf32>,
          } else {
          }
          %c5_79 = arith.constant 5 : index
          %152 = memref.load %arg4[%c5_79] : memref<8xi32, #tpu.memory_space<smem>>
          %153 = arith.subi %152, %40 : i32
          %c0_i32_80 = arith.constant 0 : i32
          %154 = arith.cmpi sge, %153, %c0_i32_80 : i32
          %c64_i32_81 = arith.constant 64 : i32
          %155 = arith.cmpi slt, %153, %c64_i32_81 : i32
          %156 = arith.andi %154, %155 : i1
          %157 = arith.extui %156 : i1 to i32
          %c0_i32_82 = arith.constant 0 : i32
          %158 = arith.cmpi ne, %157, %c0_i32_82 : i32
          scf.if %158 {
            %229 = arith.index_cast %153 : i32 to index
            %c0_123 = arith.constant 0 : index
            %230 = vector.load %arg13[%229, %c0_123] : memref<64x128xf32, #tpu.memory_space<vmem>>, vector<1x128xf32>
            %c13 = arith.constant 13 : index
            %c0_124 = arith.constant 0 : index
            %231 = vector.load %arg16[%c13, %c0_124] : memref<24x128xf32, #tpu.memory_space<vmem>>, vector<1x128xf32>
            tpu.vector_store %arg16[%c13, %c0_124], %230 {strides = array<i32>} : memref<24x128xf32, #tpu.memory_space<vmem>>, vector<1x128xf32>,
          } else {
          }
          %c6_83 = arith.constant 6 : index
          %159 = memref.load %arg4[%c6_83] : memref<8xi32, #tpu.memory_space<smem>>
          %160 = arith.subi %159, %40 : i32
          %c0_i32_84 = arith.constant 0 : i32
          %161 = arith.cmpi sge, %160, %c0_i32_84 : i32
          %c64_i32_85 = arith.constant 64 : i32
          %162 = arith.cmpi slt, %160, %c64_i32_85 : i32
          %163 = arith.andi %161, %162 : i1
          %164 = arith.extui %163 : i1 to i32
          %c0_i32_86 = arith.constant 0 : i32
          %165 = arith.cmpi ne, %164, %c0_i32_86 : i32
          scf.if %165 {
            %229 = arith.index_cast %160 : i32 to index
            %c0_123 = arith.constant 0 : index
            %230 = vector.load %arg13[%229, %c0_123] : memref<64x128xf32, #tpu.memory_space<vmem>>, vector<1x128xf32>
            %c14 = arith.constant 14 : index
            %c0_124 = arith.constant 0 : index
            %231 = vector.load %arg16[%c14, %c0_124] : memref<24x128xf32, #tpu.memory_space<vmem>>, vector<1x128xf32>
            tpu.vector_store %arg16[%c14, %c0_124], %230 {strides = array<i32>} : memref<24x128xf32, #tpu.memory_space<vmem>>, vector<1x128xf32>,
          } else {
          }
          %c7_87 = arith.constant 7 : index
          %166 = memref.load %arg4[%c7_87] : memref<8xi32, #tpu.memory_space<smem>>
          %167 = arith.subi %166, %40 : i32
          %c0_i32_88 = arith.constant 0 : i32
          %168 = arith.cmpi sge, %167, %c0_i32_88 : i32
          %c64_i32_89 = arith.constant 64 : i32
          %169 = arith.cmpi slt, %167, %c64_i32_89 : i32
          %170 = arith.andi %168, %169 : i1
          %171 = arith.extui %170 : i1 to i32
          %c0_i32_90 = arith.constant 0 : i32
          %172 = arith.cmpi ne, %171, %c0_i32_90 : i32
          scf.if %172 {
            %229 = arith.index_cast %167 : i32 to index
            %c0_123 = arith.constant 0 : index
            %230 = vector.load %arg13[%229, %c0_123] : memref<64x128xf32, #tpu.memory_space<vmem>>, vector<1x128xf32>
            %c15 = arith.constant 15 : index
            %c0_124 = arith.constant 0 : index
            %231 = vector.load %arg16[%c15, %c0_124] : memref<24x128xf32, #tpu.memory_space<vmem>>, vector<1x128xf32>
            tpu.vector_store %arg16[%c15, %c0_124], %230 {strides = array<i32>} : memref<24x128xf32, #tpu.memory_space<vmem>>, vector<1x128xf32>,
          } else {
          }
          %c0_91 = arith.constant 0 : index
          %173 = memref.load %arg5[%c0_91] : memref<8xi32, #tpu.memory_space<smem>>
          %174 = arith.subi %173, %40 : i32
          %c0_i32_92 = arith.constant 0 : i32
          %175 = arith.cmpi sge, %174, %c0_i32_92 : i32
          %c64_i32_93 = arith.constant 64 : i32
          %176 = arith.cmpi slt, %174, %c64_i32_93 : i32
          %177 = arith.andi %175, %176 : i1
          %178 = arith.extui %177 : i1 to i32
          %c0_i32_94 = arith.constant 0 : i32
          %179 = arith.cmpi ne, %178, %c0_i32_94 : i32
          scf.if %179 {
            %229 = arith.index_cast %174 : i32 to index
            %c0_123 = arith.constant 0 : index
            %230 = vector.load %arg13[%229, %c0_123] : memref<64x128xf32, #tpu.memory_space<vmem>>, vector<1x128xf32>
            %c16 = arith.constant 16 : index
            %c0_124 = arith.constant 0 : index
            %231 = vector.load %arg16[%c16, %c0_124] : memref<24x128xf32, #tpu.memory_space<vmem>>, vector<1x128xf32>
            tpu.vector_store %arg16[%c16, %c0_124], %230 {strides = array<i32>} : memref<24x128xf32, #tpu.memory_space<vmem>>, vector<1x128xf32>,
          } else {
          }
          %c1_95 = arith.constant 1 : index
          %180 = memref.load %arg5[%c1_95] : memref<8xi32, #tpu.memory_space<smem>>
          %181 = arith.subi %180, %40 : i32
          %c0_i32_96 = arith.constant 0 : i32
          %182 = arith.cmpi sge, %181, %c0_i32_96 : i32
          %c64_i32_97 = arith.constant 64 : i32
          %183 = arith.cmpi slt, %181, %c64_i32_97 : i32
          %184 = arith.andi %182, %183 : i1
          %185 = arith.extui %184 : i1 to i32
          %c0_i32_98 = arith.constant 0 : i32
          %186 = arith.cmpi ne, %185, %c0_i32_98 : i32
          scf.if %186 {
            %229 = arith.index_cast %181 : i32 to index
            %c0_123 = arith.constant 0 : index
            %230 = vector.load %arg13[%229, %c0_123] : memref<64x128xf32, #tpu.memory_space<vmem>>, vector<1x128xf32>
            %c17 = arith.constant 17 : index
            %c0_124 = arith.constant 0 : index
            %231 = vector.load %arg16[%c17, %c0_124] : memref<24x128xf32, #tpu.memory_space<vmem>>, vector<1x128xf32>
            tpu.vector_store %arg16[%c17, %c0_124], %230 {strides = array<i32>} : memref<24x128xf32, #tpu.memory_space<vmem>>, vector<1x128xf32>,
          } else {
          }
          %c2_99 = arith.constant 2 : index
          %187 = memref.load %arg5[%c2_99] : memref<8xi32, #tpu.memory_space<smem>>
          %188 = arith.subi %187, %40 : i32
          %c0_i32_100 = arith.constant 0 : i32
          %189 = arith.cmpi sge, %188, %c0_i32_100 : i32
          %c64_i32_101 = arith.constant 64 : i32
          %190 = arith.cmpi slt, %188, %c64_i32_101 : i32
          %191 = arith.andi %189, %190 : i1
          %192 = arith.extui %191 : i1 to i32
          %c0_i32_102 = arith.constant 0 : i32
          %193 = arith.cmpi ne, %192, %c0_i32_102 : i32
          scf.if %193 {
            %229 = arith.index_cast %188 : i32 to index
            %c0_123 = arith.constant 0 : index
            %230 = vector.load %arg13[%229, %c0_123] : memref<64x128xf32, #tpu.memory_space<vmem>>, vector<1x128xf32>
            %c18 = arith.constant 18 : index
            %c0_124 = arith.constant 0 : index
            %231 = vector.load %arg16[%c18, %c0_124] : memref<24x128xf32, #tpu.memory_space<vmem>>, vector<1x128xf32>
            tpu.vector_store %arg16[%c18, %c0_124], %230 {strides = array<i32>} : memref<24x128xf32, #tpu.memory_space<vmem>>, vector<1x128xf32>,
          } else {
          }
          %c3_103 = arith.constant 3 : index
          %194 = memref.load %arg5[%c3_103] : memref<8xi32, #tpu.memory_space<smem>>
          %195 = arith.subi %194, %40 : i32
          %c0_i32_104 = arith.constant 0 : i32
          %196 = arith.cmpi sge, %195, %c0_i32_104 : i32
          %c64_i32_105 = arith.constant 64 : i32
          %197 = arith.cmpi slt, %195, %c64_i32_105 : i32
          %198 = arith.andi %196, %197 : i1
          %199 = arith.extui %198 : i1 to i32
          %c0_i32_106 = arith.constant 0 : i32
          %200 = arith.cmpi ne, %199, %c0_i32_106 : i32
          scf.if %200 {
            %229 = arith.index_cast %195 : i32 to index
            %c0_123 = arith.constant 0 : index
            %230 = vector.load %arg13[%229, %c0_123] : memref<64x128xf32, #tpu.memory_space<vmem>>, vector<1x128xf32>
            %c19 = arith.constant 19 : index
            %c0_124 = arith.constant 0 : index
            %231 = vector.load %arg16[%c19, %c0_124] : memref<24x128xf32, #tpu.memory_space<vmem>>, vector<1x128xf32>
            tpu.vector_store %arg16[%c19, %c0_124], %230 {strides = array<i32>} : memref<24x128xf32, #tpu.memory_space<vmem>>, vector<1x128xf32>,
          } else {
          }
          %c4_107 = arith.constant 4 : index
          %201 = memref.load %arg5[%c4_107] : memref<8xi32, #tpu.memory_space<smem>>
          %202 = arith.subi %201, %40 : i32
          %c0_i32_108 = arith.constant 0 : i32
          %203 = arith.cmpi sge, %202, %c0_i32_108 : i32
          %c64_i32_109 = arith.constant 64 : i32
          %204 = arith.cmpi slt, %202, %c64_i32_109 : i32
          %205 = arith.andi %203, %204 : i1
          %206 = arith.extui %205 : i1 to i32
          %c0_i32_110 = arith.constant 0 : i32
          %207 = arith.cmpi ne, %206, %c0_i32_110 : i32
          scf.if %207 {
            %229 = arith.index_cast %202 : i32 to index
            %c0_123 = arith.constant 0 : index
            %230 = vector.load %arg13[%229, %c0_123] : memref<64x128xf32, #tpu.memory_space<vmem>>, vector<1x128xf32>
            %c20 = arith.constant 20 : index
            %c0_124 = arith.constant 0 : index
            %231 = vector.load %arg16[%c20, %c0_124] : memref<24x128xf32, #tpu.memory_space<vmem>>, vector<1x128xf32>
            tpu.vector_store %arg16[%c20, %c0_124], %230 {strides = array<i32>} : memref<24x128xf32, #tpu.memory_space<vmem>>, vector<1x128xf32>,
          } else {
          }
          %c5_111 = arith.constant 5 : index
          %208 = memref.load %arg5[%c5_111] : memref<8xi32, #tpu.memory_space<smem>>
          %209 = arith.subi %208, %40 : i32
          %c0_i32_112 = arith.constant 0 : i32
          %210 = arith.cmpi sge, %209, %c0_i32_112 : i32
          %c64_i32_113 = arith.constant 64 : i32
          %211 = arith.cmpi slt, %209, %c64_i32_113 : i32
          %212 = arith.andi %210, %211 : i1
          %213 = arith.extui %212 : i1 to i32
          %c0_i32_114 = arith.constant 0 : i32
          %214 = arith.cmpi ne, %213, %c0_i32_114 : i32
          scf.if %214 {
            %229 = arith.index_cast %209 : i32 to index
            %c0_123 = arith.constant 0 : index
            %230 = vector.load %arg13[%229, %c0_123] : memref<64x128xf32, #tpu.memory_space<vmem>>, vector<1x128xf32>
            %c21 = arith.constant 21 : index
            %c0_124 = arith.constant 0 : index
            %231 = vector.load %arg16[%c21, %c0_124] : memref<24x128xf32, #tpu.memory_space<vmem>>, vector<1x128xf32>
            tpu.vector_store %arg16[%c21, %c0_124], %230 {strides = array<i32>} : memref<24x128xf32, #tpu.memory_space<vmem>>, vector<1x128xf32>,
          } else {
          }
          %c6_115 = arith.constant 6 : index
          %215 = memref.load %arg5[%c6_115] : memref<8xi32, #tpu.memory_space<smem>>
          %216 = arith.subi %215, %40 : i32
          %c0_i32_116 = arith.constant 0 : i32
          %217 = arith.cmpi sge, %216, %c0_i32_116 : i32
          %c64_i32_117 = arith.constant 64 : i32
          %218 = arith.cmpi slt, %216, %c64_i32_117 : i32
          %219 = arith.andi %217, %218 : i1
          %220 = arith.extui %219 : i1 to i32
          %c0_i32_118 = arith.constant 0 : i32
          %221 = arith.cmpi ne, %220, %c0_i32_118 : i32
          scf.if %221 {
            %229 = arith.index_cast %216 : i32 to index
            %c0_123 = arith.constant 0 : index
            %230 = vector.load %arg13[%229, %c0_123] : memref<64x128xf32, #tpu.memory_space<vmem>>, vector<1x128xf32>
            %c22 = arith.constant 22 : index
            %c0_124 = arith.constant 0 : index
            %231 = vector.load %arg16[%c22, %c0_124] : memref<24x128xf32, #tpu.memory_space<vmem>>, vector<1x128xf32>
            tpu.vector_store %arg16[%c22, %c0_124], %230 {strides = array<i32>} : memref<24x128xf32, #tpu.memory_space<vmem>>, vector<1x128xf32>,
          } else {
          }
          %c7_119 = arith.constant 7 : index
          %222 = memref.load %arg5[%c7_119] : memref<8xi32, #tpu.memory_space<smem>>
          %223 = arith.subi %222, %40 : i32
          %c0_i32_120 = arith.constant 0 : i32
          %224 = arith.cmpi sge, %223, %c0_i32_120 : i32
          %c64_i32_121 = arith.constant 64 : i32
          %225 = arith.cmpi slt, %223, %c64_i32_121 : i32
          %226 = arith.andi %224, %225 : i1
          %227 = arith.extui %226 : i1 to i32
          %c0_i32_122 = arith.constant 0 : i32
          %228 = arith.cmpi ne, %227, %c0_i32_122 : i32
          scf.if %228 {
            %229 = arith.index_cast %223 : i32 to index
            %c0_123 = arith.constant 0 : index
            %230 = vector.load %arg13[%229, %c0_123] : memref<64x128xf32, #tpu.memory_space<vmem>>, vector<1x128xf32>
            %c23 = arith.constant 23 : index
            %c0_124 = arith.constant 0 : index
            %231 = vector.load %arg16[%c23, %c0_124] : memref<24x128xf32, #tpu.memory_space<vmem>>, vector<1x128xf32>
            tpu.vector_store %arg16[%c23, %c0_124], %230 {strides = array<i32>} : memref<24x128xf32, #tpu.memory_space<vmem>>, vector<1x128xf32>,
          } else {
          }
        } else {
        }
      } else {
      }
      %c1_i32_26 = arith.constant 1 : i32
      %49 = arith.cmpi eq, %arg0, %c1_i32_26 : i32
      %c6_i32 = arith.constant 6 : i32
      %50 = arith.cmpi eq, %arg1, %c6_i32 : i32
      %51 = arith.andi %49, %50 : i1
      %52 = arith.extui %51 : i1 to i32
      %c0_i32_27 = arith.constant 0 : i32
      %53 = arith.cmpi ne, %52, %c0_i32_27 : i32
      scf.if %53 {
        %c0_28 = arith.constant 0 : index
        %c0_29 = arith.constant 0 : index
        %54 = vector.load %arg15[%c0_28, %c0_29] : memref<24x128xf32, #tpu.memory_space<vmem>>, vector<8x128xf32>
        %c8 = arith.constant 8 : index
        %c0_30 = arith.constant 0 : index
        %55 = vector.load %arg15[%c8, %c0_30] : memref<24x128xf32, #tpu.memory_space<vmem>>, vector<8x128xf32>
        %c16 = arith.constant 16 : index
        %c0_31 = arith.constant 0 : index
        %56 = vector.load %arg15[%c16, %c0_31] : memref<24x128xf32, #tpu.memory_space<vmem>>, vector<8x128xf32>
        %c0_32 = arith.constant 0 : index
        %c0_33 = arith.constant 0 : index
        %57 = vector.load %arg16[%c0_32, %c0_33] : memref<24x128xf32, #tpu.memory_space<vmem>>, vector<8x128xf32>
        %c8_34 = arith.constant 8 : index
        %c0_35 = arith.constant 0 : index
        %58 = vector.load %arg16[%c8_34, %c0_35] : memref<24x128xf32, #tpu.memory_space<vmem>>, vector<8x128xf32>
        %c16_36 = arith.constant 16 : index
        %c0_37 = arith.constant 0 : index
        %59 = vector.load %arg16[%c16_36, %c0_37] : memref<24x128xf32, #tpu.memory_space<vmem>>, vector<8x128xf32>
        %60 = arith.mulf %57, %58 : vector<8x128xf32>
        %cst_38 = arith.constant dense<0.000000e+00> : vector<8xf32>
        %61 = vector.multi_reduction <add>, %60, %cst_38 [1] : vector<8x128xf32> to vector<8xf32>
        %62 = vector.shape_cast %61 : vector<8xf32> to vector<8x1xf32>
        %63 = arith.mulf %57, %59 : vector<8x128xf32>
        %cst_39 = arith.constant dense<0.000000e+00> : vector<8xf32>
        %64 = vector.multi_reduction <add>, %63, %cst_39 [1] : vector<8x128xf32> to vector<8xf32>
        %65 = vector.shape_cast %64 : vector<8xf32> to vector<8x1xf32>
        %66 = arith.mulf %54, %55 : vector<8x128xf32>
        %cst_40 = arith.constant dense<0.000000e+00> : vector<8xf32>
        %67 = vector.multi_reduction <add>, %66, %cst_40 [1] : vector<8x128xf32> to vector<8xf32>
        %68 = vector.shape_cast %67 : vector<8xf32> to vector<8x1xf32>
        %69 = arith.mulf %54, %56 : vector<8x128xf32>
        %cst_41 = arith.constant dense<0.000000e+00> : vector<8xf32>
        %70 = vector.multi_reduction <add>, %69, %cst_41 [1] : vector<8x128xf32> to vector<8xf32>
        %71 = vector.shape_cast %70 : vector<8xf32> to vector<8x1xf32>
        %72 = tpu.iota {dimensions = array<i32: 1>} : vector<8x128xi32>
        %c0_i32_42 = arith.constant 0 : i32
        %73 = vector.broadcast %c0_i32_42 : i32 to vector<8x128xi32>
        %74 = arith.cmpi eq, %72, %73 : vector<8x128xi32>
        %cst_43 = arith.constant 0.000000e+00 : f32
        %75 = vector.shape_cast %62 : vector<8x1xf32> to vector<8x1xf32>
        %76 = vector.broadcast %75 : vector<8x1xf32> to vector<8x128xf32>
        %77 = vector.broadcast %cst_43 : f32 to vector<8x128xf32>
        %78 = arith.select %74, %76, %77 : vector<8x128xi1>, vector<8x128xf32>
        %c1_i32_44 = arith.constant 1 : i32
        %79 = vector.broadcast %c1_i32_44 : i32 to vector<8x128xi32>
        %80 = arith.cmpi eq, %72, %79 : vector<8x128xi32>
        %cst_45 = arith.constant 0.000000e+00 : f32
        %81 = vector.shape_cast %65 : vector<8x1xf32> to vector<8x1xf32>
        %82 = vector.broadcast %81 : vector<8x1xf32> to vector<8x128xf32>
        %83 = vector.broadcast %cst_45 : f32 to vector<8x128xf32>
        %84 = arith.select %80, %82, %83 : vector<8x128xi1>, vector<8x128xf32>
        %85 = arith.addf %78, %84 : vector<8x128xf32>
        %c2_i32_46 = arith.constant 2 : i32
        %86 = vector.broadcast %c2_i32_46 : i32 to vector<8x128xi32>
        %87 = arith.cmpi eq, %72, %86 : vector<8x128xi32>
        %cst_47 = arith.constant 0.000000e+00 : f32
        %88 = vector.shape_cast %68 : vector<8x1xf32> to vector<8x1xf32>
        %89 = vector.broadcast %88 : vector<8x1xf32> to vector<8x128xf32>
        %90 = vector.broadcast %cst_47 : f32 to vector<8x128xf32>
        %91 = arith.select %87, %89, %90 : vector<8x128xi1>, vector<8x128xf32>
        %92 = arith.addf %85, %91 : vector<8x128xf32>
        %c3_i32 = arith.constant 3 : i32
        %93 = vector.broadcast %c3_i32 : i32 to vector<8x128xi32>
        %94 = arith.cmpi eq, %72, %93 : vector<8x128xi32>
        %cst_48 = arith.constant 0.000000e+00 : f32
        %95 = vector.shape_cast %71 : vector<8x1xf32> to vector<8x1xf32>
        %96 = vector.broadcast %95 : vector<8x1xf32> to vector<8x128xf32>
        %97 = vector.broadcast %cst_48 : f32 to vector<8x128xf32>
        %98 = arith.select %94, %96, %97 : vector<8x128xi1>, vector<8x128xf32>
        %99 = arith.addf %92, %98 : vector<8x128xf32>
        %c0_49 = arith.constant 0 : index
        %c0_50 = arith.constant 0 : index
        %100 = vector.load %arg12[%c0_49, %c0_50] : memref<8x128xf32, #tpu.memory_space<vmem>>, vector<8x128xf32>
        tpu.vector_store %arg12[%c0_49, %c0_50], %99 {strides = array<i32>} : memref<8x128xf32, #tpu.memory_space<vmem>>, vector<8x128xf32>,
      } else {
      }
    } else {
    }
    return
  }
  func.func @transform_0(%arg0: i32, %arg1: i32, %arg2: i32, %arg3: memref<8xi32, #tpu.memory_space<smem>>, %arg4: memref<8xi32, #tpu.memory_space<smem>>, %arg5: memref<8xi32, #tpu.memory_space<smem>>, %arg6: memref<7xi32, #tpu.memory_space<smem>>) -> (i32, i32) {
    %c1_i32 = arith.constant 1 : i32
    %0 = arith.minsi %arg1, %c1_i32 : i32
    %c2_i32 = arith.constant 2 : i32
    %1 = arith.cmpi slt, %arg1, %c2_i32 : i32
    %c2_i32_0 = arith.constant 2 : i32
    %2 = arith.minsi %arg2, %c2_i32_0 : i32
    %c2_i32_1 = arith.constant 2 : i32
    %3 = arith.select %1, %2, %c2_i32_1 : i32
    %c0_i32 = arith.constant 0 : i32
    return %0, %3 : i32, i32
  }
  func.func @transform_1(%arg0: i32, %arg1: i32, %arg2: i32, %arg3: memref<8xi32, #tpu.memory_space<smem>>, %arg4: memref<8xi32, #tpu.memory_space<smem>>, %arg5: memref<8xi32, #tpu.memory_space<smem>>, %arg6: memref<7xi32, #tpu.memory_space<smem>>) -> (i32, i32) {
    %c2_i32 = arith.constant 2 : i32
    %0 = arith.cmpi slt, %arg1, %c2_i32 : i32
    %c2_i32_0 = arith.constant 2 : i32
    %1 = arith.subi %arg1, %c2_i32_0 : i32
    %c0_i32 = arith.constant 0 : i32
    %2 = arith.select %0, %c0_i32, %1 : i32
    %c2_i32_1 = arith.constant 2 : i32
    %3 = arith.cmpi slt, %arg1, %c2_i32_1 : i32
    %c0_i32_2 = arith.constant 0 : i32
    %4 = arith.minsi %arg2, %c0_i32_2 : i32
    %c0_i32_3 = arith.constant 0 : i32
    %5 = arith.select %3, %c0_i32_3, %4 : i32
    %c0_i32_4 = arith.constant 0 : i32
    return %2, %5 : i32, i32
  }
  func.func @transform_2(%arg0: i32, %arg1: i32, %arg2: i32, %arg3: memref<8xi32, #tpu.memory_space<smem>>, %arg4: memref<8xi32, #tpu.memory_space<smem>>, %arg5: memref<8xi32, #tpu.memory_space<smem>>, %arg6: memref<7xi32, #tpu.memory_space<smem>>) -> (i32, i32) {
    %c0_i32 = arith.constant 0 : i32
    %c0_i32_0 = arith.constant 0 : i32
    %c0_i32_1 = arith.constant 0 : i32
    return %c0_i32, %c0_i32_0 : i32, i32
  }
  func.func @transform_3(%arg0: i32, %arg1: i32, %arg2: i32, %arg3: memref<8xi32, #tpu.memory_space<smem>>, %arg4: memref<8xi32, #tpu.memory_space<smem>>, %arg5: memref<8xi32, #tpu.memory_space<smem>>, %arg6: memref<7xi32, #tpu.memory_space<smem>>) -> (i32, i32) {
    %c0_i32 = arith.constant 0 : i32
    %c0_i32_0 = arith.constant 0 : i32
    %c0_i32_1 = arith.constant 0 : i32
    return %c0_i32, %c0_i32_0 : i32, i32
  }
  func.func @transform_4(%arg0: i32, %arg1: i32, %arg2: i32, %arg3: memref<8xi32, #tpu.memory_space<smem>>, %arg4: memref<8xi32, #tpu.memory_space<smem>>, %arg5: memref<8xi32, #tpu.memory_space<smem>>, %arg6: memref<7xi32, #tpu.memory_space<smem>>) -> (i32, i32) {
    %c0_i32 = arith.constant 0 : i32
    %c0_i32_0 = arith.constant 0 : i32
    %c0_i32_1 = arith.constant 0 : i32
    return %c0_i32, %c0_i32_0 : i32, i32
  }
  func.func @transform_5(%arg0: i32, %arg1: i32, %arg2: i32, %arg3: memref<8xi32, #tpu.memory_space<smem>>, %arg4: memref<8xi32, #tpu.memory_space<smem>>, %arg5: memref<8xi32, #tpu.memory_space<smem>>, %arg6: memref<7xi32, #tpu.memory_space<smem>>) -> (i32, i32) {
    %c0_i32 = arith.constant 0 : i32
    %c0_i32_0 = arith.constant 0 : i32
    %c0_i32_1 = arith.constant 0 : i32
    return %c0_i32, %c0_i32_0 : i32, i32
  }
}

</mosaic_0001>

<llo_original>
// kernel: tpu_custom_call.1
$region0: #{tpu_custom_call.1}
  #allocation0 [shape = 'u32[]', space=smem, size = 0x4, offset = 0x4, fixed_abs, tag = 'smem constant byte address 0x4 - core index']
  #allocation1 [shape = 'u32[144,128]{1,0:T(1,128)}', space=vmem, size = 0x12000, scoped, tag = 'internal scratch']
  %s0 = inlined_call_operand.hbm [shape: f32[8,128], index: 0, kind: input, shape index: {}]
  %s1 = inlined_call_operand.hbm [shape: f32[8,128], index: 1, kind: output, shape index: {}]
  %s2 = sld [smem:[#allocation0]]
  $region41: #{tpu_custom_call.1} parent=0
    _
  %s4 = ssub.s32 1, %s2
  %s5 = scalar_select 0, %s4, %s2
  $region1: #{tpu_custom_call.1} parent=0
    #allocation2 [shape = 'u8[4096]{0}', space=vmem, size = 0x1000, scoped, tag = 'input window, operand 0, single buffered']
    #allocation3 [shape = 's32[2]{0}', space=sflag, size = 0x8, scoped, tag = 'scoped memory for tpu_custom_call.1']
    #allocation4 [shape = 's32[2]{0}', space=sflag, size = 0x8, scoped, tag = 'scoped memory for tpu_custom_call.1']
    #allocation5 [shape = 'u8[4096]{0}', space=vmem, size = 0x1000, scoped, tag = 'output window, operand 0, single buffered']
    %6 = vsyncpa [#allocation3], 0
    %7 = vsyncpa [#allocation4], 0
    loop: start=0, step=1, limit=4
    $region2: #{tpu_custom_call.1} parent=1 // loop_pre_header
      _
    $region3: #{tpu_custom_call.1} parent=1 // loop_header
      %s9 = sphi 0, %s13
      %p10 = scmp.ge.s32.totalorder %s9, 4
      %s17 = sphi 0, %s17
      %s19 = sphi 0, %s17
      %s20 = sphi 0, %s19
      %s34 = sphi 0, %s20
      %s38 = sphi 0, %s38
      %s40 = sphi 0, %s38
      %s41 = sphi 0, %s40
      %s55 = sphi 0, %s41
    $region4: #{tpu_custom_call.1} parent=1 // loop_header_branch
      %12 = sbr.rel (%p10) target = $region8
    $region5: #{tpu_custom_call.1} parent=1 // loop_body
      %s14 = ssub.s32 %s9, 1
      %s15 = ssub.s32 %s9, 2
      %s16 = sadd.s32 %s9, 1
      %s18 = sadd.s32 %s17, 1
      %p21 = scmp.eq.s32.totalorder %s9, 1
      %p22 = scmp.ne.s32.totalorder %s17, %s19
      %p23 = scmp.eq.s32.totalorder %s9, 0
      %p24 = por %p22, %p23
      %p25 = scmp.ne.s32.totalorder %s17, %s19
      %p26 = scmp.eq.s32.totalorder %s14, 1
      %p27 = por %p25, %p26
      %p28 = scmp.ne.s32.totalorder %s19, %s20
      %p29 = scmp.eq.s32.totalorder %s14, 0
      %p30 = por %p28, %p29
      %p31 = scmp.ne.s32.totalorder %s19, %s20
      %p32 = scmp.eq.s32.totalorder %s15, 1
      %p33 = por %p31, %p32
      %p35 = scmp.ne.s32.totalorder %s20, %s34
      %p36 = scmp.eq.s32.totalorder %s15, 0
      %p37 = por %p35, %p36
      %s39 = sadd.s32 %s38, 1
      %p42 = scmp.eq.s32.totalorder %s9, 1
      %p43 = scmp.ne.s32.totalorder %s38, %s40
      %p44 = scmp.eq.s32.totalorder %s9, 0
      %p45 = por %p43, %p44
      %p46 = scmp.ne.s32.totalorder %s38, %s40
      %p47 = scmp.eq.s32.totalorder %s14, 1
      %p48 = por %p46, %p47
      %p49 = scmp.ne.s32.totalorder %s40, %s41
      %p50 = scmp.eq.s32.totalorder %s14, 0
      %p51 = por %p49, %p50
      %p52 = scmp.ne.s32.totalorder %s40, %s41
      %p53 = scmp.eq.s32.totalorder %s15, 1
      %p54 = por %p52, %p53
      %p56 = scmp.ne.s32.totalorder %s41, %s55
      %p57 = scmp.eq.s32.totalorder %s15, 0
      %p58 = por %p56, %p57
      %p59 = scmp.le.s32.totalorder 1, %s9
      %p60 = scmp.lt.s32.totalorder %s9, 3
      %p61 = pnand %p59, %p60
      %p62 = pneg %p61
      // Predicated region
      $region9: #{tpu_custom_call.1} parent=5 // pred_check
        _
      $region10: #{tpu_custom_call.1} parent=5 // pred_check_branch
        %64 = sbr.rel (%p61) target = $region12
      $region11: #{tpu_custom_call.1} parent=5 // pred_region
        %s65 = ssub.s32 %s9, 1
        // Predicated region
        $region13: #{tpu_custom_call.1} parent=11 // pred_check
          %p66 = pneg %p30
        $region14: #{tpu_custom_call.1} parent=11 // pred_check_branch
          %68 = sbr.rel (%p66) target = $region16
        $region15: #{tpu_custom_call.1} parent=11 // pred_region
          %s70 = ssub.s32 128, 128
          %71 = vsyncadd [#allocation3], %s70
          %s73 = sshll.u32 [#allocation2], 4
          %s74 = int_to_ptr.vmem [resolvable:$true] %s73
          %76 = dma.hbm_to_vmem [thread:$0]  %s0, 128, %s74, [#allocation3]
        $region16: #{tpu_custom_call.1} parent=11 // pred_fallthru
          _
      $region12: #{tpu_custom_call.1} parent=5 // pred_fallthru
        _
      %p77 = scmp.lt.s32.totalorder %s9, 2
      // Predicated region
      $region17: #{tpu_custom_call.1} parent=5 // pred_check
        %p78 = pneg %p77
      $region18: #{tpu_custom_call.1} parent=5 // pred_check_branch
        %80 = sbr.rel (%p78) target = $region20
      $region19: #{tpu_custom_call.1} parent=5 // pred_region
        _
      $region20: #{tpu_custom_call.1} parent=5 // pred_fallthru
        _
      %p81 = scmp.le.s32.totalorder 1, %s9
      %p82 = scmp.lt.s32.totalorder %s9, 3
      %p83 = pnand %p81, %p82
      %p84 = pneg %p83
      // Predicated region
      $region21: #{tpu_custom_call.1} parent=5 // pred_check
        _
      $region22: #{tpu_custom_call.1} parent=5 // pred_check_branch
        %86 = sbr.rel (%p83) target = $region24
      $region23: #{tpu_custom_call.1} parent=5 // pred_region
        %s87 = ssub.s32 %s9, 1
        // Predicated region
        $region25: #{tpu_custom_call.1} parent=23 // pred_check
          %p88 = pneg %p30
        $region26: #{tpu_custom_call.1} parent=23 // pred_check_branch
          %90 = sbr.rel (%p88) target = $region28
        $region27: #{tpu_custom_call.1} parent=23 // pred_region
          %91 = dma.done [#allocation3], 128
        $region28: #{tpu_custom_call.1} parent=23 // pred_fallthru
          _
        %p92 = pneg %p30
        %p93 = pneg %p27
        %p94 = pneg %p51
        %p95 = pneg %p48
        %v96 = vld [vmem:[#allocation2] sm:$0xff]
        %v97 = vadd.f32 %v96, 1.0
        %98 = vst [vmem:[#allocation5] sm:$0xff] %v97
        // Predicated region
        $region29: #{tpu_custom_call.1} parent=23 // pred_check
          %p99 = pneg %p48
        $region30: #{tpu_custom_call.1} parent=23 // pred_check_branch
          %101 = sbr.rel (%p99) target = $region32
        $region31: #{tpu_custom_call.1} parent=23 // pred_region
          %s103 = ssub.s32 128, 128
          %104 = vsyncadd [#allocation4], %s103
          %s106 = sshll.u32 [#allocation5], 4
          %s107 = int_to_ptr.vmem [resolvable:$true] %s106
          %109 = dma.vmem_to_hbm [thread:$0]  %s107, 128, %s1, [#allocation4]
        $region32: #{tpu_custom_call.1} parent=23 // pred_fallthru
          _
        // Predicated region
        $region33: #{tpu_custom_call.1} parent=23 // pred_check
          %p110 = pneg %p48
        $region34: #{tpu_custom_call.1} parent=23 // pred_check_branch
          %112 = sbr.rel (%p110) target = $region36
        $region35: #{tpu_custom_call.1} parent=23 // pred_region
          %113 = dma.done [#allocation4], 128
        $region36: #{tpu_custom_call.1} parent=23 // pred_fallthru
          _
      $region24: #{tpu_custom_call.1} parent=5 // pred_fallthru
        _
      %p114 = scmp.le.s32.totalorder 2, %s9
      // Predicated region
      $region37: #{tpu_custom_call.1} parent=5 // pred_check
        %p115 = pneg %p114
      $region38: #{tpu_custom_call.1} parent=5 // pred_check_branch
        %117 = sbr.rel (%p115) target = $region40
      $region39: #{tpu_custom_call.1} parent=5 // pred_region
        %s118 = ssub.s32 %s9, 2
      $region40: #{tpu_custom_call.1} parent=5 // pred_fallthru
        _
    $region6: #{tpu_custom_call.1} parent=1 // loop_footer
      %s13 = sadd.s32 1, %s9
    $region7: #{tpu_custom_call.1} parent=1 // loop_footer_branch
      %8 = sbr.rel target = $region3
    $region8: #{tpu_custom_call.1} parent=1 // loop_exit
      _
    %119 = vsyncpa [#allocation3], 1
    %s120 = scalar_lea.sflag [#allocation3], 1
    %121 = vsyncpa %s120, 1
    %122 = vsyncpa [#allocation4], 1
    %s123 = scalar_lea.sflag [#allocation4], 1
    %124 = vsyncpa %s123, 1

// kernel: stargcn_forward.1
$region0: #{stargcn_forward.1}
  #allocation0 [shape = 'u32[]', space=smem, size = 0x4, offset = 0x4, fixed_abs, tag = 'smem constant byte address 0x4 - core index']
  #allocation1 [shape = 'u32[144,128]{1,0:T(1,128)}', space=vmem, size = 0x12000, scoped, tag = 'internal scratch']
  #allocation2 [shape = 'f32[64,128]{1,0:T(8,128)}', space=vmem, size = 0x8000, scoped, tag = 'scratch operand']
  #allocation3 [shape = 'f32[512,128]{1,0:T(8,128)}', space=vmem, size = 0x40000, scoped, tag = 'scratch operand']
  #allocation4 [shape = 'f32[24,128]{1,0:T(8,128)}', space=vmem, size = 0x3000, scoped, tag = 'scratch operand']
  #allocation5 [shape = 'f32[24,128]{1,0:T(8,128)}', space=vmem, size = 0x3000, scoped, tag = 'scratch operand']
  #allocation6 [shape = 's32[1]{0}', space=sflag, size = 0x4, scoped, tag = 'scoped memory for stargcn_forward.1']
  #allocation7 [shape = 'u8[512]{0}', space=smem, size = 0x200, scoped, tag = 'prefetched SMEM operand 0']
  #allocation8 [shape = 'u8[512]{0}', space=smem, size = 0x200, scoped, tag = 'prefetched SMEM operand 1']
  #allocation9 [shape = 'u8[512]{0}', space=smem, size = 0x200, scoped, tag = 'prefetched SMEM operand 2']
  #allocation10 [shape = 'u8[512]{0}', space=smem, size = 0x200, scoped, tag = 'prefetched SMEM operand 3']
  %s0 = inlined_call_operand.vmem [shape: s32[8], index: 0, kind: input, shape index: {}]
  %s1 = inlined_call_operand.vmem [shape: s32[8], index: 1, kind: input, shape index: {}]
  %s2 = inlined_call_operand.vmem [shape: s32[8], index: 2, kind: input, shape index: {}]
  %s3 = inlined_call_operand.vmem [shape: s32[7], index: 3, kind: input, shape index: {}]
  %s4 = inlined_call_operand.hbm [shape: f32[128,384], index: 4, kind: input, shape index: {}]
  %s5 = inlined_call_operand.hbm [shape: f32[320,128], index: 5, kind: input, shape index: {}]
  %s6 = inlined_call_operand.hbm [shape: f32[512,128], index: 6, kind: input, shape index: {}]
  %s7 = inlined_call_operand.hbm [shape: f32[128,128], index: 7, kind: input, shape index: {}]
  %s8 = inlined_call_operand.hbm [shape: f32[128,128], index: 8, kind: input, shape index: {}]
  %s9 = inlined_call_operand.vmem [shape: f32[8,128], index: 9, kind: output, shape index: {}]
  %s10 = sld [smem:[#allocation0]]
  $region321: #{stargcn_forward.1} parent=0
    _
  %s12 = ssub.s32 1, %s10
  %s13 = scalar_select 0, %s12, %s10
  %s14 = sshll.u32 %s0, 4
  %s15 = int_to_ptr.vmem [resolvable:$true] %s14
  %17 = dma.vmem_to_smem %s15, 16, [#allocation7], [#allocation6]
  %s18 = sshll.u32 %s1, 4
  %s19 = int_to_ptr.vmem [resolvable:$true] %s18
  %21 = dma.vmem_to_smem %s19, 16, [#allocation8], [#allocation6]
  %s22 = sshll.u32 %s2, 4
  %s23 = int_to_ptr.vmem [resolvable:$true] %s22
  %25 = dma.vmem_to_smem %s23, 16, [#allocation9], [#allocation6]
  %s26 = sshll.u32 %s3, 4
  %s27 = int_to_ptr.vmem [resolvable:$true] %s26
  %29 = dma.vmem_to_smem %s27, 16, [#allocation10], [#allocation6]
  %30 = dma.done [#allocation6], 64
  %31 = sfence
  $region1: #{stargcn_forward.1} parent=0
    #allocation11 [shape = 'u8[65536]{0}', space=vmem, size = 0x10000, scoped, tag = 'input window, operand 4']
    #allocation12 [shape = 's32[2]{0}', space=sflag, size = 0x8, scoped, tag = 'scoped memory for stargcn_forward.1']
    #allocation13 [shape = 'u8[65536]{0}', space=vmem, size = 0x10000, scoped, tag = 'input window, operand 5']
    #allocation14 [shape = 's32[2]{0}', space=sflag, size = 0x8, scoped, tag = 'scoped memory for stargcn_forward.1']
    #allocation15 [shape = 'u8[262144]{0}', space=vmem, size = 0x40000, scoped, tag = 'input window, operand 6, single buffered']
    #allocation16 [shape = 'u8[65536]{0}', space=vmem, size = 0x10000, scoped, tag = 'input window, operand 7, single buffered']
    #allocation17 [shape = 's32[1]{0}', space=sflag, size = 0x4, scoped, tag = 'scoped memory for stargcn_forward.1']
    #allocation18 [shape = 'u8[65536]{0}', space=vmem, size = 0x10000, scoped, tag = 'input window, operand 8, single buffered']
    %32 = vsyncpa [#allocation12], 0
    %s33 = scalar_lea.sflag [#allocation12], 1
    %34 = vsyncpa %s33, 0
    %35 = vsyncpa [#allocation14], 0
    %s36 = scalar_lea.sflag [#allocation14], 1
    %37 = vsyncpa %s36, 0
    %38 = vsyncpa [#allocation17], 0
    loop: start=0, step=1, limit=44
    $region2: #{stargcn_forward.1} parent=1 // loop_pre_header
      _
    $region3: #{stargcn_forward.1} parent=1 // loop_header
      %s40 = sphi 0, %s44
      %p41 = scmp.ge.s32.totalorder %s40, 44
      %s47 = sphi 0, %s66
      %s48 = sphi 0, %s62
      %s49 = sphi 0, %s58
      %s50 = sphi 0, %s47
      %s51 = sphi 0, %s48
      %s52 = sphi 0, %s49
      %s53 = sphi 0, %s50
      %s54 = sphi 0, %s51
      %s55 = sphi 0, %s52
      %s83 = sphi 0, %s85
      %s86 = sphi 0, %s83
      %s87 = sphi 0, %s86
      %s103 = sphi 0, %s87
      %s123 = sphi 0, %s125
      %s126 = sphi 0, %s123
      %s127 = sphi 0, %s126
      %s143 = sphi 0, %s127
      %s147 = sphi 0, %s147
      %s149 = sphi 0, %s147
      %s150 = sphi 0, %s149
      %s164 = sphi 0, %s150
      %s168 = sphi 0, %s168
      %s170 = sphi 0, %s168
      %s171 = sphi 0, %s170
      %s185 = sphi 0, %s171
      %s189 = sphi 0, %s189
      %s191 = sphi 0, %s189
      %s192 = sphi 0, %s191
      %s206 = sphi 0, %s192
      %s210 = sphi 0, %s210
      %s212 = sphi 0, %s210
      %s213 = sphi 0, %s212
      %s227 = sphi 0, %s213
    $region4: #{stargcn_forward.1} parent=1 // loop_header_branch
      %43 = sbr.rel (%p41) target = $region8
    $region5: #{stargcn_forward.1} parent=1 // loop_body
      %s45 = ssub.s32 %s40, 1
      %s46 = ssub.s32 %s40, 2
      %s56 = sadd.s32 1, %s49
      %p57 = scmp.ge.s32.totalorder %s56, 3
      %s58 = scalar_select %p57, 0, %s56
      %s59 = sadd.s32 1, %s48
      %s60 = scalar_select %p57, %s59, %s48
      %p61 = scmp.ge.s32.totalorder %s60, 7
      %s62 = scalar_select %p61, 0, %s60
      %s63 = sadd.s32 1, %s47
      %s64 = scalar_select %p61, %s63, %s47
      %p65 = scmp.ge.s32.totalorder %s64, 2
      %s66 = scalar_select %p65, 0, %s64
      %p67 = scmp.lt.s32.totalorder %s48, 1
      %s68 = scalar_select %p67, %s48, 1
      %p69 = scmp.lt.s32.totalorder %s48, 2
      %p70 = scmp.lt.s32.totalorder %s49, 2
      %s71 = scalar_select %p70, %s49, 2
      %s72 = scalar_select %p69, %s71, 2
      %p73 = scmp.lt.s32.totalorder %s62, 1
      %s74 = scalar_select %p73, %s62, 1
      %p75 = scmp.lt.s32.totalorder %s62, 2
      %p76 = scmp.lt.s32.totalorder %s58, 2
      %s77 = scalar_select %p76, %s58, 2
      %s78 = scalar_select %p75, %s77, 2
      %s79 = ssub.s32 %s68, %s74
      %s80 = ssub.s32 %s72, %s78
      %s81 = sor.u32 %s79, %s80
      %p82 = scmp.eq.s32.totalorder %s81, 0
      %s84 = sadd.s32 %s83, 1
      %s85 = scalar_select %p82, %s83, %s84
      %p88 = pneg %p82
      %p89 = scmp.eq.s32.totalorder %s40, 41
      %p90 = por %p88, %p89
      %p91 = scmp.ne.s32.totalorder %s83, %s86
      %p92 = scmp.eq.s32.totalorder %s40, 0
      %p93 = por %p91, %p92
      %p94 = scmp.ne.s32.totalorder %s83, %s86
      %p95 = scmp.eq.s32.totalorder %s45, 41
      %p96 = por %p94, %p95
      %p97 = scmp.ne.s32.totalorder %s86, %s87
      %p98 = scmp.eq.s32.totalorder %s45, 0
      %p99 = por %p97, %p98
      %p100 = scmp.ne.s32.totalorder %s86, %s87
      %p101 = scmp.eq.s32.totalorder %s46, 41
      %p102 = por %p100, %p101
      %p104 = scmp.ne.s32.totalorder %s87, %s103
      %p105 = scmp.eq.s32.totalorder %s46, 0
      %p106 = por %p104, %p105
      %p107 = scmp.lt.s32.totalorder %s48, 2
      %s108 = ssub.s32 %s48, 2
      %s109 = scalar_select %p107, 0, %s108
      %p110 = scmp.lt.s32.totalorder %s49, 0
      %s111 = scalar_select %p110, %s49, 0
      %s112 = scalar_select %p107, 0, %s111
      %p113 = scmp.lt.s32.totalorder %s62, 2
      %s114 = ssub.s32 %s62, 2
      %s115 = scalar_select %p113, 0, %s114
      %p116 = scmp.lt.s32.totalorder %s58, 0
      %s117 = scalar_select %p116, %s58, 0
      %s118 = scalar_select %p113, 0, %s117
      %s119 = ssub.s32 %s109, %s115
      %s120 = ssub.s32 %s112, %s118
      %s121 = sor.u32 %s119, %s120
      %p122 = scmp.eq.s32.totalorder %s121, 0
      %s124 = sadd.s32 %s123, 1
      %s125 = scalar_select %p122, %s123, %s124
      %p128 = pneg %p122
      %p129 = scmp.eq.s32.totalorder %s40, 41
      %p130 = por %p128, %p129
      %p131 = scmp.ne.s32.totalorder %s123, %s126
      %p132 = scmp.eq.s32.totalorder %s40, 0
      %p133 = por %p131, %p132
      %p134 = scmp.ne.s32.totalorder %s123, %s126
      %p135 = scmp.eq.s32.totalorder %s45, 41
      %p136 = por %p134, %p135
      %p137 = scmp.ne.s32.totalorder %s126, %s127
      %p138 = scmp.eq.s32.totalorder %s45, 0
      %p139 = por %p137, %p138
      %p140 = scmp.ne.s32.totalorder %s126, %s127
      %p141 = scmp.eq.s32.totalorder %s46, 41
      %p142 = por %p140, %p141
      %p144 = scmp.ne.s32.totalorder %s127, %s143
      %p145 = scmp.eq.s32.totalorder %s46, 0
      %p146 = por %p144, %p145
      %s148 = sadd.s32 %s147, 1
      %p151 = scmp.eq.s32.totalorder %s40, 41
      %p152 = scmp.ne.s32.totalorder %s147, %s149
      %p153 = scmp.eq.s32.totalorder %s40, 0
      %p154 = por %p152, %p153
      %p155 = scmp.ne.s32.totalorder %s147, %s149
      %p156 = scmp.eq.s32.totalorder %s45, 41
      %p157 = por %p155, %p156
      %p158 = scmp.ne.s32.totalorder %s149, %s150
      %p159 = scmp.eq.s32.totalorder %s45, 0
      %p160 = por %p158, %p159
      %p161 = scmp.ne.s32.totalorder %s149, %s150
      %p162 = scmp.eq.s32.totalorder %s46, 41
      %p163 = por %p161, %p162
      %p165 = scmp.ne.s32.totalorder %s150, %s164
      %p166 = scmp.eq.s32.totalorder %s46, 0
      %p167 = por %p165, %p166
      %s169 = sadd.s32 %s168, 1
      %p172 = scmp.eq.s32.totalorder %s40, 41
      %p173 = scmp.ne.s32.totalorder %s168, %s170
      %p174 = scmp.eq.s32.totalorder %s40, 0
      %p175 = por %p173, %p174
      %p176 = scmp.ne.s32.totalorder %s168, %s170
      %p177 = scmp.eq.s32.totalorder %s45, 41
      %p178 = por %p176, %p177
      %p179 = scmp.ne.s32.totalorder %s170, %s171
      %p180 = scmp.eq.s32.totalorder %s45, 0
      %p181 = por %p179, %p180
      %p182 = scmp.ne.s32.totalorder %s170, %s171
      %p183 = scmp.eq.s32.totalorder %s46, 41
      %p184 = por %p182, %p183
      %p186 = scmp.ne.s32.totalorder %s171, %s185
      %p187 = scmp.eq.s32.totalorder %s46, 0
      %p188 = por %p186, %p187
      %s190 = sadd.s32 %s189, 1
      %p193 = scmp.eq.s32.totalorder %s40, 41
      %p194 = scmp.ne.s32.totalorder %s189, %s191
      %p195 = scmp.eq.s32.totalorder %s40, 0
      %p196 = por %p194, %p195
      %p197 = scmp.ne.s32.totalorder %s189, %s191
      %p198 = scmp.eq.s32.totalorder %s45, 41
      %p199 = por %p197, %p198
      %p200 = scmp.ne.s32.totalorder %s191, %s192
      %p201 = scmp.eq.s32.totalorder %s45, 0
      %p202 = por %p200, %p201
      %p203 = scmp.ne.s32.totalorder %s191, %s192
      %p204 = scmp.eq.s32.totalorder %s46, 41
      %p205 = por %p203, %p204
      %p207 = scmp.ne.s32.totalorder %s192, %s206
      %p208 = scmp.eq.s32.totalorder %s46, 0
      %p209 = por %p207, %p208
      %s211 = sadd.s32 %s210, 1
      %p214 = scmp.eq.s32.totalorder %s40, 41
      %p215 = scmp.ne.s32.totalorder %s210, %s212
      %p216 = scmp.eq.s32.totalorder %s40, 0
      %p217 = por %p215, %p216
      %p218 = scmp.ne.s32.totalorder %s210, %s212
      %p219 = scmp.eq.s32.totalorder %s45, 41
      %p220 = por %p218, %p219
      %p221 = scmp.ne.s32.totalorder %s212, %s213
      %p222 = scmp.eq.s32.totalorder %s45, 0
      %p223 = por %p221, %p222
      %p224 = scmp.ne.s32.totalorder %s212, %s213
      %p225 = scmp.eq.s32.totalorder %s46, 41
      %p226 = por %p224, %p225
      %p228 = scmp.ne.s32.totalorder %s213, %s227
      %p229 = scmp.eq.s32.totalorder %s46, 0
      %p230 = por %p228, %p229
      %p231 = scmp.le.s32.totalorder 1, %s40
      %p232 = scmp.lt.s32.totalorder %s40, 43
      %p233 = pnand %p231, %p232
      %p234 = pneg %p233
      // Predicated region
      $region9: #{stargcn_forward.1} parent=5 // pred_check
        _
      $region10: #{stargcn_forward.1} parent=5 // pred_check_branch
        %236 = sbr.rel (%p233) target = $region12
      $region11: #{stargcn_forward.1} parent=5 // pred_region
        %s237 = ssub.s32 %s40, 1
        // Predicated region
        $region13: #{stargcn_forward.1} parent=11 // pred_check
          %p238 = pneg %p160
        $region14: #{stargcn_forward.1} parent=11 // pred_check_branch
          %240 = sbr.rel (%p238) target = $region16
        $region15: #{stargcn_forward.1} parent=11 // pred_region
          %s242 = ssub.s32 8192, 8192
          %243 = vsyncadd [#allocation14], %s242
          %s244 = sshll.u32 [#allocation15], 4
          %s245 = int_to_ptr.vmem [resolvable:$true] %s244
          %250 = dma.hbm_to_vmem [thread:$0]  %s6, 8192, %s245, [#allocation14], 128, 128, 8
        $region16: #{stargcn_forward.1} parent=11 // pred_fallthru
          _
        // Predicated region
        $region17: #{stargcn_forward.1} parent=11 // pred_check
          %p251 = pneg %p181
        $region18: #{stargcn_forward.1} parent=11 // pred_check_branch
          %253 = sbr.rel (%p251) target = $region20
        $region19: #{stargcn_forward.1} parent=11 // pred_region
          %s255 = ssub.s32 2048, 2048
          %256 = vsyncadd [#allocation17], %s255
          %s257 = sshll.u32 [#allocation16], 4
          %s258 = int_to_ptr.vmem [resolvable:$true] %s257
          %263 = dma.hbm_to_vmem [thread:$0]  %s7, 2048, %s258, [#allocation17], 128, 128, 8
        $region20: #{stargcn_forward.1} parent=11 // pred_fallthru
          _
        // Predicated region
        $region21: #{stargcn_forward.1} parent=11 // pred_check
          %p264 = pneg %p202
        $region22: #{stargcn_forward.1} parent=11 // pred_check_branch
          %266 = sbr.rel (%p264) target = $region24
        $region23: #{stargcn_forward.1} parent=11 // pred_region
          %s268 = ssub.s32 2048, 2048
          %269 = vsyncadd [#allocation17], %s268
          %s270 = sshll.u32 [#allocation18], 4
          %s271 = int_to_ptr.vmem [resolvable:$true] %s270
          %276 = dma.hbm_to_vmem [thread:$0]  %s8, 2048, %s271, [#allocation17], 128, 128, 8
        $region24: #{stargcn_forward.1} parent=11 // pred_fallthru
          _
      $region12: #{stargcn_forward.1} parent=5 // pred_fallthru
        _
      %p277 = scmp.lt.s32.totalorder %s40, 42
      // Predicated region
      $region25: #{stargcn_forward.1} parent=5 // pred_check
        %p278 = pneg %p277
      $region26: #{stargcn_forward.1} parent=5 // pred_check_branch
        %280 = sbr.rel (%p278) target = $region28
      $region27: #{stargcn_forward.1} parent=5 // pred_region
        // Predicated region
        $region29: #{stargcn_forward.1} parent=27 // pred_check
          %p281 = pneg %p93
        $region30: #{stargcn_forward.1} parent=27 // pred_check_branch
          %283 = sbr.rel (%p281) target = $region32
        $region31: #{stargcn_forward.1} parent=27 // pred_region
          %s284 = sand.u32 %s83, 1
          %s285 = scalar_lea.sflag [#allocation12], %s284
          %s286 = sand.u32 %s83, 1
          %s287 = smul.addr %s286, 64
          %s288 = scalar_lea.vmem [#allocation11], %s287
          %p289 = scmp.lt.s32.totalorder %s48, 1
          %s290 = scalar_select %p289, %s48, 1
          %p291 = scmp.lt.s32.totalorder %s48, 2
          %p292 = scmp.lt.s32.totalorder %s49, 2
          %s293 = scalar_select %p292, %s49, 2
          %s294 = scalar_select %p291, %s293, 2
          %s295 = smul.u32 8, %s290
          %s297 = ssub.s32 1024, 1024
          %298 = vsyncadd %s285, %s297
          %s299 = smul.addr %s295, 3
          %s300 = sadd.s32 %s294, %s299
          %s301 = smul.addr %s300, 128
          %s302 = scalar_lea.hbm %s4, %s301
          %s303 = sshll.u32 %s288, 4
          %s304 = int_to_ptr.vmem [resolvable:$true] %s303
          %309 = dma.hbm_to_vmem [thread:$0]  %s302, 1024, %s304, %s285, 384, 128, 8
        $region32: #{stargcn_forward.1} parent=27 // pred_fallthru
          _
        // Predicated region
        $region33: #{stargcn_forward.1} parent=27 // pred_check
          %p310 = pneg %p133
        $region34: #{stargcn_forward.1} parent=27 // pred_check_branch
          %312 = sbr.rel (%p310) target = $region36
        $region35: #{stargcn_forward.1} parent=27 // pred_region
          %s313 = sand.u32 %s40, 1
          %s314 = scalar_lea.sflag [#allocation14], %s313
          %s315 = sand.u32 %s123, 1
          %s316 = smul.addr %s315, 64
          %s317 = scalar_lea.vmem [#allocation13], %s316
          %p318 = scmp.lt.s32.totalorder %s48, 2
          %s319 = ssub.s32 %s48, 2
          %s320 = scalar_select %p318, 0, %s319
          %p321 = scmp.lt.s32.totalorder %s49, 0
          %s322 = scalar_select %p321, %s49, 0
          %s323 = scalar_select %p318, 0, %s322
          %s324 = smul.u32 8, %s320
          %s326 = ssub.s32 1024, 1024
          %327 = vsyncadd %s314, %s326
          %s328 = sadd.s32 %s323, %s324
          %s329 = smul.addr %s328, 128
          %s330 = scalar_lea.hbm %s5, %s329
          %s331 = sshll.u32 %s317, 4
          %s332 = int_to_ptr.vmem [resolvable:$true] %s331
          %337 = dma.hbm_to_vmem [thread:$0]  %s330, 1024, %s332, %s314, 128, 128, 8
        $region36: #{stargcn_forward.1} parent=27 // pred_fallthru
          _
      $region28: #{stargcn_forward.1} parent=5 // pred_fallthru
        _
      %p338 = scmp.le.s32.totalorder 1, %s40
      %p339 = scmp.lt.s32.totalorder %s40, 43
      %p340 = pnand %p338, %p339
      %p341 = pneg %p340
      // Predicated region
      $region37: #{stargcn_forward.1} parent=5 // pred_check
        _
      $region38: #{stargcn_forward.1} parent=5 // pred_check_branch
        %343 = sbr.rel (%p340) target = $region40
      $region39: #{stargcn_forward.1} parent=5 // pred_region
        %s344 = ssub.s32 %s40, 1
        %s345 = sand.u32 %s86, 1
        %s346 = scalar_lea.sflag [#allocation12], %s345
        %s347 = sand.u32 %s86, 1
        %s348 = smul.addr %s347, 64
        %s349 = scalar_lea.vmem [#allocation11], %s348
        // Predicated region
        $region41: #{stargcn_forward.1} parent=39 // pred_check
          %p350 = pneg %p99
        $region42: #{stargcn_forward.1} parent=39 // pred_check_branch
          %352 = sbr.rel (%p350) target = $region44
        $region43: #{stargcn_forward.1} parent=39 // pred_region
          %353 = dma.done %s346, 1024
        $region44: #{stargcn_forward.1} parent=39 // pred_fallthru
          _
        %s354 = sand.u32 %s45, 1
        %s355 = scalar_lea.sflag [#allocation14], %s354
        %s356 = sand.u32 %s126, 1
        %s357 = smul.addr %s356, 64
        %s358 = scalar_lea.vmem [#allocation13], %s357
        // Predicated region
        $region45: #{stargcn_forward.1} parent=39 // pred_check
          %p359 = pneg %p139
        $region46: #{stargcn_forward.1} parent=39 // pred_check_branch
          %361 = sbr.rel (%p359) target = $region48
        $region47: #{stargcn_forward.1} parent=39 // pred_region
          %362 = dma.done %s355, 1024
        $region48: #{stargcn_forward.1} parent=39 // pred_fallthru
          _
        // Predicated region
        $region49: #{stargcn_forward.1} parent=39 // pred_check
          %p363 = pneg %p160
        $region50: #{stargcn_forward.1} parent=39 // pred_check_branch
          %365 = sbr.rel (%p363) target = $region52
        $region51: #{stargcn_forward.1} parent=39 // pred_region
          %366 = dma.done [#allocation14], 8192
        $region52: #{stargcn_forward.1} parent=39 // pred_fallthru
          _
        // Predicated region
        $region53: #{stargcn_forward.1} parent=39 // pred_check
          %p367 = pneg %p181
        $region54: #{stargcn_forward.1} parent=39 // pred_check_branch
          %369 = sbr.rel (%p367) target = $region56
        $region55: #{stargcn_forward.1} parent=39 // pred_region
          %370 = dma.done [#allocation17], 2048
        $region56: #{stargcn_forward.1} parent=39 // pred_fallthru
          _
        // Predicated region
        $region57: #{stargcn_forward.1} parent=39 // pred_check
          %p371 = pneg %p202
        $region58: #{stargcn_forward.1} parent=39 // pred_check_branch
          %373 = sbr.rel (%p371) target = $region60
        $region59: #{stargcn_forward.1} parent=39 // pred_region
          %374 = dma.done [#allocation17], 2048
        $region60: #{stargcn_forward.1} parent=39 // pred_fallthru
          _
        %s375 = sand.u32 %s86, 1
        %s376 = scalar_lea.sflag [#allocation12], %s375
        %s377 = sand.u32 %s86, 1
        %s378 = smul.addr %s377, 64
        %s379 = scalar_lea.vmem [#allocation11], %s378
        %p380 = pneg %p99
        %p381 = pneg %p96
        %s382 = sand.u32 %s45, 1
        %s383 = scalar_lea.sflag [#allocation14], %s382
        %s384 = sand.u32 %s126, 1
        %s385 = smul.addr %s384, 64
        %s386 = scalar_lea.vmem [#allocation13], %s385
        %p387 = pneg %p139
        %p388 = pneg %p136
        %p389 = pneg %p160
        %p390 = pneg %p157
        %p391 = pneg %p181
        %p392 = pneg %p178
        %p393 = pneg %p202
        %p394 = pneg %p199
        %p395 = pneg %p223
        %p396 = pneg %p220
        %p397 = scmp.lt.s32.totalorder %s51, 1
        %s398 = scalar_select %p397, %s51, 1
        %p399 = scmp.lt.s32.totalorder %s51, 2
        %p400 = scmp.lt.s32.totalorder %s52, 2
        %s401 = scalar_select %p400, %s52, 2
        %s402 = scalar_select %p399, %s401, 2
        %s403 = smul.u32 8, %s398
        %p404 = scmp.lt.s32.totalorder %s51, 2
        %s405 = ssub.s32 %s51, 2
        %s406 = scalar_select %p404, 0, %s405
        %p407 = scmp.lt.s32.totalorder %s52, 0
        %s408 = scalar_select %p407, %s52, 0
        %s409 = scalar_select %p404, 0, %s408
        %s410 = smul.u32 8, %s406
        %p411 = scmp.lt.s32.totalorder %s51, 2
        %p412 = scmp.eq.s32.totalorder %s50, 0
        %p413 = scmp.eq.s32.totalorder %s51, 0
        %p414 = pnand %p412, %p413
        %p415 = pneg %p414
        %p416 = scmp.eq.s32.totalorder %s52, 0
        %p417 = pnand %p415, %p416
        %p418 = pneg %p417
        // Predicated region
        $region61: #{stargcn_forward.1} parent=39 // pred_check
          _
        $region62: #{stargcn_forward.1} parent=39 // pred_check_branch
          %420 = sbr.rel (%p417) target = $region64
        $region63: #{stargcn_forward.1} parent=39 // pred_region
          %421 = vst [vmem:[#allocation3 + $0x1c0] sm:$0xff] 0.0
          %422 = vst [vmem:[#allocation3 + $0x1c8] sm:$0xff] 0.0
          %423 = vst [vmem:[#allocation3 + $0x1d0] sm:$0xff] 0.0
          %424 = vst [vmem:[#allocation3 + $0x1d8] sm:$0xff] 0.0
          %425 = vst [vmem:[#allocation3 + $0x1e0] sm:$0xff] 0.0
          %426 = vst [vmem:[#allocation3 + $0x1e8] sm:$0xff] 0.0
          %427 = vst [vmem:[#allocation3 + $0x1f0] sm:$0xff] 0.0
          %428 = vst [vmem:[#allocation3 + $0x1f8] sm:$0xff] 0.0
          %429 = vst [vmem:[#allocation4] sm:$0xff] 0.0
          %430 = vst [vmem:[#allocation4 + $0x8] sm:$0xff] 0.0
          %431 = vst [vmem:[#allocation4 + $0x10] sm:$0xff] 0.0
          %432 = vst [vmem:[#allocation5] sm:$0xff] 0.0
          %433 = vst [vmem:[#allocation5 + $0x8] sm:$0xff] 0.0
          %434 = vst [vmem:[#allocation5 + $0x10] sm:$0xff] 0.0
        $region64: #{stargcn_forward.1} parent=39 // pred_fallthru
          _
        // Predicated region
        $region65: #{stargcn_forward.1} parent=39 // pred_check
          %p435 = pneg %p416
        $region66: #{stargcn_forward.1} parent=39 // pred_check_branch
          %437 = sbr.rel (%p435) target = $region68
        $region67: #{stargcn_forward.1} parent=39 // pred_region
          %438 = vst [vmem:[#allocation2] sm:$0xff] 0.0
          %439 = vst [vmem:[#allocation2 + $0x8] sm:$0xff] 0.0
          %440 = vst [vmem:[#allocation2 + $0x10] sm:$0xff] 0.0
          %441 = vst [vmem:[#allocation2 + $0x18] sm:$0xff] 0.0
          %442 = vst [vmem:[#allocation2 + $0x20] sm:$0xff] 0.0
          %443 = vst [vmem:[#allocation2 + $0x28] sm:$0xff] 0.0
          %444 = vst [vmem:[#allocation2 + $0x30] sm:$0xff] 0.0
          %445 = vst [vmem:[#allocation2 + $0x38] sm:$0xff] 0.0
        $region68: #{stargcn_forward.1} parent=39 // pred_fallthru
          _
        // Predicated region
        $region69: #{stargcn_forward.1} parent=39 // pred_check
          %p446 = pneg %p412
        $region70: #{stargcn_forward.1} parent=39 // pred_check_branch
          %448 = sbr.rel (%p446) target = $region72
        $region71: #{stargcn_forward.1} parent=39 // pred_region
          %p449 = scmp.lt.s32.totalorder %s52, 3
          %p450 = pnand %p411, %p449
          %p451 = pneg %p450
          // Predicated region
          $region73: #{stargcn_forward.1} parent=71 // pred_check
            _
          $region74: #{stargcn_forward.1} parent=71 // pred_check_branch
            %453 = sbr.rel (%p450) target = $region76
          $region75: #{stargcn_forward.1} parent=71 // pred_region
            %s454 = smul.u32 %s52, 128
            %s455 = sadd.s32 %s454, 128
            %v456 = vld [vmem:[#allocation2] sm:$0xff]
            %v457 = vld [vmem:[#allocation2 + $0x8] sm:$0xff]
            %v458 = vld [vmem:[#allocation2 + $0x10] sm:$0xff]
            %v459 = vld [vmem:[#allocation2 + $0x18] sm:$0xff]
            %v460 = vld [vmem:[#allocation2 + $0x20] sm:$0xff]
            %v461 = vld [vmem:[#allocation2 + $0x28] sm:$0xff]
            %v462 = vld [vmem:[#allocation2 + $0x30] sm:$0xff]
            %v463 = vld [vmem:[#allocation2 + $0x38] sm:$0xff]
            %v464 = vld [vmem:[%s349] sm:$0xff]
            %v465 = vld [vmem:[%s349 + $0x8] sm:$0xff]
            %v466 = vld [vmem:[%s349 + $0x10] sm:$0xff]
            %v467 = vld [vmem:[%s349 + $0x18] sm:$0xff]
            %v468 = vld [vmem:[%s349 + $0x20] sm:$0xff]
            %v469 = vld [vmem:[%s349 + $0x28] sm:$0xff]
            %v470 = vld [vmem:[%s349 + $0x30] sm:$0xff]
            %v471 = vld [vmem:[%s349 + $0x38] sm:$0xff]
            %s472 = scalar_lea.vmem [#allocation15], %s455
            %v473 = vld [vmem:[%s472] sm:$0xff]
            %v474 = vld [vmem:[%s472 + $0x8] sm:$0xff]
            %v475 = vld [vmem:[%s472 + $0x10] sm:$0xff]
            %v476 = vld [vmem:[%s472 + $0x18] sm:$0xff]
            %v477 = vld [vmem:[%s472 + $0x20] sm:$0xff]
            %v478 = vld [vmem:[%s472 + $0x28] sm:$0xff]
            %v479 = vld [vmem:[%s472 + $0x30] sm:$0xff]
            %v480 = vld [vmem:[%s472 + $0x38] sm:$0xff]
            %v481 = vld [vmem:[%s472 + $0x40] sm:$0xff]
            %v482 = vld [vmem:[%s472 + $0x48] sm:$0xff]
            %v483 = vld [vmem:[%s472 + $0x50] sm:$0xff]
            %v484 = vld [vmem:[%s472 + $0x58] sm:$0xff]
            %v485 = vld [vmem:[%s472 + $0x60] sm:$0xff]
            %v486 = vld [vmem:[%s472 + $0x68] sm:$0xff]
            %v487 = vld [vmem:[%s472 + $0x70] sm:$0xff]
            %v488 = vld [vmem:[%s472 + $0x78] sm:$0xff]
            %489 = vmatprep.subr.mxu0 0.0
            %490 = vmatpush1.msra.mxu0 %v473
            %491 = vmatprep.subr.mxu0 0.0
            %492 = vmatpush1.msra.mxu0 %v474
            %493 = vmatprep.subr.mxu0 0.0
            %494 = vmatpush1.msra.mxu0 %v475
            %495 = vmatprep.subr.mxu0 0.0
            %496 = vmatpush1.msra.mxu0 %v476
            %497 = vmatprep.subr.mxu0 0.0
            %498 = vmatpush1.msra.mxu0 %v477
            %499 = vmatprep.subr.mxu0 0.0
            %500 = vmatpush1.msra.mxu0 %v478
            %501 = vmatprep.subr.mxu0 0.0
            %502 = vmatpush1.msra.mxu0 %v479
            %503 = vmatprep.subr.mxu0 0.0
            %504 = vmatpush1.msra.mxu0 %v480
            %505 = vmatprep.subr.mxu0 0.0
            %506 = vmatpush1.msra.mxu0 %v481
            %507 = vmatprep.subr.mxu0 0.0
            %508 = vmatpush1.msra.mxu0 %v482
            %509 = vmatprep.subr.mxu0 0.0
            %510 = vmatpush1.msra.mxu0 %v483
            %511 = vmatprep.subr.mxu0 0.0
            %512 = vmatpush1.msra.mxu0 %v484
            %513 = vmatprep.subr.mxu0 0.0
            %514 = vmatpush1.msra.mxu0 %v485
            %515 = vmatprep.subr.mxu0 0.0
            %516 = vmatpush1.msra.mxu0 %v486
            %517 = vmatprep.subr.mxu0 0.0
            %518 = vmatpush1.msra.mxu0 %v487
            %519 = vmatprep.subr.mxu0 0.0
            %520 = vmatpush1.msra.mxu0 %v488
            %521 = vmatprep.subr.mxu0 0.0
            %522 = vmatpush1.msra.mxu0 0.0
            %523 = vmatprep.subr.mxu0 0.0
            %524 = vmatpush1.msra.mxu0 0.0
            %525 = vmatprep.subr.mxu0 0.0
            %526 = vmatpush1.msra.mxu0 0.0
            %527 = vmatprep.subr.mxu0 0.0
            %528 = vmatpush1.msra.mxu0 0.0
            %529 = vmatprep.subr.mxu0 0.0
            %530 = vmatpush1.msra.mxu0 0.0
            %531 = vmatprep.subr.mxu0 0.0
            %532 = vmatpush1.msra.mxu0 0.0
            %533 = vmatprep.subr.mxu0 0.0
            %534 = vmatpush1.msra.mxu0 0.0
            %535 = vmatprep.subr.mxu0 0.0
            %536 = vmatpush1.msra.mxu0 0.0
            %537 = vmatprep.subr.mxu0 0.0
            %538 = vmatpush1.msra.mxu0 0.0
            %539 = vmatprep.subr.mxu0 0.0
            %540 = vmatpush1.msra.mxu0 0.0
            %541 = vmatprep.subr.mxu0 0.0
            %542 = vmatpush1.msra.mxu0 0.0
            %543 = vmatprep.subr.mxu0 0.0
            %544 = vmatpush1.msra.mxu0 0.0
            %545 = vmatprep.subr.mxu0 0.0
            %546 = vmatpush1.msra.mxu0 0.0
            %547 = vmatprep.subr.mxu0 0.0
            %548 = vmatpush1.msra.mxu0 0.0
            %549 = vmatprep.subr.mxu0 0.0
            %550 = vmatpush1.msra.mxu0 0.0
            %551 = vmatprep.subr.mxu0 0.0
            %552 = vmatpush1.msra.mxu0 0.0
            %553 = vmatprep.mubr.f32.mxu0 0.0
            %554 = vmatmul.mubr.f32.gmra.mrb[0].mxu0 %v464
            %v555 = vpop.f32.mrb[0].mxu0
            %v556 = vadd.f32 0.0, %v555
            %v557 = vpop.f32.mrb[0].mxu0
            %558 = vmatprep.mubr.f32.mxu0 0.0
            %559 = vmatmul.mubr.f32.gmra.mrb[0].mxu0 %v465
            %v560 = vpop.f32.mrb[0].mxu0
            %v561 = vadd.f32 0.0, %v560
            %v562 = vpop.f32.mrb[0].mxu0
            %563 = vmatprep.mubr.f32.mxu0 0.0
            %564 = vmatmul.mubr.f32.gmra.mrb[0].mxu0 %v466
            %v565 = vpop.f32.mrb[0].mxu0
            %v566 = vadd.f32 0.0, %v565
            %v567 = vpop.f32.mrb[0].mxu0
            %568 = vmatprep.mubr.f32.mxu0 0.0
            %569 = vmatmul.mubr.f32.gmra.mrb[0].mxu0 %v467
            %v570 = vpop.f32.mrb[0].mxu0
            %v571 = vadd.f32 0.0, %v570
            %v572 = vpop.f32.mrb[0].mxu0
            %573 = vmatprep.mubr.f32.mxu0 0.0
            %574 = vmatmul.mubr.f32.gmra.mrb[0].mxu0 %v468
            %v575 = vpop.f32.mrb[0].mxu0
            %v576 = vadd.f32 0.0, %v575
            %v577 = vpop.f32.mrb[0].mxu0
            %578 = vmatprep.mubr.f32.mxu0 0.0
            %579 = vmatmul.mubr.f32.gmra.mrb[0].mxu0 %v469
            %v580 = vpop.f32.mrb[0].mxu0
            %v581 = vadd.f32 0.0, %v580
            %v582 = vpop.f32.mrb[0].mxu0
            %583 = vmatprep.mubr.f32.mxu0 0.0
            %584 = vmatmul.mubr.f32.gmra.mrb[0].mxu0 %v470
            %v585 = vpop.f32.mrb[0].mxu0
            %v586 = vadd.f32 0.0, %v585
            %v587 = vpop.f32.mrb[0].mxu0
            %588 = vmatprep.mubr.f32.mxu0 0.0
            %589 = vmatmul.mubr.f32.gmra.mrb[0].mxu0 %v471
            %v590 = vpop.f32.mrb[0].mxu0
            %v591 = vadd.f32 0.0, %v590
            %v592 = vpop.f32.mrb[0].mxu0
            %593 = vdwg.mxu0
            %v594 = vadd.f32 %v456, %v556
            %v595 = vadd.f32 %v457, %v561
            %v596 = vadd.f32 %v458, %v566
            %v597 = vadd.f32 %v459, %v571
            %v598 = vadd.f32 %v460, %v576
            %v599 = vadd.f32 %v461, %v581
            %v600 = vadd.f32 %v462, %v586
            %v601 = vadd.f32 %v463, %v591
            %602 = vst [vmem:[#allocation2] sm:$0xff] %v594
            %603 = vst [vmem:[#allocation2 + $0x8] sm:$0xff] %v595
            %604 = vst [vmem:[#allocation2 + $0x10] sm:$0xff] %v596
            %605 = vst [vmem:[#allocation2 + $0x18] sm:$0xff] %v597
            %606 = vst [vmem:[#allocation2 + $0x20] sm:$0xff] %v598
            %607 = vst [vmem:[#allocation2 + $0x28] sm:$0xff] %v599
            %608 = vst [vmem:[#allocation2 + $0x30] sm:$0xff] %v600
            %609 = vst [vmem:[#allocation2 + $0x38] sm:$0xff] %v601
          $region76: #{stargcn_forward.1} parent=71 // pred_fallthru
            _
          %p610 = scmp.ge.s32.totalorder %s51, 2
          %p611 = scmp.lt.s32.totalorder %s52, 1
          %p612 = pnand %p610, %p611
          %p613 = pneg %p612
          // Predicated region
          $region77: #{stargcn_forward.1} parent=71 // pred_check
            _
          $region78: #{stargcn_forward.1} parent=71 // pred_check_branch
            %615 = sbr.rel (%p612) target = $region80
          $region79: #{stargcn_forward.1} parent=71 // pred_region
            %s616 = smul.u32 %s52, 128
            %v617 = vld [vmem:[#allocation2] sm:$0xff]
            %v618 = vld [vmem:[#allocation2 + $0x8] sm:$0xff]
            %v619 = vld [vmem:[#allocation2 + $0x10] sm:$0xff]
            %v620 = vld [vmem:[#allocation2 + $0x18] sm:$0xff]
            %v621 = vld [vmem:[#allocation2 + $0x20] sm:$0xff]
            %v622 = vld [vmem:[#allocation2 + $0x28] sm:$0xff]
            %v623 = vld [vmem:[#allocation2 + $0x30] sm:$0xff]
            %v624 = vld [vmem:[#allocation2 + $0x38] sm:$0xff]
            %v625 = vld [vmem:[%s358] sm:$0xff]
            %v626 = vld [vmem:[%s358 + $0x8] sm:$0xff]
            %v627 = vld [vmem:[%s358 + $0x10] sm:$0xff]
            %v628 = vld [vmem:[%s358 + $0x18] sm:$0xff]
            %v629 = vld [vmem:[%s358 + $0x20] sm:$0xff]
            %v630 = vld [vmem:[%s358 + $0x28] sm:$0xff]
            %v631 = vld [vmem:[%s358 + $0x30] sm:$0xff]
            %v632 = vld [vmem:[%s358 + $0x38] sm:$0xff]
            %s633 = scalar_lea.vmem [#allocation15], %s616
            %v634 = vld [vmem:[%s633] sm:$0xff]
            %v635 = vld [vmem:[%s633 + $0x8] sm:$0xff]
            %v636 = vld [vmem:[%s633 + $0x10] sm:$0xff]
            %v637 = vld [vmem:[%s633 + $0x18] sm:$0xff]
            %v638 = vld [vmem:[%s633 + $0x20] sm:$0xff]
            %v639 = vld [vmem:[%s633 + $0x28] sm:$0xff]
            %v640 = vld [vmem:[%s633 + $0x30] sm:$0xff]
            %v641 = vld [vmem:[%s633 + $0x38] sm:$0xff]
            %v642 = vld [vmem:[%s633 + $0x40] sm:$0xff]
            %v643 = vld [vmem:[%s633 + $0x48] sm:$0xff]
            %v644 = vld [vmem:[%s633 + $0x50] sm:$0xff]
            %v645 = vld [vmem:[%s633 + $0x58] sm:$0xff]
            %v646 = vld [vmem:[%s633 + $0x60] sm:$0xff]
            %v647 = vld [vmem:[%s633 + $0x68] sm:$0xff]
            %v648 = vld [vmem:[%s633 + $0x70] sm:$0xff]
            %v649 = vld [vmem:[%s633 + $0x78] sm:$0xff]
            %650 = vmatprep.subr.mxu0 0.0
            %651 = vmatpush1.msra.mxu0 %v634
            %652 = vmatprep.subr.mxu0 0.0
            %653 = vmatpush1.msra.mxu0 %v635
            %654 = vmatprep.subr.mxu0 0.0
            %655 = vmatpush1.msra.mxu0 %v636
            %656 = vmatprep.subr.mxu0 0.0
            %657 = vmatpush1.msra.mxu0 %v637
            %658 = vmatprep.subr.mxu0 0.0
            %659 = vmatpush1.msra.mxu0 %v638
            %660 = vmatprep.subr.mxu0 0.0
            %661 = vmatpush1.msra.mxu0 %v639
            %662 = vmatprep.subr.mxu0 0.0
            %663 = vmatpush1.msra.mxu0 %v640
            %664 = vmatprep.subr.mxu0 0.0
            %665 = vmatpush1.msra.mxu0 %v641
            %666 = vmatprep.subr.mxu0 0.0
            %667 = vmatpush1.msra.mxu0 %v642
            %668 = vmatprep.subr.mxu0 0.0
            %669 = vmatpush1.msra.mxu0 %v643
            %670 = vmatprep.subr.mxu0 0.0
            %671 = vmatpush1.msra.mxu0 %v644
            %672 = vmatprep.subr.mxu0 0.0
            %673 = vmatpush1.msra.mxu0 %v645
            %674 = vmatprep.subr.mxu0 0.0
            %675 = vmatpush1.msra.mxu0 %v646
            %676 = vmatprep.subr.mxu0 0.0
            %677 = vmatpush1.msra.mxu0 %v647
            %678 = vmatprep.subr.mxu0 0.0
            %679 = vmatpush1.msra.mxu0 %v648
            %680 = vmatprep.subr.mxu0 0.0
            %681 = vmatpush1.msra.mxu0 %v649
            %682 = vmatprep.subr.mxu0 0.0
            %683 = vmatpush1.msra.mxu0 0.0
            %684 = vmatprep.subr.mxu0 0.0
            %685 = vmatpush1.msra.mxu0 0.0
            %686 = vmatprep.subr.mxu0 0.0
            %687 = vmatpush1.msra.mxu0 0.0
            %688 = vmatprep.subr.mxu0 0.0
            %689 = vmatpush1.msra.mxu0 0.0
            %690 = vmatprep.subr.mxu0 0.0
            %691 = vmatpush1.msra.mxu0 0.0
            %692 = vmatprep.subr.mxu0 0.0
            %693 = vmatpush1.msra.mxu0 0.0
            %694 = vmatprep.subr.mxu0 0.0
            %695 = vmatpush1.msra.mxu0 0.0
            %696 = vmatprep.subr.mxu0 0.0
            %697 = vmatpush1.msra.mxu0 0.0
            %698 = vmatprep.subr.mxu0 0.0
            %699 = vmatpush1.msra.mxu0 0.0
            %700 = vmatprep.subr.mxu0 0.0
            %701 = vmatpush1.msra.mxu0 0.0
            %702 = vmatprep.subr.mxu0 0.0
            %703 = vmatpush1.msra.mxu0 0.0
            %704 = vmatprep.subr.mxu0 0.0
            %705 = vmatpush1.msra.mxu0 0.0
            %706 = vmatprep.subr.mxu0 0.0
            %707 = vmatpush1.msra.mxu0 0.0
            %708 = vmatprep.subr.mxu0 0.0
            %709 = vmatpush1.msra.mxu0 0.0
            %710 = vmatprep.subr.mxu0 0.0
            %711 = vmatpush1.msra.mxu0 0.0
            %712 = vmatprep.subr.mxu0 0.0
            %713 = vmatpush1.msra.mxu0 0.0
            %714 = vmatprep.mubr.f32.mxu0 0.0
            %715 = vmatmul.mubr.f32.gmra.mrb[0].mxu0 %v625
            %v716 = vpop.f32.mrb[0].mxu0
            %v717 = vadd.f32 0.0, %v716
            %v718 = vpop.f32.mrb[0].mxu0
            %719 = vmatprep.mubr.f32.mxu0 0.0
            %720 = vmatmul.mubr.f32.gmra.mrb[0].mxu0 %v626
            %v721 = vpop.f32.mrb[0].mxu0
            %v722 = vadd.f32 0.0, %v721
            %v723 = vpop.f32.mrb[0].mxu0
            %724 = vmatprep.mubr.f32.mxu0 0.0
            %725 = vmatmul.mubr.f32.gmra.mrb[0].mxu0 %v627
            %v726 = vpop.f32.mrb[0].mxu0
            %v727 = vadd.f32 0.0, %v726
            %v728 = vpop.f32.mrb[0].mxu0
            %729 = vmatprep.mubr.f32.mxu0 0.0
            %730 = vmatmul.mubr.f32.gmra.mrb[0].mxu0 %v628
            %v731 = vpop.f32.mrb[0].mxu0
            %v732 = vadd.f32 0.0, %v731
            %v733 = vpop.f32.mrb[0].mxu0
            %734 = vmatprep.mubr.f32.mxu0 0.0
            %735 = vmatmul.mubr.f32.gmra.mrb[0].mxu0 %v629
            %v736 = vpop.f32.mrb[0].mxu0
            %v737 = vadd.f32 0.0, %v736
            %v738 = vpop.f32.mrb[0].mxu0
            %739 = vmatprep.mubr.f32.mxu0 0.0
            %740 = vmatmul.mubr.f32.gmra.mrb[0].mxu0 %v630
            %v741 = vpop.f32.mrb[0].mxu0
            %v742 = vadd.f32 0.0, %v741
            %v743 = vpop.f32.mrb[0].mxu0
            %744 = vmatprep.mubr.f32.mxu0 0.0
            %745 = vmatmul.mubr.f32.gmra.mrb[0].mxu0 %v631
            %v746 = vpop.f32.mrb[0].mxu0
            %v747 = vadd.f32 0.0, %v746
            %v748 = vpop.f32.mrb[0].mxu0
            %749 = vmatprep.mubr.f32.mxu0 0.0
            %750 = vmatmul.mubr.f32.gmra.mrb[0].mxu0 %v632
            %v751 = vpop.f32.mrb[0].mxu0
            %v752 = vadd.f32 0.0, %v751
            %v753 = vpop.f32.mrb[0].mxu0
            %754 = vdwg.mxu0
            %v755 = vadd.f32 %v617, %v717
            %v756 = vadd.f32 %v618, %v722
            %v757 = vadd.f32 %v619, %v727
            %v758 = vadd.f32 %v620, %v732
            %v759 = vadd.f32 %v621, %v737
            %v760 = vadd.f32 %v622, %v742
            %v761 = vadd.f32 %v623, %v747
            %v762 = vadd.f32 %v624, %v752
            %763 = vst [vmem:[#allocation2] sm:$0xff] %v755
            %764 = vst [vmem:[#allocation2 + $0x8] sm:$0xff] %v756
            %765 = vst [vmem:[#allocation2 + $0x10] sm:$0xff] %v757
            %766 = vst [vmem:[#allocation2 + $0x18] sm:$0xff] %v758
            %767 = vst [vmem:[#allocation2 + $0x20] sm:$0xff] %v759
            %768 = vst [vmem:[#allocation2 + $0x28] sm:$0xff] %v760
            %769 = vst [vmem:[#allocation2 + $0x30] sm:$0xff] %v761
            %770 = vst [vmem:[#allocation2 + $0x38] sm:$0xff] %v762
          $region80: #{stargcn_forward.1} parent=71 // pred_fallthru
            _
        $region72: #{stargcn_forward.1} parent=39 // pred_fallthru
          _
        %p771 = scmp.eq.s32.totalorder %s50, 1
        // Predicated region
        $region81: #{stargcn_forward.1} parent=39 // pred_check
          %p772 = pneg %p771
        $region82: #{stargcn_forward.1} parent=39 // pred_check_branch
          %774 = sbr.rel (%p772) target = $region84
        $region83: #{stargcn_forward.1} parent=39 // pred_region
          %p775 = scmp.lt.s32.totalorder %s52, 3
          %p776 = pnand %p411, %p775
          %p777 = pneg %p776
          // Predicated region
          $region85: #{stargcn_forward.1} parent=83 // pred_check
            _
          $region86: #{stargcn_forward.1} parent=83 // pred_check_branch
            %779 = sbr.rel (%p776) target = $region88
          $region87: #{stargcn_forward.1} parent=83 // pred_region
            %s780 = smul.u32 %s52, 128
            %s781 = sadd.s32 %s780, 128
            %v782 = vld [vmem:[#allocation2] sm:$0xff]
            %v783 = vld [vmem:[#allocation2 + $0x8] sm:$0xff]
            %v784 = vld [vmem:[#allocation2 + $0x10] sm:$0xff]
            %v785 = vld [vmem:[#allocation2 + $0x18] sm:$0xff]
            %v786 = vld [vmem:[#allocation2 + $0x20] sm:$0xff]
            %v787 = vld [vmem:[#allocation2 + $0x28] sm:$0xff]
            %v788 = vld [vmem:[#allocation2 + $0x30] sm:$0xff]
            %v789 = vld [vmem:[#allocation2 + $0x38] sm:$0xff]
            %v790 = vld [vmem:[%s349] sm:$0xff]
            %v791 = vld [vmem:[%s349 + $0x8] sm:$0xff]
            %v792 = vld [vmem:[%s349 + $0x10] sm:$0xff]
            %v793 = vld [vmem:[%s349 + $0x18] sm:$0xff]
            %v794 = vld [vmem:[%s349 + $0x20] sm:$0xff]
            %v795 = vld [vmem:[%s349 + $0x28] sm:$0xff]
            %v796 = vld [vmem:[%s349 + $0x30] sm:$0xff]
            %v797 = vld [vmem:[%s349 + $0x38] sm:$0xff]
            %s798 = scalar_lea.vmem [#allocation3], %s781
            %v799 = vld [vmem:[%s798] sm:$0xff]
            %v800 = vld [vmem:[%s798 + $0x8] sm:$0xff]
            %v801 = vld [vmem:[%s798 + $0x10] sm:$0xff]
            %v802 = vld [vmem:[%s798 + $0x18] sm:$0xff]
            %v803 = vld [vmem:[%s798 + $0x20] sm:$0xff]
            %v804 = vld [vmem:[%s798 + $0x28] sm:$0xff]
            %v805 = vld [vmem:[%s798 + $0x30] sm:$0xff]
            %v806 = vld [vmem:[%s798 + $0x38] sm:$0xff]
            %v807 = vld [vmem:[%s798 + $0x40] sm:$0xff]
            %v808 = vld [vmem:[%s798 + $0x48] sm:$0xff]
            %v809 = vld [vmem:[%s798 + $0x50] sm:$0xff]
            %v810 = vld [vmem:[%s798 + $0x58] sm:$0xff]
            %v811 = vld [vmem:[%s798 + $0x60] sm:$0xff]
            %v812 = vld [vmem:[%s798 + $0x68] sm:$0xff]
            %v813 = vld [vmem:[%s798 + $0x70] sm:$0xff]
            %v814 = vld [vmem:[%s798 + $0x78] sm:$0xff]
            %815 = vmatprep.subr.mxu0 0.0
            %816 = vmatpush1.msra.mxu0 %v799
            %817 = vmatprep.subr.mxu0 0.0
            %818 = vmatpush1.msra.mxu0 %v800
            %819 = vmatprep.subr.mxu0 0.0
            %820 = vmatpush1.msra.mxu0 %v801
            %821 = vmatprep.subr.mxu0 0.0
            %822 = vmatpush1.msra.mxu0 %v802
            %823 = vmatprep.subr.mxu0 0.0
            %824 = vmatpush1.msra.mxu0 %v803
            %825 = vmatprep.subr.mxu0 0.0
            %826 = vmatpush1.msra.mxu0 %v804
            %827 = vmatprep.subr.mxu0 0.0
            %828 = vmatpush1.msra.mxu0 %v805
            %829 = vmatprep.subr.mxu0 0.0
            %830 = vmatpush1.msra.mxu0 %v806
            %831 = vmatprep.subr.mxu0 0.0
            %832 = vmatpush1.msra.mxu0 %v807
            %833 = vmatprep.subr.mxu0 0.0
            %834 = vmatpush1.msra.mxu0 %v808
            %835 = vmatprep.subr.mxu0 0.0
            %836 = vmatpush1.msra.mxu0 %v809
            %837 = vmatprep.subr.mxu0 0.0
            %838 = vmatpush1.msra.mxu0 %v810
            %839 = vmatprep.subr.mxu0 0.0
            %840 = vmatpush1.msra.mxu0 %v811
            %841 = vmatprep.subr.mxu0 0.0
            %842 = vmatpush1.msra.mxu0 %v812
            %843 = vmatprep.subr.mxu0 0.0
            %844 = vmatpush1.msra.mxu0 %v813
            %845 = vmatprep.subr.mxu0 0.0
            %846 = vmatpush1.msra.mxu0 %v814
            %847 = vmatprep.subr.mxu0 0.0
            %848 = vmatpush1.msra.mxu0 0.0
            %849 = vmatprep.subr.mxu0 0.0
            %850 = vmatpush1.msra.mxu0 0.0
            %851 = vmatprep.subr.mxu0 0.0
            %852 = vmatpush1.msra.mxu0 0.0
            %853 = vmatprep.subr.mxu0 0.0
            %854 = vmatpush1.msra.mxu0 0.0
            %855 = vmatprep.subr.mxu0 0.0
            %856 = vmatpush1.msra.mxu0 0.0
            %857 = vmatprep.subr.mxu0 0.0
            %858 = vmatpush1.msra.mxu0 0.0
            %859 = vmatprep.subr.mxu0 0.0
            %860 = vmatpush1.msra.mxu0 0.0
            %861 = vmatprep.subr.mxu0 0.0
            %862 = vmatpush1.msra.mxu0 0.0
            %863 = vmatprep.subr.mxu0 0.0
            %864 = vmatpush1.msra.mxu0 0.0
            %865 = vmatprep.subr.mxu0 0.0
            %866 = vmatpush1.msra.mxu0 0.0
            %867 = vmatprep.subr.mxu0 0.0
            %868 = vmatpush1.msra.mxu0 0.0
            %869 = vmatprep.subr.mxu0 0.0
            %870 = vmatpush1.msra.mxu0 0.0
            %871 = vmatprep.subr.mxu0 0.0
            %872 = vmatpush1.msra.mxu0 0.0
            %873 = vmatprep.subr.mxu0 0.0
            %874 = vmatpush1.msra.mxu0 0.0
            %875 = vmatprep.subr.mxu0 0.0
            %876 = vmatpush1.msra.mxu0 0.0
            %877 = vmatprep.subr.mxu0 0.0
            %878 = vmatpush1.msra.mxu0 0.0
            %879 = vmatprep.mubr.f32.mxu0 0.0
            %880 = vmatmul.mubr.f32.gmra.mrb[0].mxu0 %v790
            %v881 = vpop.f32.mrb[0].mxu0
            %v882 = vadd.f32 0.0, %v881
            %v883 = vpop.f32.mrb[0].mxu0
            %884 = vmatprep.mubr.f32.mxu0 0.0
            %885 = vmatmul.mubr.f32.gmra.mrb[0].mxu0 %v791
            %v886 = vpop.f32.mrb[0].mxu0
            %v887 = vadd.f32 0.0, %v886
            %v888 = vpop.f32.mrb[0].mxu0
            %889 = vmatprep.mubr.f32.mxu0 0.0
            %890 = vmatmul.mubr.f32.gmra.mrb[0].mxu0 %v792
            %v891 = vpop.f32.mrb[0].mxu0
            %v892 = vadd.f32 0.0, %v891
            %v893 = vpop.f32.mrb[0].mxu0
            %894 = vmatprep.mubr.f32.mxu0 0.0
            %895 = vmatmul.mubr.f32.gmra.mrb[0].mxu0 %v793
            %v896 = vpop.f32.mrb[0].mxu0
            %v897 = vadd.f32 0.0, %v896
            %v898 = vpop.f32.mrb[0].mxu0
            %899 = vmatprep.mubr.f32.mxu0 0.0
            %900 = vmatmul.mubr.f32.gmra.mrb[0].mxu0 %v794
            %v901 = vpop.f32.mrb[0].mxu0
            %v902 = vadd.f32 0.0, %v901
            %v903 = vpop.f32.mrb[0].mxu0
            %904 = vmatprep.mubr.f32.mxu0 0.0
            %905 = vmatmul.mubr.f32.gmra.mrb[0].mxu0 %v795
            %v906 = vpop.f32.mrb[0].mxu0
            %v907 = vadd.f32 0.0, %v906
            %v908 = vpop.f32.mrb[0].mxu0
            %909 = vmatprep.mubr.f32.mxu0 0.0
            %910 = vmatmul.mubr.f32.gmra.mrb[0].mxu0 %v796
            %v911 = vpop.f32.mrb[0].mxu0
            %v912 = vadd.f32 0.0, %v911
            %v913 = vpop.f32.mrb[0].mxu0
            %914 = vmatprep.mubr.f32.mxu0 0.0
            %915 = vmatmul.mubr.f32.gmra.mrb[0].mxu0 %v797
            %v916 = vpop.f32.mrb[0].mxu0
            %v917 = vadd.f32 0.0, %v916
            %v918 = vpop.f32.mrb[0].mxu0
            %919 = vdwg.mxu0
            %v920 = vadd.f32 %v782, %v882
            %v921 = vadd.f32 %v783, %v887
            %v922 = vadd.f32 %v784, %v892
            %v923 = vadd.f32 %v785, %v897
            %v924 = vadd.f32 %v786, %v902
            %v925 = vadd.f32 %v787, %v907
            %v926 = vadd.f32 %v788, %v912
            %v927 = vadd.f32 %v789, %v917
            %928 = vst [vmem:[#allocation2] sm:$0xff] %v920
            %929 = vst [vmem:[#allocation2 + $0x8] sm:$0xff] %v921
            %930 = vst [vmem:[#allocation2 + $0x10] sm:$0xff] %v922
            %931 = vst [vmem:[#allocation2 + $0x18] sm:$0xff] %v923
            %932 = vst [vmem:[#allocation2 + $0x20] sm:$0xff] %v924
            %933 = vst [vmem:[#allocation2 + $0x28] sm:$0xff] %v925
            %934 = vst [vmem:[#allocation2 + $0x30] sm:$0xff] %v926
            %935 = vst [vmem:[#allocation2 + $0x38] sm:$0xff] %v927
          $region88: #{stargcn_forward.1} parent=83 // pred_fallthru
            _
          %p936 = scmp.ge.s32.totalorder %s51, 2
          %p937 = scmp.lt.s32.totalorder %s52, 1
          %p938 = pnand %p936, %p937
          %p939 = pneg %p938
          // Predicated region
          $region89: #{stargcn_forward.1} parent=83 // pred_check
            _
          $region90: #{stargcn_forward.1} parent=83 // pred_check_branch
            %941 = sbr.rel (%p938) target = $region92
          $region91: #{stargcn_forward.1} parent=83 // pred_region
            %s942 = smul.u32 %s52, 128
            %v943 = vld [vmem:[#allocation2] sm:$0xff]
            %v944 = vld [vmem:[#allocation2 + $0x8] sm:$0xff]
            %v945 = vld [vmem:[#allocation2 + $0x10] sm:$0xff]
            %v946 = vld [vmem:[#allocation2 + $0x18] sm:$0xff]
            %v947 = vld [vmem:[#allocation2 + $0x20] sm:$0xff]
            %v948 = vld [vmem:[#allocation2 + $0x28] sm:$0xff]
            %v949 = vld [vmem:[#allocation2 + $0x30] sm:$0xff]
            %v950 = vld [vmem:[#allocation2 + $0x38] sm:$0xff]
            %v951 = vld [vmem:[%s358] sm:$0xff]
            %v952 = vld [vmem:[%s358 + $0x8] sm:$0xff]
            %v953 = vld [vmem:[%s358 + $0x10] sm:$0xff]
            %v954 = vld [vmem:[%s358 + $0x18] sm:$0xff]
            %v955 = vld [vmem:[%s358 + $0x20] sm:$0xff]
            %v956 = vld [vmem:[%s358 + $0x28] sm:$0xff]
            %v957 = vld [vmem:[%s358 + $0x30] sm:$0xff]
            %v958 = vld [vmem:[%s358 + $0x38] sm:$0xff]
            %s959 = scalar_lea.vmem [#allocation3], %s942
            %v960 = vld [vmem:[%s959] sm:$0xff]
            %v961 = vld [vmem:[%s959 + $0x8] sm:$0xff]
            %v962 = vld [vmem:[%s959 + $0x10] sm:$0xff]
            %v963 = vld [vmem:[%s959 + $0x18] sm:$0xff]
            %v964 = vld [vmem:[%s959 + $0x20] sm:$0xff]
            %v965 = vld [vmem:[%s959 + $0x28] sm:$0xff]
            %v966 = vld [vmem:[%s959 + $0x30] sm:$0xff]
            %v967 = vld [vmem:[%s959 + $0x38] sm:$0xff]
            %v968 = vld [vmem:[%s959 + $0x40] sm:$0xff]
            %v969 = vld [vmem:[%s959 + $0x48] sm:$0xff]
            %v970 = vld [vmem:[%s959 + $0x50] sm:$0xff]
            %v971 = vld [vmem:[%s959 + $0x58] sm:$0xff]
            %v972 = vld [vmem:[%s959 + $0x60] sm:$0xff]
            %v973 = vld [vmem:[%s959 + $0x68] sm:$0xff]
            %v974 = vld [vmem:[%s959 + $0x70] sm:$0xff]
            %v975 = vld [vmem:[%s959 + $0x78] sm:$0xff]
            %976 = vmatprep.subr.mxu0 0.0
            %977 = vmatpush1.msra.mxu0 %v960
            %978 = vmatprep.subr.mxu0 0.0
            %979 = vmatpush1.msra.mxu0 %v961
            %980 = vmatprep.subr.mxu0 0.0
            %981 = vmatpush1.msra.mxu0 %v962
            %982 = vmatprep.subr.mxu0 0.0
            %983 = vmatpush1.msra.mxu0 %v963
            %984 = vmatprep.subr.mxu0 0.0
            %985 = vmatpush1.msra.mxu0 %v964
            %986 = vmatprep.subr.mxu0 0.0
            %987 = vmatpush1.msra.mxu0 %v965
            %988 = vmatprep.subr.mxu0 0.0
            %989 = vmatpush1.msra.mxu0 %v966
            %990 = vmatprep.subr.mxu0 0.0
            %991 = vmatpush1.msra.mxu0 %v967
            %992 = vmatprep.subr.mxu0 0.0
            %993 = vmatpush1.msra.mxu0 %v968
            %994 = vmatprep.subr.mxu0 0.0
            %995 = vmatpush1.msra.mxu0 %v969
            %996 = vmatprep.subr.mxu0 0.0
            %997 = vmatpush1.msra.mxu0 %v970
            %998 = vmatprep.subr.mxu0 0.0
            %999 = vmatpush1.msra.mxu0 %v971
            %1000 = vmatprep.subr.mxu0 0.0
            %1001 = vmatpush1.msra.mxu0 %v972
            %1002 = vmatprep.subr.mxu0 0.0
            %1003 = vmatpush1.msra.mxu0 %v973
            %1004 = vmatprep.subr.mxu0 0.0
            %1005 = vmatpush1.msra.mxu0 %v974
            %1006 = vmatprep.subr.mxu0 0.0
            %1007 = vmatpush1.msra.mxu0 %v975
            %1008 = vmatprep.subr.mxu0 0.0
            %1009 = vmatpush1.msra.mxu0 0.0
            %1010 = vmatprep.subr.mxu0 0.0
            %1011 = vmatpush1.msra.mxu0 0.0
            %1012 = vmatprep.subr.mxu0 0.0
            %1013 = vmatpush1.msra.mxu0 0.0
            %1014 = vmatprep.subr.mxu0 0.0
            %1015 = vmatpush1.msra.mxu0 0.0
            %1016 = vmatprep.subr.mxu0 0.0
            %1017 = vmatpush1.msra.mxu0 0.0
            %1018 = vmatprep.subr.mxu0 0.0
            %1019 = vmatpush1.msra.mxu0 0.0
            %1020 = vmatprep.subr.mxu0 0.0
            %1021 = vmatpush1.msra.mxu0 0.0
            %1022 = vmatprep.subr.mxu0 0.0
            %1023 = vmatpush1.msra.mxu0 0.0
            %1024 = vmatprep.subr.mxu0 0.0
            %1025 = vmatpush1.msra.mxu0 0.0
            %1026 = vmatprep.subr.mxu0 0.0
            %1027 = vmatpush1.msra.mxu0 0.0
            %1028 = vmatprep.subr.mxu0 0.0
            %1029 = vmatpush1.msra.mxu0 0.0
            %1030 = vmatprep.subr.mxu0 0.0
            %1031 = vmatpush1.msra.mxu0 0.0
            %1032 = vmatprep.subr.mxu0 0.0
            %1033 = vmatpush1.msra.mxu0 0.0
            %1034 = vmatprep.subr.mxu0 0.0
            %1035 = vmatpush1.msra.mxu0 0.0
            %1036 = vmatprep.subr.mxu0 0.0
            %1037 = vmatpush1.msra.mxu0 0.0
            %1038 = vmatprep.subr.mxu0 0.0
            %1039 = vmatpush1.msra.mxu0 0.0
            %1040 = vmatprep.mubr.f32.mxu0 0.0
            %1041 = vmatmul.mubr.f32.gmra.mrb[0].mxu0 %v951
            %v1042 = vpop.f32.mrb[0].mxu0
            %v1043 = vadd.f32 0.0, %v1042
            %v1044 = vpop.f32.mrb[0].mxu0
            %1045 = vmatprep.mubr.f32.mxu0 0.0
            %1046 = vmatmul.mubr.f32.gmra.mrb[0].mxu0 %v952
            %v1047 = vpop.f32.mrb[0].mxu0
            %v1048 = vadd.f32 0.0, %v1047
            %v1049 = vpop.f32.mrb[0].mxu0
            %1050 = vmatprep.mubr.f32.mxu0 0.0
            %1051 = vmatmul.mubr.f32.gmra.mrb[0].mxu0 %v953
            %v1052 = vpop.f32.mrb[0].mxu0
            %v1053 = vadd.f32 0.0, %v1052
            %v1054 = vpop.f32.mrb[0].mxu0
            %1055 = vmatprep.mubr.f32.mxu0 0.0
            %1056 = vmatmul.mubr.f32.gmra.mrb[0].mxu0 %v954
            %v1057 = vpop.f32.mrb[0].mxu0
            %v1058 = vadd.f32 0.0, %v1057
            %v1059 = vpop.f32.mrb[0].mxu0
            %1060 = vmatprep.mubr.f32.mxu0 0.0
            %1061 = vmatmul.mubr.f32.gmra.mrb[0].mxu0 %v955
            %v1062 = vpop.f32.mrb[0].mxu0
            %v1063 = vadd.f32 0.0, %v1062
            %v1064 = vpop.f32.mrb[0].mxu0
            %1065 = vmatprep.mubr.f32.mxu0 0.0
            %1066 = vmatmul.mubr.f32.gmra.mrb[0].mxu0 %v956
            %v1067 = vpop.f32.mrb[0].mxu0
            %v1068 = vadd.f32 0.0, %v1067
            %v1069 = vpop.f32.mrb[0].mxu0
            %1070 = vmatprep.mubr.f32.mxu0 0.0
            %1071 = vmatmul.mubr.f32.gmra.mrb[0].mxu0 %v957
            %v1072 = vpop.f32.mrb[0].mxu0
            %v1073 = vadd.f32 0.0, %v1072
            %v1074 = vpop.f32.mrb[0].mxu0
            %1075 = vmatprep.mubr.f32.mxu0 0.0
            %1076 = vmatmul.mubr.f32.gmra.mrb[0].mxu0 %v958
            %v1077 = vpop.f32.mrb[0].mxu0
            %v1078 = vadd.f32 0.0, %v1077
            %v1079 = vpop.f32.mrb[0].mxu0
            %1080 = vdwg.mxu0
            %v1081 = vadd.f32 %v943, %v1043
            %v1082 = vadd.f32 %v944, %v1048
            %v1083 = vadd.f32 %v945, %v1053
            %v1084 = vadd.f32 %v946, %v1058
            %v1085 = vadd.f32 %v947, %v1063
            %v1086 = vadd.f32 %v948, %v1068
            %v1087 = vadd.f32 %v949, %v1073
            %v1088 = vadd.f32 %v950, %v1078
            %1089 = vst [vmem:[#allocation2] sm:$0xff] %v1081
            %1090 = vst [vmem:[#allocation2 + $0x8] sm:$0xff] %v1082
            %1091 = vst [vmem:[#allocation2 + $0x10] sm:$0xff] %v1083
            %1092 = vst [vmem:[#allocation2 + $0x18] sm:$0xff] %v1084
            %1093 = vst [vmem:[#allocation2 + $0x20] sm:$0xff] %v1085
            %1094 = vst [vmem:[#allocation2 + $0x28] sm:$0xff] %v1086
            %1095 = vst [vmem:[#allocation2 + $0x30] sm:$0xff] %v1087
            %1096 = vst [vmem:[#allocation2 + $0x38] sm:$0xff] %v1088
          $region92: #{stargcn_forward.1} parent=83 // pred_fallthru
            _
        $region84: #{stargcn_forward.1} parent=39 // pred_fallthru
          _
        %p1097 = scmp.eq.s32.totalorder %s52, 2
        // Predicated region
        $region93: #{stargcn_forward.1} parent=39 // pred_check
          %p1098 = pneg %p1097
        $region94: #{stargcn_forward.1} parent=39 // pred_check_branch
          %1100 = sbr.rel (%p1098) target = $region96
        $region95: #{stargcn_forward.1} parent=39 // pred_region
          %v1101 = vld [vmem:[#allocation2] sm:$0xff]
          %v1102 = vld [vmem:[#allocation2 + $0x8] sm:$0xff]
          %v1103 = vld [vmem:[#allocation2 + $0x10] sm:$0xff]
          %v1104 = vld [vmem:[#allocation2 + $0x18] sm:$0xff]
          %v1105 = vld [vmem:[#allocation2 + $0x20] sm:$0xff]
          %v1106 = vld [vmem:[#allocation2 + $0x28] sm:$0xff]
          %v1107 = vld [vmem:[#allocation2 + $0x30] sm:$0xff]
          %v1108 = vld [vmem:[#allocation2 + $0x38] sm:$0xff]
          %vm1109 = vcmp.gt.f32.partialorder %v1101, 0.0
          %vm1110 = vcmp.gt.f32.partialorder %v1102, 0.0
          %vm1111 = vcmp.gt.f32.partialorder %v1103, 0.0
          %vm1112 = vcmp.gt.f32.partialorder %v1104, 0.0
          %vm1113 = vcmp.gt.f32.partialorder %v1105, 0.0
          %vm1114 = vcmp.gt.f32.partialorder %v1106, 0.0
          %vm1115 = vcmp.gt.f32.partialorder %v1107, 0.0
          %vm1116 = vcmp.gt.f32.partialorder %v1108, 0.0
          %v1117 = vmul.f32 %v1101, 0.1
          %v1118 = vmul.f32 %v1102, 0.1
          %v1119 = vmul.f32 %v1103, 0.1
          %v1120 = vmul.f32 %v1104, 0.1
          %v1121 = vmul.f32 %v1105, 0.1
          %v1122 = vmul.f32 %v1106, 0.1
          %v1123 = vmul.f32 %v1107, 0.1
          %v1124 = vmul.f32 %v1108, 0.1
          %v1125 = vsel %vm1109, %v1101, %v1117
          %v1126 = vsel %vm1110, %v1102, %v1118
          %v1127 = vsel %vm1111, %v1103, %v1119
          %v1128 = vsel %vm1112, %v1104, %v1120
          %v1129 = vsel %vm1113, %v1105, %v1121
          %v1130 = vsel %vm1114, %v1106, %v1122
          %v1131 = vsel %vm1115, %v1107, %v1123
          %v1132 = vsel %vm1116, %v1108, %v1124
          %v1133 = vld [vmem:[#allocation16] sm:$0xff]
          %v1134 = vld [vmem:[#allocation16 + $0x8] sm:$0xff]
          %v1135 = vld [vmem:[#allocation16 + $0x10] sm:$0xff]
          %v1136 = vld [vmem:[#allocation16 + $0x18] sm:$0xff]
          %v1137 = vld [vmem:[#allocation16 + $0x20] sm:$0xff]
          %v1138 = vld [vmem:[#allocation16 + $0x28] sm:$0xff]
          %v1139 = vld [vmem:[#allocation16 + $0x30] sm:$0xff]
          %v1140 = vld [vmem:[#allocation16 + $0x38] sm:$0xff]
          %v1141 = vld [vmem:[#allocation16 + $0x40] sm:$0xff]
          %v1142 = vld [vmem:[#allocation16 + $0x48] sm:$0xff]
          %v1143 = vld [vmem:[#allocation16 + $0x50] sm:$0xff]
          %v1144 = vld [vmem:[#allocation16 + $0x58] sm:$0xff]
          %v1145 = vld [vmem:[#allocation16 + $0x60] sm:$0xff]
          %v1146 = vld [vmem:[#allocation16 + $0x68] sm:$0xff]
          %v1147 = vld [vmem:[#allocation16 + $0x70] sm:$0xff]
          %v1148 = vld [vmem:[#allocation16 + $0x78] sm:$0xff]
          %1149 = vmatprep.subr.mxu0 0.0
          %1150 = vmatpush1.msra.mxu0 %v1133
          %1151 = vmatprep.subr.mxu0 0.0
          %1152 = vmatpush1.msra.mxu0 %v1134
          %1153 = vmatprep.subr.mxu0 0.0
          %1154 = vmatpush1.msra.mxu0 %v1135
          %1155 = vmatprep.subr.mxu0 0.0
          %1156 = vmatpush1.msra.mxu0 %v1136
          %1157 = vmatprep.subr.mxu0 0.0
          %1158 = vmatpush1.msra.mxu0 %v1137
          %1159 = vmatprep.subr.mxu0 0.0
          %1160 = vmatpush1.msra.mxu0 %v1138
          %1161 = vmatprep.subr.mxu0 0.0
          %1162 = vmatpush1.msra.mxu0 %v1139
          %1163 = vmatprep.subr.mxu0 0.0
          %1164 = vmatpush1.msra.mxu0 %v1140
          %1165 = vmatprep.subr.mxu0 0.0
          %1166 = vmatpush1.msra.mxu0 %v1141
          %1167 = vmatprep.subr.mxu0 0.0
          %1168 = vmatpush1.msra.mxu0 %v1142
          %1169 = vmatprep.subr.mxu0 0.0
          %1170 = vmatpush1.msra.mxu0 %v1143
          %1171 = vmatprep.subr.mxu0 0.0
          %1172 = vmatpush1.msra.mxu0 %v1144
          %1173 = vmatprep.subr.mxu0 0.0
          %1174 = vmatpush1.msra.mxu0 %v1145
          %1175 = vmatprep.subr.mxu0 0.0
          %1176 = vmatpush1.msra.mxu0 %v1146
          %1177 = vmatprep.subr.mxu0 0.0
          %1178 = vmatpush1.msra.mxu0 %v1147
          %1179 = vmatprep.subr.mxu0 0.0
          %1180 = vmatpush1.msra.mxu0 %v1148
          %1181 = vmatprep.subr.mxu0 0.0
          %1182 = vmatpush1.msra.mxu0 0.0
          %1183 = vmatprep.subr.mxu0 0.0
          %1184 = vmatpush1.msra.mxu0 0.0
          %1185 = vmatprep.subr.mxu0 0.0
          %1186 = vmatpush1.msra.mxu0 0.0
          %1187 = vmatprep.subr.mxu0 0.0
          %1188 = vmatpush1.msra.mxu0 0.0
          %1189 = vmatprep.subr.mxu0 0.0
          %1190 = vmatpush1.msra.mxu0 0.0
          %1191 = vmatprep.subr.mxu0 0.0
          %1192 = vmatpush1.msra.mxu0 0.0
          %1193 = vmatprep.subr.mxu0 0.0
          %1194 = vmatpush1.msra.mxu0 0.0
          %1195 = vmatprep.subr.mxu0 0.0
          %1196 = vmatpush1.msra.mxu0 0.0
          %1197 = vmatprep.subr.mxu0 0.0
          %1198 = vmatpush1.msra.mxu0 0.0
          %1199 = vmatprep.subr.mxu0 0.0
          %1200 = vmatpush1.msra.mxu0 0.0
          %1201 = vmatprep.subr.mxu0 0.0
          %1202 = vmatpush1.msra.mxu0 0.0
          %1203 = vmatprep.subr.mxu0 0.0
          %1204 = vmatpush1.msra.mxu0 0.0
          %1205 = vmatprep.subr.mxu0 0.0
          %1206 = vmatpush1.msra.mxu0 0.0
          %1207 = vmatprep.subr.mxu0 0.0
          %1208 = vmatpush1.msra.mxu0 0.0
          %1209 = vmatprep.subr.mxu0 0.0
          %1210 = vmatpush1.msra.mxu0 0.0
          %1211 = vmatprep.subr.mxu0 0.0
          %1212 = vmatpush1.msra.mxu0 0.0
          %1213 = vmatprep.mubr.f32.mxu0 0.0
          %1214 = vmatmul.mubr.f32.gmra.mrb[0].mxu0 %v1125
          %v1215 = vpop.f32.mrb[0].mxu0
          %v1216 = vadd.f32 0.0, %v1215
          %v1217 = vpop.f32.mrb[0].mxu0
          %1218 = vmatprep.mubr.f32.mxu0 0.0
          %1219 = vmatmul.mubr.f32.gmra.mrb[0].mxu0 %v1126
          %v1220 = vpop.f32.mrb[0].mxu0
          %v1221 = vadd.f32 0.0, %v1220
          %v1222 = vpop.f32.mrb[0].mxu0
          %1223 = vmatprep.mubr.f32.mxu0 0.0
          %1224 = vmatmul.mubr.f32.gmra.mrb[0].mxu0 %v1127
          %v1225 = vpop.f32.mrb[0].mxu0
          %v1226 = vadd.f32 0.0, %v1225
          %v1227 = vpop.f32.mrb[0].mxu0
          %1228 = vmatprep.mubr.f32.mxu0 0.0
          %1229 = vmatmul.mubr.f32.gmra.mrb[0].mxu0 %v1128
          %v1230 = vpop.f32.mrb[0].mxu0
          %v1231 = vadd.f32 0.0, %v1230
          %v1232 = vpop.f32.mrb[0].mxu0
          %1233 = vmatprep.mubr.f32.mxu0 0.0
          %1234 = vmatmul.mubr.f32.gmra.mrb[0].mxu0 %v1129
          %v1235 = vpop.f32.mrb[0].mxu0
          %v1236 = vadd.f32 0.0, %v1235
          %v1237 = vpop.f32.mrb[0].mxu0
          %1238 = vmatprep.mubr.f32.mxu0 0.0
          %1239 = vmatmul.mubr.f32.gmra.mrb[0].mxu0 %v1130
          %v1240 = vpop.f32.mrb[0].mxu0
          %v1241 = vadd.f32 0.0, %v1240
          %v1242 = vpop.f32.mrb[0].mxu0
          %1243 = vmatprep.mubr.f32.mxu0 0.0
          %1244 = vmatmul.mubr.f32.gmra.mrb[0].mxu0 %v1131
          %v1245 = vpop.f32.mrb[0].mxu0
          %v1246 = vadd.f32 0.0, %v1245
          %v1247 = vpop.f32.mrb[0].mxu0
          %1248 = vmatprep.mubr.f32.mxu0 0.0
          %1249 = vmatmul.mubr.f32.gmra.mrb[0].mxu0 %v1132
          %v1250 = vpop.f32.mrb[0].mxu0
          %v1251 = vadd.f32 0.0, %v1250
          %v1252 = vpop.f32.mrb[0].mxu0
          %1253 = vdwg.mxu0
          %vm1254 = vcmp.gt.f32.partialorder %v1216, 0.0
          %vm1255 = vcmp.gt.f32.partialorder %v1221, 0.0
          %vm1256 = vcmp.gt.f32.partialorder %v1226, 0.0
          %vm1257 = vcmp.gt.f32.partialorder %v1231, 0.0
          %vm1258 = vcmp.gt.f32.partialorder %v1236, 0.0
          %vm1259 = vcmp.gt.f32.partialorder %v1241, 0.0
          %vm1260 = vcmp.gt.f32.partialorder %v1246, 0.0
          %vm1261 = vcmp.gt.f32.partialorder %v1251, 0.0
          %v1262 = vmul.f32 %v1216, 0.1
          %v1263 = vmul.f32 %v1221, 0.1
          %v1264 = vmul.f32 %v1226, 0.1
          %v1265 = vmul.f32 %v1231, 0.1
          %v1266 = vmul.f32 %v1236, 0.1
          %v1267 = vmul.f32 %v1241, 0.1
          %v1268 = vmul.f32 %v1246, 0.1
          %v1269 = vmul.f32 %v1251, 0.1
          %v1270 = vsel %vm1254, %v1216, %v1262
          %v1271 = vsel %vm1255, %v1221, %v1263
          %v1272 = vsel %vm1256, %v1226, %v1264
          %v1273 = vsel %vm1257, %v1231, %v1265
          %v1274 = vsel %vm1258, %v1236, %v1266
          %v1275 = vsel %vm1259, %v1241, %v1267
          %v1276 = vsel %vm1260, %v1246, %v1268
          %v1277 = vsel %vm1261, %v1251, %v1269
          %v1278 = vld [vmem:[#allocation18] sm:$0xff]
          %v1279 = vld [vmem:[#allocation18 + $0x8] sm:$0xff]
          %v1280 = vld [vmem:[#allocation18 + $0x10] sm:$0xff]
          %v1281 = vld [vmem:[#allocation18 + $0x18] sm:$0xff]
          %v1282 = vld [vmem:[#allocation18 + $0x20] sm:$0xff]
          %v1283 = vld [vmem:[#allocation18 + $0x28] sm:$0xff]
          %v1284 = vld [vmem:[#allocation18 + $0x30] sm:$0xff]
          %v1285 = vld [vmem:[#allocation18 + $0x38] sm:$0xff]
          %v1286 = vld [vmem:[#allocation18 + $0x40] sm:$0xff]
          %v1287 = vld [vmem:[#allocation18 + $0x48] sm:$0xff]
          %v1288 = vld [vmem:[#allocation18 + $0x50] sm:$0xff]
          %v1289 = vld [vmem:[#allocation18 + $0x58] sm:$0xff]
          %v1290 = vld [vmem:[#allocation18 + $0x60] sm:$0xff]
          %v1291 = vld [vmem:[#allocation18 + $0x68] sm:$0xff]
          %v1292 = vld [vmem:[#allocation18 + $0x70] sm:$0xff]
          %v1293 = vld [vmem:[#allocation18 + $0x78] sm:$0xff]
          %1294 = vmatprep.subr.mxu0 0.0
          %1295 = vmatpush1.msra.mxu0 %v1278
          %1296 = vmatprep.subr.mxu0 0.0
          %1297 = vmatpush1.msra.mxu0 %v1279
          %1298 = vmatprep.subr.mxu0 0.0
          %1299 = vmatpush1.msra.mxu0 %v1280
          %1300 = vmatprep.subr.mxu0 0.0
          %1301 = vmatpush1.msra.mxu0 %v1281
          %1302 = vmatprep.subr.mxu0 0.0
          %1303 = vmatpush1.msra.mxu0 %v1282
          %1304 = vmatprep.subr.mxu0 0.0
          %1305 = vmatpush1.msra.mxu0 %v1283
          %1306 = vmatprep.subr.mxu0 0.0
          %1307 = vmatpush1.msra.mxu0 %v1284
          %1308 = vmatprep.subr.mxu0 0.0
          %1309 = vmatpush1.msra.mxu0 %v1285
          %1310 = vmatprep.subr.mxu0 0.0
          %1311 = vmatpush1.msra.mxu0 %v1286
          %1312 = vmatprep.subr.mxu0 0.0
          %1313 = vmatpush1.msra.mxu0 %v1287
          %1314 = vmatprep.subr.mxu0 0.0
          %1315 = vmatpush1.msra.mxu0 %v1288
          %1316 = vmatprep.subr.mxu0 0.0
          %1317 = vmatpush1.msra.mxu0 %v1289
          %1318 = vmatprep.subr.mxu0 0.0
          %1319 = vmatpush1.msra.mxu0 %v1290
          %1320 = vmatprep.subr.mxu0 0.0
          %1321 = vmatpush1.msra.mxu0 %v1291
          %1322 = vmatprep.subr.mxu0 0.0
          %1323 = vmatpush1.msra.mxu0 %v1292
          %1324 = vmatprep.subr.mxu0 0.0
          %1325 = vmatpush1.msra.mxu0 %v1293
          %1326 = vmatprep.subr.mxu0 0.0
          %1327 = vmatpush1.msra.mxu0 0.0
          %1328 = vmatprep.subr.mxu0 0.0
          %1329 = vmatpush1.msra.mxu0 0.0
          %1330 = vmatprep.subr.mxu0 0.0
          %1331 = vmatpush1.msra.mxu0 0.0
          %1332 = vmatprep.subr.mxu0 0.0
          %1333 = vmatpush1.msra.mxu0 0.0
          %1334 = vmatprep.subr.mxu0 0.0
          %1335 = vmatpush1.msra.mxu0 0.0
          %1336 = vmatprep.subr.mxu0 0.0
          %1337 = vmatpush1.msra.mxu0 0.0
          %1338 = vmatprep.subr.mxu0 0.0
          %1339 = vmatpush1.msra.mxu0 0.0
          %1340 = vmatprep.subr.mxu0 0.0
          %1341 = vmatpush1.msra.mxu0 0.0
          %1342 = vmatprep.subr.mxu0 0.0
          %1343 = vmatpush1.msra.mxu0 0.0
          %1344 = vmatprep.subr.mxu0 0.0
          %1345 = vmatpush1.msra.mxu0 0.0
          %1346 = vmatprep.subr.mxu0 0.0
          %1347 = vmatpush1.msra.mxu0 0.0
          %1348 = vmatprep.subr.mxu0 0.0
          %1349 = vmatpush1.msra.mxu0 0.0
          %1350 = vmatprep.subr.mxu0 0.0
          %1351 = vmatpush1.msra.mxu0 0.0
          %1352 = vmatprep.subr.mxu0 0.0
          %1353 = vmatpush1.msra.mxu0 0.0
          %1354 = vmatprep.subr.mxu0 0.0
          %1355 = vmatpush1.msra.mxu0 0.0
          %1356 = vmatprep.subr.mxu0 0.0
          %1357 = vmatpush1.msra.mxu0 0.0
          %1358 = vmatprep.mubr.f32.mxu0 0.0
          %1359 = vmatmul.mubr.f32.gmra.mrb[0].mxu0 %v1270
          %v1360 = vpop.f32.mrb[0].mxu0
          %v1361 = vadd.f32 0.0, %v1360
          %v1362 = vpop.f32.mrb[0].mxu0
          %1363 = vmatprep.mubr.f32.mxu0 0.0
          %1364 = vmatmul.mubr.f32.gmra.mrb[0].mxu0 %v1271
          %v1365 = vpop.f32.mrb[0].mxu0
          %v1366 = vadd.f32 0.0, %v1365
          %v1367 = vpop.f32.mrb[0].mxu0
          %1368 = vmatprep.mubr.f32.mxu0 0.0
          %1369 = vmatmul.mubr.f32.gmra.mrb[0].mxu0 %v1272
          %v1370 = vpop.f32.mrb[0].mxu0
          %v1371 = vadd.f32 0.0, %v1370
          %v1372 = vpop.f32.mrb[0].mxu0
          %1373 = vmatprep.mubr.f32.mxu0 0.0
          %1374 = vmatmul.mubr.f32.gmra.mrb[0].mxu0 %v1273
          %v1375 = vpop.f32.mrb[0].mxu0
          %v1376 = vadd.f32 0.0, %v1375
          %v1377 = vpop.f32.mrb[0].mxu0
          %1378 = vmatprep.mubr.f32.mxu0 0.0
          %1379 = vmatmul.mubr.f32.gmra.mrb[0].mxu0 %v1274
          %v1380 = vpop.f32.mrb[0].mxu0
          %v1381 = vadd.f32 0.0, %v1380
          %v1382 = vpop.f32.mrb[0].mxu0
          %1383 = vmatprep.mubr.f32.mxu0 0.0
          %1384 = vmatmul.mubr.f32.gmra.mrb[0].mxu0 %v1275
          %v1385 = vpop.f32.mrb[0].mxu0
          %v1386 = vadd.f32 0.0, %v1385
          %v1387 = vpop.f32.mrb[0].mxu0
          %1388 = vmatprep.mubr.f32.mxu0 0.0
          %1389 = vmatmul.mubr.f32.gmra.mrb[0].mxu0 %v1276
          %v1390 = vpop.f32.mrb[0].mxu0
          %v1391 = vadd.f32 0.0, %v1390
          %v1392 = vpop.f32.mrb[0].mxu0
          %1393 = vmatprep.mubr.f32.mxu0 0.0
          %1394 = vmatmul.mubr.f32.gmra.mrb[0].mxu0 %v1277
          %v1395 = vpop.f32.mrb[0].mxu0
          %v1396 = vadd.f32 0.0, %v1395
          %v1397 = vpop.f32.mrb[0].mxu0
          %1398 = vdwg.mxu0
          %s1399 = smul.u32 %s51, 64
          %s1400 = ssub.s32 %s51, 2
          %s1401 = smul.u32 %s1400, 64
          %s1402 = sadd.s32 %s1401, 128
          %s1403 = scalar_select %p411, %s1399, %s1402
          // Predicated region
          $region97: #{stargcn_forward.1} parent=95 // pred_check
            %p1404 = pneg %p412
          $region98: #{stargcn_forward.1} parent=95 // pred_check_branch
            %1406 = sbr.rel (%p1404) target = $region100
          $region99: #{stargcn_forward.1} parent=95 // pred_region
            %s1407 = scalar_lea.vmem [#allocation3], %s1403
            %1408 = vst [vmem:[%s1407] sm:$0xff] %v1361
            %1409 = vst [vmem:[%s1407 + $0x8] sm:$0xff] %v1366
            %1410 = vst [vmem:[%s1407 + $0x10] sm:$0xff] %v1371
            %1411 = vst [vmem:[%s1407 + $0x18] sm:$0xff] %v1376
            %1412 = vst [vmem:[%s1407 + $0x20] sm:$0xff] %v1381
            %1413 = vst [vmem:[%s1407 + $0x28] sm:$0xff] %v1386
            %1414 = vst [vmem:[%s1407 + $0x30] sm:$0xff] %v1391
            %1415 = vst [vmem:[%s1407 + $0x38] sm:$0xff] %v1396
          $region100: #{stargcn_forward.1} parent=95 // pred_fallthru
            _
          %s1416 = sld [smem:[#allocation10 + %s51]]
          %p1417 = scmp.ne.s32.totalorder %s1416, 0
          // Predicated region
          $region101: #{stargcn_forward.1} parent=95 // pred_check
            %p1418 = pneg %p1417
          $region102: #{stargcn_forward.1} parent=95 // pred_check_branch
            %1420 = sbr.rel (%p1418) target = $region104
          $region103: #{stargcn_forward.1} parent=95 // pred_region
            %1421 = vst [vmem:[#allocation2] sm:$0xff] %v1361
            %1422 = vst [vmem:[#allocation2 + $0x8] sm:$0xff] %v1366
            %1423 = vst [vmem:[#allocation2 + $0x10] sm:$0xff] %v1371
            %1424 = vst [vmem:[#allocation2 + $0x18] sm:$0xff] %v1376
            %1425 = vst [vmem:[#allocation2 + $0x20] sm:$0xff] %v1381
            %1426 = vst [vmem:[#allocation2 + $0x28] sm:$0xff] %v1386
            %1427 = vst [vmem:[#allocation2 + $0x30] sm:$0xff] %v1391
            %1428 = vst [vmem:[#allocation2 + $0x38] sm:$0xff] %v1396
            // Predicated region
            $region105: #{stargcn_forward.1} parent=103 // pred_check
              %p1429 = pneg %p412
            $region106: #{stargcn_forward.1} parent=103 // pred_check_branch
              %1431 = sbr.rel (%p1429) target = $region108
            $region107: #{stargcn_forward.1} parent=103 // pred_region
              %s1432 = sld [smem:[#allocation7]]
              %s1433 = ssub.s32 %s1432, %s1403
              %p1434 = scmp.ge.s32.totalorder %s1433, 0
              %p1435 = scmp.lt.s32.totalorder %s1433, 64
              %p1436 = pnand %p1434, %p1435
              %p1437 = pneg %p1436
              // Predicated region
              $region109: #{stargcn_forward.1} parent=107 // pred_check
                _
              $region110: #{stargcn_forward.1} parent=107 // pred_check_branch
                %1439 = sbr.rel (%p1436) target = $region112
              $region111: #{stargcn_forward.1} parent=107 // pred_region
                %s1440 = scalar_lea.vmem [#allocation2], %s1433
                %v1441 = vld [vmem:[%s1440] sm:$0x1]
                %1442 = vst [vmem:[#allocation4] sm:$0x1] %v1441
              $region112: #{stargcn_forward.1} parent=107 // pred_fallthru
                _
              %s1443 = sld [smem:[#allocation7 + $0x1]]
              %s1444 = ssub.s32 %s1443, %s1403
              %p1445 = scmp.ge.s32.totalorder %s1444, 0
              %p1446 = scmp.lt.s32.totalorder %s1444, 64
              %p1447 = pnand %p1445, %p1446
              %p1448 = pneg %p1447
              // Predicated region
              $region113: #{stargcn_forward.1} parent=107 // pred_check
                _
              $region114: #{stargcn_forward.1} parent=107 // pred_check_branch
                %1450 = sbr.rel (%p1447) target = $region116
              $region115: #{stargcn_forward.1} parent=107 // pred_region
                %s1451 = scalar_lea.vmem [#allocation2], %s1444
                %v1452 = vld [vmem:[%s1451] sm:$0x1]
                %1453 = vst [vmem:[#allocation4 + $0x1] sm:$0x1] %v1452
              $region116: #{stargcn_forward.1} parent=107 // pred_fallthru
                _
              %s1454 = sld [smem:[#allocation7 + $0x2]]
              %s1455 = ssub.s32 %s1454, %s1403
              %p1456 = scmp.ge.s32.totalorder %s1455, 0
              %p1457 = scmp.lt.s32.totalorder %s1455, 64
              %p1458 = pnand %p1456, %p1457
              %p1459 = pneg %p1458
              // Predicated region
              $region117: #{stargcn_forward.1} parent=107 // pred_check
                _
              $region118: #{stargcn_forward.1} parent=107 // pred_check_branch
                %1461 = sbr.rel (%p1458) target = $region120
              $region119: #{stargcn_forward.1} parent=107 // pred_region
                %s1462 = scalar_lea.vmem [#allocation2], %s1455
                %v1463 = vld [vmem:[%s1462] sm:$0x1]
                %1464 = vst [vmem:[#allocation4 + $0x2] sm:$0x1] %v1463
              $region120: #{stargcn_forward.1} parent=107 // pred_fallthru
                _
              %s1465 = sld [smem:[#allocation7 + $0x3]]
              %s1466 = ssub.s32 %s1465, %s1403
              %p1467 = scmp.ge.s32.totalorder %s1466, 0
              %p1468 = scmp.lt.s32.totalorder %s1466, 64
              %p1469 = pnand %p1467, %p1468
              %p1470 = pneg %p1469
              // Predicated region
              $region121: #{stargcn_forward.1} parent=107 // pred_check
                _
              $region122: #{stargcn_forward.1} parent=107 // pred_check_branch
                %1472 = sbr.rel (%p1469) target = $region124
              $region123: #{stargcn_forward.1} parent=107 // pred_region
                %s1473 = scalar_lea.vmem [#allocation2], %s1466
                %v1474 = vld [vmem:[%s1473] sm:$0x1]
                %1475 = vst [vmem:[#allocation4 + $0x3] sm:$0x1] %v1474
              $region124: #{stargcn_forward.1} parent=107 // pred_fallthru
                _
              %s1476 = sld [smem:[#allocation7 + $0x4]]
              %s1477 = ssub.s32 %s1476, %s1403
              %p1478 = scmp.ge.s32.totalorder %s1477, 0
              %p1479 = scmp.lt.s32.totalorder %s1477, 64
              %p1480 = pnand %p1478, %p1479
              %p1481 = pneg %p1480
              // Predicated region
              $region125: #{stargcn_forward.1} parent=107 // pred_check
                _
              $region126: #{stargcn_forward.1} parent=107 // pred_check_branch
                %1483 = sbr.rel (%p1480) target = $region128
              $region127: #{stargcn_forward.1} parent=107 // pred_region
                %s1484 = scalar_lea.vmem [#allocation2], %s1477
                %v1485 = vld [vmem:[%s1484] sm:$0x1]
                %1486 = vst [vmem:[#allocation4 + $0x4] sm:$0x1] %v1485
              $region128: #{stargcn_forward.1} parent=107 // pred_fallthru
                _
              %s1487 = sld [smem:[#allocation7 + $0x5]]
              %s1488 = ssub.s32 %s1487, %s1403
              %p1489 = scmp.ge.s32.totalorder %s1488, 0
              %p1490 = scmp.lt.s32.totalorder %s1488, 64
              %p1491 = pnand %p1489, %p1490
              %p1492 = pneg %p1491
              // Predicated region
              $region129: #{stargcn_forward.1} parent=107 // pred_check
                _
              $region130: #{stargcn_forward.1} parent=107 // pred_check_branch
                %1494 = sbr.rel (%p1491) target = $region132
              $region131: #{stargcn_forward.1} parent=107 // pred_region
                %s1495 = scalar_lea.vmem [#allocation2], %s1488
                %v1496 = vld [vmem:[%s1495] sm:$0x1]
                %1497 = vst [vmem:[#allocation4 + $0x5] sm:$0x1] %v1496
              $region132: #{stargcn_forward.1} parent=107 // pred_fallthru
                _
              %s1498 = sld [smem:[#allocation7 + $0x6]]
              %s1499 = ssub.s32 %s1498, %s1403
              %p1500 = scmp.ge.s32.totalorder %s1499, 0
              %p1501 = scmp.lt.s32.totalorder %s1499, 64
              %p1502 = pnand %p1500, %p1501
              %p1503 = pneg %p1502
              // Predicated region
              $region133: #{stargcn_forward.1} parent=107 // pred_check
                _
              $region134: #{stargcn_forward.1} parent=107 // pred_check_branch
                %1505 = sbr.rel (%p1502) target = $region136
              $region135: #{stargcn_forward.1} parent=107 // pred_region
                %s1506 = scalar_lea.vmem [#allocation2], %s1499
                %v1507 = vld [vmem:[%s1506] sm:$0x1]
                %1508 = vst [vmem:[#allocation4 + $0x6] sm:$0x1] %v1507
              $region136: #{stargcn_forward.1} parent=107 // pred_fallthru
                _
              %s1509 = sld [smem:[#allocation7 + $0x7]]
              %s1510 = ssub.s32 %s1509, %s1403
              %p1511 = scmp.ge.s32.totalorder %s1510, 0
              %p1512 = scmp.lt.s32.totalorder %s1510, 64
              %p1513 = pnand %p1511, %p1512
              %p1514 = pneg %p1513
              // Predicated region
              $region137: #{stargcn_forward.1} parent=107 // pred_check
                _
              $region138: #{stargcn_forward.1} parent=107 // pred_check_branch
                %1516 = sbr.rel (%p1513) target = $region140
              $region139: #{stargcn_forward.1} parent=107 // pred_region
                %s1517 = scalar_lea.vmem [#allocation2], %s1510
                %v1518 = vld [vmem:[%s1517] sm:$0x1]
                %1519 = vst [vmem:[#allocation4 + $0x7] sm:$0x1] %v1518
              $region140: #{stargcn_forward.1} parent=107 // pred_fallthru
                _
              %s1520 = sld [smem:[#allocation8]]
              %s1521 = ssub.s32 %s1520, %s1403
              %p1522 = scmp.ge.s32.totalorder %s1521, 0
              %p1523 = scmp.lt.s32.totalorder %s1521, 64
              %p1524 = pnand %p1522, %p1523
              %p1525 = pneg %p1524
              // Predicated region
              $region141: #{stargcn_forward.1} parent=107 // pred_check
                _
              $region142: #{stargcn_forward.1} parent=107 // pred_check_branch
                %1527 = sbr.rel (%p1524) target = $region144
              $region143: #{stargcn_forward.1} parent=107 // pred_region
                %s1528 = scalar_lea.vmem [#allocation2], %s1521
                %v1529 = vld [vmem:[%s1528] sm:$0x1]
                %1530 = vst [vmem:[#allocation4 + $0x8] sm:$0x1] %v1529
              $region144: #{stargcn_forward.1} parent=107 // pred_fallthru
                _
              %s1531 = sld [smem:[#allocation8 + $0x1]]
              %s1532 = ssub.s32 %s1531, %s1403
              %p1533 = scmp.ge.s32.totalorder %s1532, 0
              %p1534 = scmp.lt.s32.totalorder %s1532, 64
              %p1535 = pnand %p1533, %p1534
              %p1536 = pneg %p1535
              // Predicated region
              $region145: #{stargcn_forward.1} parent=107 // pred_check
                _
              $region146: #{stargcn_forward.1} parent=107 // pred_check_branch
                %1538 = sbr.rel (%p1535) target = $region148
              $region147: #{stargcn_forward.1} parent=107 // pred_region
                %s1539 = scalar_lea.vmem [#allocation2], %s1532
                %v1540 = vld [vmem:[%s1539] sm:$0x1]
                %1541 = vst [vmem:[#allocation4 + $0x9] sm:$0x1] %v1540
              $region148: #{stargcn_forward.1} parent=107 // pred_fallthru
                _
              %s1542 = sld [smem:[#allocation8 + $0x2]]
              %s1543 = ssub.s32 %s1542, %s1403
              %p1544 = scmp.ge.s32.totalorder %s1543, 0
              %p1545 = scmp.lt.s32.totalorder %s1543, 64
              %p1546 = pnand %p1544, %p1545
              %p1547 = pneg %p1546
              // Predicated region
              $region149: #{stargcn_forward.1} parent=107 // pred_check
                _
              $region150: #{stargcn_forward.1} parent=107 // pred_check_branch
                %1549 = sbr.rel (%p1546) target = $region152
              $region151: #{stargcn_forward.1} parent=107 // pred_region
                %s1550 = scalar_lea.vmem [#allocation2], %s1543
                %v1551 = vld [vmem:[%s1550] sm:$0x1]
                %1552 = vst [vmem:[#allocation4 + $0xa] sm:$0x1] %v1551
              $region152: #{stargcn_forward.1} parent=107 // pred_fallthru
                _
              %s1553 = sld [smem:[#allocation8 + $0x3]]
              %s1554 = ssub.s32 %s1553, %s1403
              %p1555 = scmp.ge.s32.totalorder %s1554, 0
              %p1556 = scmp.lt.s32.totalorder %s1554, 64
              %p1557 = pnand %p1555, %p1556
              %p1558 = pneg %p1557
              // Predicated region
              $region153: #{stargcn_forward.1} parent=107 // pred_check
                _
              $region154: #{stargcn_forward.1} parent=107 // pred_check_branch
                %1560 = sbr.rel (%p1557) target = $region156
              $region155: #{stargcn_forward.1} parent=107 // pred_region
                %s1561 = scalar_lea.vmem [#allocation2], %s1554
                %v1562 = vld [vmem:[%s1561] sm:$0x1]
                %1563 = vst [vmem:[#allocation4 + $0xb] sm:$0x1] %v1562
              $region156: #{stargcn_forward.1} parent=107 // pred_fallthru
                _
              %s1564 = sld [smem:[#allocation8 + $0x4]]
              %s1565 = ssub.s32 %s1564, %s1403
              %p1566 = scmp.ge.s32.totalorder %s1565, 0
              %p1567 = scmp.lt.s32.totalorder %s1565, 64
              %p1568 = pnand %p1566, %p1567
              %p1569 = pneg %p1568
              // Predicated region
              $region157: #{stargcn_forward.1} parent=107 // pred_check
                _
              $region158: #{stargcn_forward.1} parent=107 // pred_check_branch
                %1571 = sbr.rel (%p1568) target = $region160
              $region159: #{stargcn_forward.1} parent=107 // pred_region
                %s1572 = scalar_lea.vmem [#allocation2], %s1565
                %v1573 = vld [vmem:[%s1572] sm:$0x1]
                %1574 = vst [vmem:[#allocation4 + $0xc] sm:$0x1] %v1573
              $region160: #{stargcn_forward.1} parent=107 // pred_fallthru
                _
              %s1575 = sld [smem:[#allocation8 + $0x5]]
              %s1576 = ssub.s32 %s1575, %s1403
              %p1577 = scmp.ge.s32.totalorder %s1576, 0
              %p1578 = scmp.lt.s32.totalorder %s1576, 64
              %p1579 = pnand %p1577, %p1578
              %p1580 = pneg %p1579
              // Predicated region
              $region161: #{stargcn_forward.1} parent=107 // pred_check
                _
              $region162: #{stargcn_forward.1} parent=107 // pred_check_branch
                %1582 = sbr.rel (%p1579) target = $region164
              $region163: #{stargcn_forward.1} parent=107 // pred_region
                %s1583 = scalar_lea.vmem [#allocation2], %s1576
                %v1584 = vld [vmem:[%s1583] sm:$0x1]
                %1585 = vst [vmem:[#allocation4 + $0xd] sm:$0x1] %v1584
              $region164: #{stargcn_forward.1} parent=107 // pred_fallthru
                _
              %s1586 = sld [smem:[#allocation8 + $0x6]]
              %s1587 = ssub.s32 %s1586, %s1403
              %p1588 = scmp.ge.s32.totalorder %s1587, 0
              %p1589 = scmp.lt.s32.totalorder %s1587, 64
              %p1590 = pnand %p1588, %p1589
              %p1591 = pneg %p1590
              // Predicated region
              $region165: #{stargcn_forward.1} parent=107 // pred_check
                _
              $region166: #{stargcn_forward.1} parent=107 // pred_check_branch
                %1593 = sbr.rel (%p1590) target = $region168
              $region167: #{stargcn_forward.1} parent=107 // pred_region
                %s1594 = scalar_lea.vmem [#allocation2], %s1587
                %v1595 = vld [vmem:[%s1594] sm:$0x1]
                %1596 = vst [vmem:[#allocation4 + $0xe] sm:$0x1] %v1595
              $region168: #{stargcn_forward.1} parent=107 // pred_fallthru
                _
              %s1597 = sld [smem:[#allocation8 + $0x7]]
              %s1598 = ssub.s32 %s1597, %s1403
              %p1599 = scmp.ge.s32.totalorder %s1598, 0
              %p1600 = scmp.lt.s32.totalorder %s1598, 64
              %p1601 = pnand %p1599, %p1600
              %p1602 = pneg %p1601
              // Predicated region
              $region169: #{stargcn_forward.1} parent=107 // pred_check
                _
              $region170: #{stargcn_forward.1} parent=107 // pred_check_branch
                %1604 = sbr.rel (%p1601) target = $region172
              $region171: #{stargcn_forward.1} parent=107 // pred_region
                %s1605 = scalar_lea.vmem [#allocation2], %s1598
                %v1606 = vld [vmem:[%s1605] sm:$0x1]
                %1607 = vst [vmem:[#allocation4 + $0xf] sm:$0x1] %v1606
              $region172: #{stargcn_forward.1} parent=107 // pred_fallthru
                _
              %s1608 = sld [smem:[#allocation9]]
              %s1609 = ssub.s32 %s1608, %s1403
              %p1610 = scmp.ge.s32.totalorder %s1609, 0
              %p1611 = scmp.lt.s32.totalorder %s1609, 64
              %p1612 = pnand %p1610, %p1611
              %p1613 = pneg %p1612
              // Predicated region
              $region173: #{stargcn_forward.1} parent=107 // pred_check
                _
              $region174: #{stargcn_forward.1} parent=107 // pred_check_branch
                %1615 = sbr.rel (%p1612) target = $region176
              $region175: #{stargcn_forward.1} parent=107 // pred_region
                %s1616 = scalar_lea.vmem [#allocation2], %s1609
                %v1617 = vld [vmem:[%s1616] sm:$0x1]
                %1618 = vst [vmem:[#allocation4 + $0x10] sm:$0x1] %v1617
              $region176: #{stargcn_forward.1} parent=107 // pred_fallthru
                _
              %s1619 = sld [smem:[#allocation9 + $0x1]]
              %s1620 = ssub.s32 %s1619, %s1403
              %p1621 = scmp.ge.s32.totalorder %s1620, 0
              %p1622 = scmp.lt.s32.totalorder %s1620, 64
              %p1623 = pnand %p1621, %p1622
              %p1624 = pneg %p1623
              // Predicated region
              $region177: #{stargcn_forward.1} parent=107 // pred_check
                _
              $region178: #{stargcn_forward.1} parent=107 // pred_check_branch
                %1626 = sbr.rel (%p1623) target = $region180
              $region179: #{stargcn_forward.1} parent=107 // pred_region
                %s1627 = scalar_lea.vmem [#allocation2], %s1620
                %v1628 = vld [vmem:[%s1627] sm:$0x1]
                %1629 = vst [vmem:[#allocation4 + $0x11] sm:$0x1] %v1628
              $region180: #{stargcn_forward.1} parent=107 // pred_fallthru
                _
              %s1630 = sld [smem:[#allocation9 + $0x2]]
              %s1631 = ssub.s32 %s1630, %s1403
              %p1632 = scmp.ge.s32.totalorder %s1631, 0
              %p1633 = scmp.lt.s32.totalorder %s1631, 64
              %p1634 = pnand %p1632, %p1633
              %p1635 = pneg %p1634
              // Predicated region
              $region181: #{stargcn_forward.1} parent=107 // pred_check
                _
              $region182: #{stargcn_forward.1} parent=107 // pred_check_branch
                %1637 = sbr.rel (%p1634) target = $region184
              $region183: #{stargcn_forward.1} parent=107 // pred_region
                %s1638 = scalar_lea.vmem [#allocation2], %s1631
                %v1639 = vld [vmem:[%s1638] sm:$0x1]
                %1640 = vst [vmem:[#allocation4 + $0x12] sm:$0x1] %v1639
              $region184: #{stargcn_forward.1} parent=107 // pred_fallthru
                _
              %s1641 = sld [smem:[#allocation9 + $0x3]]
              %s1642 = ssub.s32 %s1641, %s1403
              %p1643 = scmp.ge.s32.totalorder %s1642, 0
              %p1644 = scmp.lt.s32.totalorder %s1642, 64
              %p1645 = pnand %p1643, %p1644
              %p1646 = pneg %p1645
              // Predicated region
              $region185: #{stargcn_forward.1} parent=107 // pred_check
                _
              $region186: #{stargcn_forward.1} parent=107 // pred_check_branch
                %1648 = sbr.rel (%p1645) target = $region188
              $region187: #{stargcn_forward.1} parent=107 // pred_region
                %s1649 = scalar_lea.vmem [#allocation2], %s1642
                %v1650 = vld [vmem:[%s1649] sm:$0x1]
                %1651 = vst [vmem:[#allocation4 + $0x13] sm:$0x1] %v1650
              $region188: #{stargcn_forward.1} parent=107 // pred_fallthru
                _
              %s1652 = sld [smem:[#allocation9 + $0x4]]
              %s1653 = ssub.s32 %s1652, %s1403
              %p1654 = scmp.ge.s32.totalorder %s1653, 0
              %p1655 = scmp.lt.s32.totalorder %s1653, 64
              %p1656 = pnand %p1654, %p1655
              %p1657 = pneg %p1656
              // Predicated region
              $region189: #{stargcn_forward.1} parent=107 // pred_check
                _
              $region190: #{stargcn_forward.1} parent=107 // pred_check_branch
                %1659 = sbr.rel (%p1656) target = $region192
              $region191: #{stargcn_forward.1} parent=107 // pred_region
                %s1660 = scalar_lea.vmem [#allocation2], %s1653
                %v1661 = vld [vmem:[%s1660] sm:$0x1]
                %1662 = vst [vmem:[#allocation4 + $0x14] sm:$0x1] %v1661
              $region192: #{stargcn_forward.1} parent=107 // pred_fallthru
                _
              %s1663 = sld [smem:[#allocation9 + $0x5]]
              %s1664 = ssub.s32 %s1663, %s1403
              %p1665 = scmp.ge.s32.totalorder %s1664, 0
              %p1666 = scmp.lt.s32.totalorder %s1664, 64
              %p1667 = pnand %p1665, %p1666
              %p1668 = pneg %p1667
              // Predicated region
              $region193: #{stargcn_forward.1} parent=107 // pred_check
                _
              $region194: #{stargcn_forward.1} parent=107 // pred_check_branch
                %1670 = sbr.rel (%p1667) target = $region196
              $region195: #{stargcn_forward.1} parent=107 // pred_region
                %s1671 = scalar_lea.vmem [#allocation2], %s1664
                %v1672 = vld [vmem:[%s1671] sm:$0x1]
                %1673 = vst [vmem:[#allocation4 + $0x15] sm:$0x1] %v1672
              $region196: #{stargcn_forward.1} parent=107 // pred_fallthru
                _
              %s1674 = sld [smem:[#allocation9 + $0x6]]
              %s1675 = ssub.s32 %s1674, %s1403
              %p1676 = scmp.ge.s32.totalorder %s1675, 0
              %p1677 = scmp.lt.s32.totalorder %s1675, 64
              %p1678 = pnand %p1676, %p1677
              %p1679 = pneg %p1678
              // Predicated region
              $region197: #{stargcn_forward.1} parent=107 // pred_check
                _
              $region198: #{stargcn_forward.1} parent=107 // pred_check_branch
                %1681 = sbr.rel (%p1678) target = $region200
              $region199: #{stargcn_forward.1} parent=107 // pred_region
                %s1682 = scalar_lea.vmem [#allocation2], %s1675
                %v1683 = vld [vmem:[%s1682] sm:$0x1]
                %1684 = vst [vmem:[#allocation4 + $0x16] sm:$0x1] %v1683
              $region200: #{stargcn_forward.1} parent=107 // pred_fallthru
                _
              %s1685 = sld [smem:[#allocation9 + $0x7]]
              %s1686 = ssub.s32 %s1685, %s1403
              %p1687 = scmp.ge.s32.totalorder %s1686, 0
              %p1688 = scmp.lt.s32.totalorder %s1686, 64
              %p1689 = pnand %p1687, %p1688
              %p1690 = pneg %p1689
              // Predicated region
              $region201: #{stargcn_forward.1} parent=107 // pred_check
                _
              $region202: #{stargcn_forward.1} parent=107 // pred_check_branch
                %1692 = sbr.rel (%p1689) target = $region204
              $region203: #{stargcn_forward.1} parent=107 // pred_region
                %s1693 = scalar_lea.vmem [#allocation2], %s1686
                %v1694 = vld [vmem:[%s1693] sm:$0x1]
                %1695 = vst [vmem:[#allocation4 + $0x17] sm:$0x1] %v1694
              $region204: #{stargcn_forward.1} parent=107 // pred_fallthru
                _
            $region108: #{stargcn_forward.1} parent=103 // pred_fallthru
              _
            // Predicated region
            $region205: #{stargcn_forward.1} parent=103 // pred_check
              %p1696 = pneg %p771
            $region206: #{stargcn_forward.1} parent=103 // pred_check_branch
              %1698 = sbr.rel (%p1696) target = $region208
            $region207: #{stargcn_forward.1} parent=103 // pred_region
              %s1699 = sld [smem:[#allocation7]]
              %s1700 = ssub.s32 %s1699, %s1403
              %p1701 = scmp.ge.s32.totalorder %s1700, 0
              %p1702 = scmp.lt.s32.totalorder %s1700, 64
              %p1703 = pnand %p1701, %p1702
              %p1704 = pneg %p1703
              // Predicated region
              $region209: #{stargcn_forward.1} parent=207 // pred_check
                _
              $region210: #{stargcn_forward.1} parent=207 // pred_check_branch
                %1706 = sbr.rel (%p1703) target = $region212
              $region211: #{stargcn_forward.1} parent=207 // pred_region
                %s1707 = scalar_lea.vmem [#allocation2], %s1700
                %v1708 = vld [vmem:[%s1707] sm:$0x1]
                %1709 = vst [vmem:[#allocation5] sm:$0x1] %v1708
              $region212: #{stargcn_forward.1} parent=207 // pred_fallthru
                _
              %s1710 = sld [smem:[#allocation7 + $0x1]]
              %s1711 = ssub.s32 %s1710, %s1403
              %p1712 = scmp.ge.s32.totalorder %s1711, 0
              %p1713 = scmp.lt.s32.totalorder %s1711, 64
              %p1714 = pnand %p1712, %p1713
              %p1715 = pneg %p1714
              // Predicated region
              $region213: #{stargcn_forward.1} parent=207 // pred_check
                _
              $region214: #{stargcn_forward.1} parent=207 // pred_check_branch
                %1717 = sbr.rel (%p1714) target = $region216
              $region215: #{stargcn_forward.1} parent=207 // pred_region
                %s1718 = scalar_lea.vmem [#allocation2], %s1711
                %v1719 = vld [vmem:[%s1718] sm:$0x1]
                %1720 = vst [vmem:[#allocation5 + $0x1] sm:$0x1] %v1719
              $region216: #{stargcn_forward.1} parent=207 // pred_fallthru
                _
              %s1721 = sld [smem:[#allocation7 + $0x2]]
              %s1722 = ssub.s32 %s1721, %s1403
              %p1723 = scmp.ge.s32.totalorder %s1722, 0
              %p1724 = scmp.lt.s32.totalorder %s1722, 64
              %p1725 = pnand %p1723, %p1724
              %p1726 = pneg %p1725
              // Predicated region
              $region217: #{stargcn_forward.1} parent=207 // pred_check
                _
              $region218: #{stargcn_forward.1} parent=207 // pred_check_branch
                %1728 = sbr.rel (%p1725) target = $region220
              $region219: #{stargcn_forward.1} parent=207 // pred_region
                %s1729 = scalar_lea.vmem [#allocation2], %s1722
                %v1730 = vld [vmem:[%s1729] sm:$0x1]
                %1731 = vst [vmem:[#allocation5 + $0x2] sm:$0x1] %v1730
              $region220: #{stargcn_forward.1} parent=207 // pred_fallthru
                _
              %s1732 = sld [smem:[#allocation7 + $0x3]]
              %s1733 = ssub.s32 %s1732, %s1403
              %p1734 = scmp.ge.s32.totalorder %s1733, 0
              %p1735 = scmp.lt.s32.totalorder %s1733, 64
              %p1736 = pnand %p1734, %p1735
              %p1737 = pneg %p1736
              // Predicated region
              $region221: #{stargcn_forward.1} parent=207 // pred_check
                _
              $region222: #{stargcn_forward.1} parent=207 // pred_check_branch
                %1739 = sbr.rel (%p1736) target = $region224
              $region223: #{stargcn_forward.1} parent=207 // pred_region
                %s1740 = scalar_lea.vmem [#allocation2], %s1733
                %v1741 = vld [vmem:[%s1740] sm:$0x1]
                %1742 = vst [vmem:[#allocation5 + $0x3] sm:$0x1] %v1741
              $region224: #{stargcn_forward.1} parent=207 // pred_fallthru
                _
              %s1743 = sld [smem:[#allocation7 + $0x4]]
              %s1744 = ssub.s32 %s1743, %s1403
              %p1745 = scmp.ge.s32.totalorder %s1744, 0
              %p1746 = scmp.lt.s32.totalorder %s1744, 64
              %p1747 = pnand %p1745, %p1746
              %p1748 = pneg %p1747
              // Predicated region
              $region225: #{stargcn_forward.1} parent=207 // pred_check
                _
              $region226: #{stargcn_forward.1} parent=207 // pred_check_branch
                %1750 = sbr.rel (%p1747) target = $region228
              $region227: #{stargcn_forward.1} parent=207 // pred_region
                %s1751 = scalar_lea.vmem [#allocation2], %s1744
                %v1752 = vld [vmem:[%s1751] sm:$0x1]
                %1753 = vst [vmem:[#allocation5 + $0x4] sm:$0x1] %v1752
              $region228: #{stargcn_forward.1} parent=207 // pred_fallthru
                _
              %s1754 = sld [smem:[#allocation7 + $0x5]]
              %s1755 = ssub.s32 %s1754, %s1403
              %p1756 = scmp.ge.s32.totalorder %s1755, 0
              %p1757 = scmp.lt.s32.totalorder %s1755, 64
              %p1758 = pnand %p1756, %p1757
              %p1759 = pneg %p1758
              // Predicated region
              $region229: #{stargcn_forward.1} parent=207 // pred_check
                _
              $region230: #{stargcn_forward.1} parent=207 // pred_check_branch
                %1761 = sbr.rel (%p1758) target = $region232
              $region231: #{stargcn_forward.1} parent=207 // pred_region
                %s1762 = scalar_lea.vmem [#allocation2], %s1755
                %v1763 = vld [vmem:[%s1762] sm:$0x1]
                %1764 = vst [vmem:[#allocation5 + $0x5] sm:$0x1] %v1763
              $region232: #{stargcn_forward.1} parent=207 // pred_fallthru
                _
              %s1765 = sld [smem:[#allocation7 + $0x6]]
              %s1766 = ssub.s32 %s1765, %s1403
              %p1767 = scmp.ge.s32.totalorder %s1766, 0
              %p1768 = scmp.lt.s32.totalorder %s1766, 64
              %p1769 = pnand %p1767, %p1768
              %p1770 = pneg %p1769
              // Predicated region
              $region233: #{stargcn_forward.1} parent=207 // pred_check
                _
              $region234: #{stargcn_forward.1} parent=207 // pred_check_branch
                %1772 = sbr.rel (%p1769) target = $region236
              $region235: #{stargcn_forward.1} parent=207 // pred_region
                %s1773 = scalar_lea.vmem [#allocation2], %s1766
                %v1774 = vld [vmem:[%s1773] sm:$0x1]
                %1775 = vst [vmem:[#allocation5 + $0x6] sm:$0x1] %v1774
              $region236: #{stargcn_forward.1} parent=207 // pred_fallthru
                _
              %s1776 = sld [smem:[#allocation7 + $0x7]]
              %s1777 = ssub.s32 %s1776, %s1403
              %p1778 = scmp.ge.s32.totalorder %s1777, 0
              %p1779 = scmp.lt.s32.totalorder %s1777, 64
              %p1780 = pnand %p1778, %p1779
              %p1781 = pneg %p1780
              // Predicated region
              $region237: #{stargcn_forward.1} parent=207 // pred_check
                _
              $region238: #{stargcn_forward.1} parent=207 // pred_check_branch
                %1783 = sbr.rel (%p1780) target = $region240
              $region239: #{stargcn_forward.1} parent=207 // pred_region
                %s1784 = scalar_lea.vmem [#allocation2], %s1777
                %v1785 = vld [vmem:[%s1784] sm:$0x1]
                %1786 = vst [vmem:[#allocation5 + $0x7] sm:$0x1] %v1785
              $region240: #{stargcn_forward.1} parent=207 // pred_fallthru
                _
              %s1787 = sld [smem:[#allocation8]]
              %s1788 = ssub.s32 %s1787, %s1403
              %p1789 = scmp.ge.s32.totalorder %s1788, 0
              %p1790 = scmp.lt.s32.totalorder %s1788, 64
              %p1791 = pnand %p1789, %p1790
              %p1792 = pneg %p1791
              // Predicated region
              $region241: #{stargcn_forward.1} parent=207 // pred_check
                _
              $region242: #{stargcn_forward.1} parent=207 // pred_check_branch
                %1794 = sbr.rel (%p1791) target = $region244
              $region243: #{stargcn_forward.1} parent=207 // pred_region
                %s1795 = scalar_lea.vmem [#allocation2], %s1788
                %v1796 = vld [vmem:[%s1795] sm:$0x1]
                %1797 = vst [vmem:[#allocation5 + $0x8] sm:$0x1] %v1796
              $region244: #{stargcn_forward.1} parent=207 // pred_fallthru
                _
              %s1798 = sld [smem:[#allocation8 + $0x1]]
              %s1799 = ssub.s32 %s1798, %s1403
              %p1800 = scmp.ge.s32.totalorder %s1799, 0
              %p1801 = scmp.lt.s32.totalorder %s1799, 64
              %p1802 = pnand %p1800, %p1801
              %p1803 = pneg %p1802
              // Predicated region
              $region245: #{stargcn_forward.1} parent=207 // pred_check
                _
              $region246: #{stargcn_forward.1} parent=207 // pred_check_branch
                %1805 = sbr.rel (%p1802) target = $region248
              $region247: #{stargcn_forward.1} parent=207 // pred_region
                %s1806 = scalar_lea.vmem [#allocation2], %s1799
                %v1807 = vld [vmem:[%s1806] sm:$0x1]
                %1808 = vst [vmem:[#allocation5 + $0x9] sm:$0x1] %v1807
              $region248: #{stargcn_forward.1} parent=207 // pred_fallthru
                _
              %s1809 = sld [smem:[#allocation8 + $0x2]]
              %s1810 = ssub.s32 %s1809, %s1403
              %p1811 = scmp.ge.s32.totalorder %s1810, 0
              %p1812 = scmp.lt.s32.totalorder %s1810, 64
              %p1813 = pnand %p1811, %p1812
              %p1814 = pneg %p1813
              // Predicated region
              $region249: #{stargcn_forward.1} parent=207 // pred_check
                _
              $region250: #{stargcn_forward.1} parent=207 // pred_check_branch
                %1816 = sbr.rel (%p1813) target = $region252
              $region251: #{stargcn_forward.1} parent=207 // pred_region
                %s1817 = scalar_lea.vmem [#allocation2], %s1810
                %v1818 = vld [vmem:[%s1817] sm:$0x1]
                %1819 = vst [vmem:[#allocation5 + $0xa] sm:$0x1] %v1818
              $region252: #{stargcn_forward.1} parent=207 // pred_fallthru
                _
              %s1820 = sld [smem:[#allocation8 + $0x3]]
              %s1821 = ssub.s32 %s1820, %s1403
              %p1822 = scmp.ge.s32.totalorder %s1821, 0
              %p1823 = scmp.lt.s32.totalorder %s1821, 64
              %p1824 = pnand %p1822, %p1823
              %p1825 = pneg %p1824
              // Predicated region
              $region253: #{stargcn_forward.1} parent=207 // pred_check
                _
              $region254: #{stargcn_forward.1} parent=207 // pred_check_branch
                %1827 = sbr.rel (%p1824) target = $region256
              $region255: #{stargcn_forward.1} parent=207 // pred_region
                %s1828 = scalar_lea.vmem [#allocation2], %s1821
                %v1829 = vld [vmem:[%s1828] sm:$0x1]
                %1830 = vst [vmem:[#allocation5 + $0xb] sm:$0x1] %v1829
              $region256: #{stargcn_forward.1} parent=207 // pred_fallthru
                _
              %s1831 = sld [smem:[#allocation8 + $0x4]]
              %s1832 = ssub.s32 %s1831, %s1403
              %p1833 = scmp.ge.s32.totalorder %s1832, 0
              %p1834 = scmp.lt.s32.totalorder %s1832, 64
              %p1835 = pnand %p1833, %p1834
              %p1836 = pneg %p1835
              // Predicated region
              $region257: #{stargcn_forward.1} parent=207 // pred_check
                _
              $region258: #{stargcn_forward.1} parent=207 // pred_check_branch
                %1838 = sbr.rel (%p1835) target = $region260
              $region259: #{stargcn_forward.1} parent=207 // pred_region
                %s1839 = scalar_lea.vmem [#allocation2], %s1832
                %v1840 = vld [vmem:[%s1839] sm:$0x1]
                %1841 = vst [vmem:[#allocation5 + $0xc] sm:$0x1] %v1840
              $region260: #{stargcn_forward.1} parent=207 // pred_fallthru
                _
              %s1842 = sld [smem:[#allocation8 + $0x5]]
              %s1843 = ssub.s32 %s1842, %s1403
              %p1844 = scmp.ge.s32.totalorder %s1843, 0
              %p1845 = scmp.lt.s32.totalorder %s1843, 64
              %p1846 = pnand %p1844, %p1845
              %p1847 = pneg %p1846
              // Predicated region
              $region261: #{stargcn_forward.1} parent=207 // pred_check
                _
              $region262: #{stargcn_forward.1} parent=207 // pred_check_branch
                %1849 = sbr.rel (%p1846) target = $region264
              $region263: #{stargcn_forward.1} parent=207 // pred_region
                %s1850 = scalar_lea.vmem [#allocation2], %s1843
                %v1851 = vld [vmem:[%s1850] sm:$0x1]
                %1852 = vst [vmem:[#allocation5 + $0xd] sm:$0x1] %v1851
              $region264: #{stargcn_forward.1} parent=207 // pred_fallthru
                _
              %s1853 = sld [smem:[#allocation8 + $0x6]]
              %s1854 = ssub.s32 %s1853, %s1403
              %p1855 = scmp.ge.s32.totalorder %s1854, 0
              %p1856 = scmp.lt.s32.totalorder %s1854, 64
              %p1857 = pnand %p1855, %p1856
              %p1858 = pneg %p1857
              // Predicated region
              $region265: #{stargcn_forward.1} parent=207 // pred_check
                _
              $region266: #{stargcn_forward.1} parent=207 // pred_check_branch
                %1860 = sbr.rel (%p1857) target = $region268
              $region267: #{stargcn_forward.1} parent=207 // pred_region
                %s1861 = scalar_lea.vmem [#allocation2], %s1854
                %v1862 = vld [vmem:[%s1861] sm:$0x1]
                %1863 = vst [vmem:[#allocation5 + $0xe] sm:$0x1] %v1862
              $region268: #{stargcn_forward.1} parent=207 // pred_fallthru
                _
              %s1864 = sld [smem:[#allocation8 + $0x7]]
              %s1865 = ssub.s32 %s1864, %s1403
              %p1866 = scmp.ge.s32.totalorder %s1865, 0
              %p1867 = scmp.lt.s32.totalorder %s1865, 64
              %p1868 = pnand %p1866, %p1867
              %p1869 = pneg %p1868
              // Predicated region
              $region269: #{stargcn_forward.1} parent=207 // pred_check
                _
              $region270: #{stargcn_forward.1} parent=207 // pred_check_branch
                %1871 = sbr.rel (%p1868) target = $region272
              $region271: #{stargcn_forward.1} parent=207 // pred_region
                %s1872 = scalar_lea.vmem [#allocation2], %s1865
                %v1873 = vld [vmem:[%s1872] sm:$0x1]
                %1874 = vst [vmem:[#allocation5 + $0xf] sm:$0x1] %v1873
              $region272: #{stargcn_forward.1} parent=207 // pred_fallthru
                _
              %s1875 = sld [smem:[#allocation9]]
              %s1876 = ssub.s32 %s1875, %s1403
              %p1877 = scmp.ge.s32.totalorder %s1876, 0
              %p1878 = scmp.lt.s32.totalorder %s1876, 64
              %p1879 = pnand %p1877, %p1878
              %p1880 = pneg %p1879
              // Predicated region
              $region273: #{stargcn_forward.1} parent=207 // pred_check
                _
              $region274: #{stargcn_forward.1} parent=207 // pred_check_branch
                %1882 = sbr.rel (%p1879) target = $region276
              $region275: #{stargcn_forward.1} parent=207 // pred_region
                %s1883 = scalar_lea.vmem [#allocation2], %s1876
                %v1884 = vld [vmem:[%s1883] sm:$0x1]
                %1885 = vst [vmem:[#allocation5 + $0x10] sm:$0x1] %v1884
              $region276: #{stargcn_forward.1} parent=207 // pred_fallthru
                _
              %s1886 = sld [smem:[#allocation9 + $0x1]]
              %s1887 = ssub.s32 %s1886, %s1403
              %p1888 = scmp.ge.s32.totalorder %s1887, 0
              %p1889 = scmp.lt.s32.totalorder %s1887, 64
              %p1890 = pnand %p1888, %p1889
              %p1891 = pneg %p1890
              // Predicated region
              $region277: #{stargcn_forward.1} parent=207 // pred_check
                _
              $region278: #{stargcn_forward.1} parent=207 // pred_check_branch
                %1893 = sbr.rel (%p1890) target = $region280
              $region279: #{stargcn_forward.1} parent=207 // pred_region
                %s1894 = scalar_lea.vmem [#allocation2], %s1887
                %v1895 = vld [vmem:[%s1894] sm:$0x1]
                %1896 = vst [vmem:[#allocation5 + $0x11] sm:$0x1] %v1895
              $region280: #{stargcn_forward.1} parent=207 // pred_fallthru
                _
              %s1897 = sld [smem:[#allocation9 + $0x2]]
              %s1898 = ssub.s32 %s1897, %s1403
              %p1899 = scmp.ge.s32.totalorder %s1898, 0
              %p1900 = scmp.lt.s32.totalorder %s1898, 64
              %p1901 = pnand %p1899, %p1900
              %p1902 = pneg %p1901
              // Predicated region
              $region281: #{stargcn_forward.1} parent=207 // pred_check
                _
              $region282: #{stargcn_forward.1} parent=207 // pred_check_branch
                %1904 = sbr.rel (%p1901) target = $region284
              $region283: #{stargcn_forward.1} parent=207 // pred_region
                %s1905 = scalar_lea.vmem [#allocation2], %s1898
                %v1906 = vld [vmem:[%s1905] sm:$0x1]
                %1907 = vst [vmem:[#allocation5 + $0x12] sm:$0x1] %v1906
              $region284: #{stargcn_forward.1} parent=207 // pred_fallthru
                _
              %s1908 = sld [smem:[#allocation9 + $0x3]]
              %s1909 = ssub.s32 %s1908, %s1403
              %p1910 = scmp.ge.s32.totalorder %s1909, 0
              %p1911 = scmp.lt.s32.totalorder %s1909, 64
              %p1912 = pnand %p1910, %p1911
              %p1913 = pneg %p1912
              // Predicated region
              $region285: #{stargcn_forward.1} parent=207 // pred_check
                _
              $region286: #{stargcn_forward.1} parent=207 // pred_check_branch
                %1915 = sbr.rel (%p1912) target = $region288
              $region287: #{stargcn_forward.1} parent=207 // pred_region
                %s1916 = scalar_lea.vmem [#allocation2], %s1909
                %v1917 = vld [vmem:[%s1916] sm:$0x1]
                %1918 = vst [vmem:[#allocation5 + $0x13] sm:$0x1] %v1917
              $region288: #{stargcn_forward.1} parent=207 // pred_fallthru
                _
              %s1919 = sld [smem:[#allocation9 + $0x4]]
              %s1920 = ssub.s32 %s1919, %s1403
              %p1921 = scmp.ge.s32.totalorder %s1920, 0
              %p1922 = scmp.lt.s32.totalorder %s1920, 64
              %p1923 = pnand %p1921, %p1922
              %p1924 = pneg %p1923
              // Predicated region
              $region289: #{stargcn_forward.1} parent=207 // pred_check
                _
              $region290: #{stargcn_forward.1} parent=207 // pred_check_branch
                %1926 = sbr.rel (%p1923) target = $region292
              $region291: #{stargcn_forward.1} parent=207 // pred_region
                %s1927 = scalar_lea.vmem [#allocation2], %s1920
                %v1928 = vld [vmem:[%s1927] sm:$0x1]
                %1929 = vst [vmem:[#allocation5 + $0x14] sm:$0x1] %v1928
              $region292: #{stargcn_forward.1} parent=207 // pred_fallthru
                _
              %s1930 = sld [smem:[#allocation9 + $0x5]]
              %s1931 = ssub.s32 %s1930, %s1403
              %p1932 = scmp.ge.s32.totalorder %s1931, 0
              %p1933 = scmp.lt.s32.totalorder %s1931, 64
              %p1934 = pnand %p1932, %p1933
              %p1935 = pneg %p1934
              // Predicated region
              $region293: #{stargcn_forward.1} parent=207 // pred_check
                _
              $region294: #{stargcn_forward.1} parent=207 // pred_check_branch
                %1937 = sbr.rel (%p1934) target = $region296
              $region295: #{stargcn_forward.1} parent=207 // pred_region
                %s1938 = scalar_lea.vmem [#allocation2], %s1931
                %v1939 = vld [vmem:[%s1938] sm:$0x1]
                %1940 = vst [vmem:[#allocation5 + $0x15] sm:$0x1] %v1939
              $region296: #{stargcn_forward.1} parent=207 // pred_fallthru
                _
              %s1941 = sld [smem:[#allocation9 + $0x6]]
              %s1942 = ssub.s32 %s1941, %s1403
              %p1943 = scmp.ge.s32.totalorder %s1942, 0
              %p1944 = scmp.lt.s32.totalorder %s1942, 64
              %p1945 = pnand %p1943, %p1944
              %p1946 = pneg %p1945
              // Predicated region
              $region297: #{stargcn_forward.1} parent=207 // pred_check
                _
              $region298: #{stargcn_forward.1} parent=207 // pred_check_branch
                %1948 = sbr.rel (%p1945) target = $region300
              $region299: #{stargcn_forward.1} parent=207 // pred_region
                %s1949 = scalar_lea.vmem [#allocation2], %s1942
                %v1950 = vld [vmem:[%s1949] sm:$0x1]
                %1951 = vst [vmem:[#allocation5 + $0x16] sm:$0x1] %v1950
              $region300: #{stargcn_forward.1} parent=207 // pred_fallthru
                _
              %s1952 = sld [smem:[#allocation9 + $0x7]]
              %s1953 = ssub.s32 %s1952, %s1403
              %p1954 = scmp.ge.s32.totalorder %s1953, 0
              %p1955 = scmp.lt.s32.totalorder %s1953, 64
              %p1956 = pnand %p1954, %p1955
              %p1957 = pneg %p1956
              // Predicated region
              $region301: #{stargcn_forward.1} parent=207 // pred_check
                _
              $region302: #{stargcn_forward.1} parent=207 // pred_check_branch
                %1959 = sbr.rel (%p1956) target = $region304
              $region303: #{stargcn_forward.1} parent=207 // pred_region
                %s1960 = scalar_lea.vmem [#allocation2], %s1953
                %v1961 = vld [vmem:[%s1960] sm:$0x1]
                %1962 = vst [vmem:[#allocation5 + $0x17] sm:$0x1] %v1961
              $region304: #{stargcn_forward.1} parent=207 // pred_fallthru
                _
            $region208: #{stargcn_forward.1} parent=103 // pred_fallthru
              _
          $region104: #{stargcn_forward.1} parent=95 // pred_fallthru
            _
          %p1963 = scmp.eq.s32.totalorder %s51, 6
          %p1964 = pnand %p771, %p1963
          %p1965 = pneg %p1964
          // Predicated region
          $region305: #{stargcn_forward.1} parent=95 // pred_check
            _
          $region306: #{stargcn_forward.1} parent=95 // pred_check_branch
            %1967 = sbr.rel (%p1964) target = $region308
          $region307: #{stargcn_forward.1} parent=95 // pred_region
            %v1968 = vld [vmem:[#allocation4] sm:$0xff]
            %v1969 = vld [vmem:[#allocation4 + $0x8] sm:$0xff]
            %v1970 = vld [vmem:[#allocation4 + $0x10] sm:$0xff]
            %v1971 = vld [vmem:[#allocation5] sm:$0xff]
            %v1972 = vld [vmem:[#allocation5 + $0x8] sm:$0xff]
            %v1973 = vld [vmem:[#allocation5 + $0x10] sm:$0xff]
            %v1974 = vmul.f32 %v1971, %v1972
            %1975 = vadd.xlane.f32.xlu0 %v1974
            %v1976 = vpop.xlane.xlu0 %1975
            %v1977 = vmul.f32 %v1971, %v1973
            %1978 = vadd.xlane.f32.xlu0 %v1977
            %v1979 = vpop.xlane.xlu0 %1978
            %v1980 = vmul.f32 %v1968, %v1969
            %1981 = vadd.xlane.f32.xlu0 %v1980
            %v1982 = vpop.xlane.xlu0 %1981
            %v1983 = vmul.f32 %v1968, %v1970
            %1984 = vadd.xlane.f32.xlu0 %v1983
            %v1985 = vpop.xlane.xlu0 %1984
            %v1986 = vlaneseq
            %v1987 = vand.u32 %v1986, 127
            %vm1988 = vcmp.eq.s32.totalorder %v1987, 0
            %v1989 = vsel %vm1988, %v1976, 0.0
            %vm1990 = vcmp.eq.s32.totalorder %v1987, 1
            %v1991 = vsel %vm1990, %v1979, 0.0
            %v1992 = vadd.f32 %v1989, %v1991
            %vm1993 = vcmp.eq.s32.totalorder %v1987, 2
            %v1994 = vsel %vm1993, %v1982, 0.0
            %v1995 = vadd.f32 %v1992, %v1994
            %vm1996 = vcmp.eq.s32.totalorder %v1987, 3
            %v1997 = vsel %vm1996, %v1985, 0.0
            %v1998 = vadd.f32 %v1995, %v1997
            %1999 = vst [vmem:[%s9] sm:$0xff] %v1998
          $region308: #{stargcn_forward.1} parent=95 // pred_fallthru
            _
        $region96: #{stargcn_forward.1} parent=39 // pred_fallthru
          _
        // Predicated region
        $region309: #{stargcn_forward.1} parent=39 // pred_check
          %p2000 = pneg %p220
        $region310: #{stargcn_forward.1} parent=39 // pred_check_branch
          %2002 = sbr.rel (%p2000) target = $region312
        $region311: #{stargcn_forward.1} parent=39 // pred_region
          _
        $region312: #{stargcn_forward.1} parent=39 // pred_fallthru
          _
        // Predicated region
        $region313: #{stargcn_forward.1} parent=39 // pred_check
          %p2003 = pneg %p220
        $region314: #{stargcn_forward.1} parent=39 // pred_check_branch
          %2005 = sbr.rel (%p2003) target = $region316
        $region315: #{stargcn_forward.1} parent=39 // pred_region
          _
        $region316: #{stargcn_forward.1} parent=39 // pred_fallthru
          _
      $region40: #{stargcn_forward.1} parent=5 // pred_fallthru
        _
      %p2006 = scmp.le.s32.totalorder 2, %s40
      // Predicated region
      $region317: #{stargcn_forward.1} parent=5 // pred_check
        %p2007 = pneg %p2006
      $region318: #{stargcn_forward.1} parent=5 // pred_check_branch
        %2009 = sbr.rel (%p2007) target = $region320
      $region319: #{stargcn_forward.1} parent=5 // pred_region
        %s2010 = ssub.s32 %s40, 2
      $region320: #{stargcn_forward.1} parent=5 // pred_fallthru
        _
    $region6: #{stargcn_forward.1} parent=1 // loop_footer
      %s44 = sadd.s32 1, %s40
    $region7: #{stargcn_forward.1} parent=1 // loop_footer_branch
      %39 = sbr.rel target = $region3
    $region8: #{stargcn_forward.1} parent=1 // loop_exit
      _
    %2011 = vsyncpa [#allocation12], 1
    %s2012 = scalar_lea.sflag [#allocation12], 1
    %2013 = vsyncpa %s2012, 1
    %2014 = vsyncpa [#allocation14], 1
    %s2015 = scalar_lea.sflag [#allocation14], 1
    %2016 = vsyncpa %s2015, 1
    %2017 = vsyncpa [#allocation17], 1

</llo_original>
